<compile_context>
chip_gen: v6e
topology: v6e:2x2x1
jax: 0.10.0
libtpu: 0.0.40
codegen_flags: <defaults>
</compile_context>

<pallas_src>
import math
from functools import partial

import numpy as np
import jax
import jax.numpy as jnp
from jax import lax
from jax.experimental import pallas as pl
from jax.experimental.pallas import tpu as pltpu

HIDDEN_DIM = 32
NUM_HEADS = 8
HEAD_DIM = HIDDEN_DIM // NUM_HEADS
POOL_RATIOS = [0.7, 0.5, 0.3]

# Below these row counts, pallas_call setup overhead dominates -> plain XLA fallback.
_POOL_PALLAS_MIN_ROWS = 256
_MHA_PALLAS_MIN_ROWS = 256


# ------------------------------------------------------------------ Pallas kernels

def _pool_gate_project_kernel(x_ref, wf_ref, bp_ref, o_ref):
    # One MXU matmul against the fused weight [Wp^T | wn replicated]:
    #   y[:, :dout]      = x @ Wp^T
    #   y[:, dout:2dout] = (x @ wn) broadcast across dout lanes   (gate score, pre-tanh)
    # out = tanh(score) * proj + bp   ==   ((x * tanh(x@wn)) @ Wp^T + bp)
    y = jnp.dot(x_ref[...], wf_ref[...], preferred_element_type=jnp.float32)
    dout = o_ref.shape[-1]
    proj = y[:, :dout]
    score = jnp.tanh(y[:, dout:])
    o_ref[...] = score * proj + bp_ref[...]


def pool_gate_project(x_sel, wn, wp, bp, *, tile_m=1024, use_pallas=None):
    k, d = x_sel.shape
    dout = wp.shape[0]
    # Fused weight: [d, 2*dout]; the gate column is replicated dout times so the score
    # arrives already lane-broadcast (no cross-lane broadcast needed in the kernel).
    wf = jnp.concatenate(
        [wp.T, jnp.broadcast_to(wn.reshape(d, 1), (d, dout))], axis=1)
    bp2 = bp.reshape(1, dout)

    if use_pallas is None:
        use_pallas = k >= _POOL_PALLAS_MIN_ROWS
    if not use_pallas:
        y = x_sel @ wf
        return jnp.tanh(y[:, dout:]) * y[:, :dout] + bp2

    tm = k if k <= tile_m else tile_m          # big tiles pipeline; tiny graphs = 1 block
    grid = (pl.cdiv(k, tm),)
    return pl.pallas_call(
        _pool_gate_project_kernel,
        out_shape=jax.ShapeDtypeStruct((k, dout), jnp.float32),
        grid=grid,
        in_specs=[
            pl.BlockSpec((tm, d), lambda i: (i, 0)),
            pl.BlockSpec((d, 2 * dout), lambda i: (0, 0)),
            pl.BlockSpec((1, dout), lambda i: (0, 0)),
        ],
        out_specs=pl.BlockSpec((tm, dout), lambda i: (i, 0)),
        compiler_params=pltpu.CompilerParams(dimension_semantics=("parallel",)),
    )(x_sel, wf, bp2)


def _mha_kernel(q_ref, kv_ref, wqkv_ref, bqkv_ref, woT_ref, bo_ref,
                rep_ref, hmask_ref, segT_ref, o_ref):
    d = woT_ref.shape[0]
    head_dim = d // NUM_HEADS
    scale = 1.0 / math.sqrt(head_dim)

    # Fused Q|K|V projection: one 128-lane-wide MXU matmul per stream.
    wqkv = wqkv_ref[...]                       # [d, 128]  (Wq^T | Wk^T | Wv^T | zero pad)
    bqkv = bqkv_ref[...]                       # [1, 128]
    q_all = jnp.dot(q_ref[0], wqkv, preferred_element_type=jnp.float32) + bqkv
    kv_all = jnp.dot(kv_ref[0], wqkv, preferred_element_type=jnp.float32) + bqkv
    q = q_all[:, 0:d]                          # [Lq, d]
    k = kv_all[:, d:2 * d]                     # [Lk, d]
    v = kv_all[:, 2 * d:3 * d]                 # [Lk, d]

    # All-heads K/V slabs [H*Lk, d]: rep (constant) tiles K/V 8x on the idle MXU,
    # hmask (constant) keeps only head h's columns in rows h*Lk:(h+1)*Lk.
    rep = rep_ref[...]                         # [H*Lk, Lk]
    hmask = hmask_ref[...]                     # [H*Lk, d]
    k_heads = jnp.dot(rep, k, preferred_element_type=jnp.float32) * hmask
    v_heads = jnp.dot(rep, v, preferred_element_type=jnp.float32) * hmask

    # All heads' scores in ONE lane-dense matmul: [Lq, H*Lk].
    s_all = lax.dot_general(q, k_heads, (((1,), (1,)), ((), ())),
                            preferred_element_type=jnp.float32) * scale

    # Per-head softmax over the key axis, stabilized with the per-row global max
    # (identical to per-head max in exact arithmetic). Segment sums + their broadcast
    # back to [Lq, H*Lk] are two tiny MXU matmuls with the constant segment indicator.
    e_all = jnp.exp(s_all - jnp.max(s_all, axis=-1, keepdims=True))
    segT = segT_ref[...]                       # [H*Lk, H]
    denom_h = jnp.dot(e_all, segT, preferred_element_type=jnp.float32)        # [Lq, H]
    denom = lax.dot_general(denom_h, segT, (((1,), (1,)), ((), ())),
                            preferred_element_type=jnp.float32)               # [Lq, H*Lk]
    p_all = e_all * pl.reciprocal(denom + 1e-20, approx=True)

    # All-heads PV in one matmul (head h lands in its own d/H column block), then one
    # output projection. No key-padding mask: matches the reference, which calls
    # nn.MultiheadAttention without key_padding_mask (result is discarded anyway).
    acc = jnp.dot(p_all, v_heads, preferred_element_type=jnp.float32)          # [Lq, d]
    o_ref[0] = jnp.dot(acc, woT_ref[...], preferred_element_type=jnp.float32) + bo_ref[...]


def cross_scale_mha(dense_q, dense_kv, attn_params, *, use_pallas=None):
    wq, wk, wv, wo, bq, bk, bv, bo = attn_params
    bsz, lq, d = dense_q.shape
    lk = dense_kv.shape[1]
    dh = d // NUM_HEADS

    if use_pallas is None:
        use_pallas = bsz * lq >= _MHA_PALLAS_MIN_ROWS
    if not use_pallas:
        # Plain-XLA reference path (exact softmax); used for tiny levels / cross-check.
        q = dense_q @ wq.T + bq
        k = dense_kv @ wk.T + bk
        v = dense_kv @ wv.T + bv
        qh = q.reshape(bsz, lq, NUM_HEADS, dh).transpose(0, 2, 1, 3)
        kh = k.reshape(bsz, lk, NUM_HEADS, dh).transpose(0, 2, 1, 3)
        vh = v.reshape(bsz, lk, NUM_HEADS, dh).transpose(0, 2, 1, 3)
        s = jnp.einsum("bhqd,bhkd->bhqk", qh, kh) / math.sqrt(dh)
        p = jax.nn.softmax(s, axis=-1)
        o = jnp.einsum("bhqk,bhkd->bhqd", p, vh).transpose(0, 2, 1, 3).reshape(bsz, lq, d)
        return o @ wo.T + bo

    # Fused QKV weight / bias, zero-padded to 128 output lanes (lane-dense projection).
    w_qkv = jnp.concatenate([wq.T, wk.T, wv.T], axis=1)          # [d, 3d]
    b_qkv = jnp.concatenate([bq, bk, bv])                        # [3d]
    pad = (-3 * d) % 128
    if pad:
        w_qkv = jnp.pad(w_qkv, ((0, 0), (0, pad)))
        b_qkv = jnp.pad(b_qkv, (0, pad))
    dproj = 3 * d + pad

    # Static constants for the all-heads slab (built once in numpy, DMA'd once).
    rows = np.arange(NUM_HEADS * lk)
    head_of_row = rows // lk
    rep = jnp.asarray((rows[:, None] % lk == np.arange(lk)[None, :]).astype(np.float32))
    hmask = jnp.asarray(
        (np.arange(d)[None, :] // dh == head_of_row[:, None]).astype(np.float32))
    segT = jnp.asarray(
        (np.arange(NUM_HEADS)[None, :] == head_of_row[:, None]).astype(np.float32))

    return pl.pallas_call(
        _mha_kernel,
        out_shape=jax.ShapeDtypeStruct((bsz, lq, d), jnp.float32),
        grid=(bsz,),                                            # batch on the grid
        in_specs=[
            pl.BlockSpec((1, lq, d), lambda i: (i, 0, 0)),
            pl.BlockSpec((1, lk, d), lambda i: (i, 0, 0)),
            pl.BlockSpec((d, dproj), lambda i: (0, 0)),
            pl.BlockSpec((1, dproj), lambda i: (0, 0)),
            pl.BlockSpec((d, d), lambda i: (0, 0)),
            pl.BlockSpec((1, d), lambda i: (0, 0)),
            pl.BlockSpec((NUM_HEADS * lk, lk), lambda i: (0, 0)),
            pl.BlockSpec((NUM_HEADS * lk, d), lambda i: (0, 0)),
            pl.BlockSpec((NUM_HEADS * lk, NUM_HEADS), lambda i: (0, 0)),
        ],
        out_specs=pl.BlockSpec((1, lq, d), lambda i: (i, 0, 0)),
        compiler_params=pltpu.CompilerParams(dimension_semantics=("parallel",)),
    )(dense_q, dense_kv, w_qkv, b_qkv.reshape(1, dproj), wo.T, bo.reshape(1, d),
      rep, hmask, segT)


# ------------------------------------------------------------------ device-side graph glue
# Per-graph sizes at every level depend only on the (host-known) batch vector, so all
# slicing/padding plans are static and the selection/gather/remap runs on device inside
# one jit (no per-level host round-trips).

def build_level_counts(batch_np, ratios):
    assert np.all(np.diff(batch_np) >= 0), "batch must group nodes contiguously per graph"
    counts = np.bincount(batch_np).astype(np.int64)
    levels = [counts]
    for r in ratios:
        counts = np.ceil(r * counts).astype(np.int64)   # PyG topk: k_b = ceil(ratio * n_b)
        levels.append(counts)
    return levels


def _dense_gather_plan(counts):
    # Static gather indices + mask implementing to_dense_batch for contiguously batched rows.
    bsz = len(counts)
    lmax = int(max(counts))
    offs = np.concatenate([[0], np.cumsum(counts)])
    idx = np.zeros((bsz, lmax), np.int32)
    mask = np.zeros((bsz, lmax), np.float32)
    for b in range(bsz):
        idx[b, :] = offs[b]
        idx[b, : counts[b]] = offs[b] + np.arange(counts[b])
        mask[b, : counts[b]] = 1.0
    return idx, mask


def to_dense_batch_device(x, counts):
    idx, mask = _dense_gather_plan(counts)
    bsz, lmax = idx.shape
    dense = jnp.take(x, jnp.asarray(idx.reshape(-1)), axis=0).reshape(bsz, lmax, x.shape[1])
    return dense * jnp.asarray(mask)[:, :, None], mask.astype(bool)


def _batched_topk_perm(scores, counts_in, counts_out):
    # One dense lax.top_k over [B, Lmax] (-inf padded) instead of B tiny per-graph top_k's.
    bsz = len(counts_in)
    lmax = int(max(counts_in))
    kmax = int(max(counts_out))
    offs = np.concatenate([[0], np.cumsum(counts_in)]).astype(np.int32)
    idx, mask = _dense_gather_plan(counts_in)
    dense = jnp.take(scores, jnp.asarray(idx.reshape(-1))).reshape(bsz, lmax)
    dense = jnp.where(jnp.asarray(mask) > 0, dense, -jnp.inf)
    _, top_local = lax.top_k(dense, kmax)                  # [B, kmax], descending (PyG-like)
    gidx = jnp.asarray(offs[:-1])[:, None] + top_local.astype(jnp.int32)
    sel = np.concatenate(
        [b * kmax + np.arange(int(counts_out[b])) for b in range(bsz)]).astype(np.int32)
    return jnp.take(gidx.reshape(-1), jnp.asarray(sel))    # [sum(counts_out)]


# ------------------------------------------------------------------ parameters & forward

def init_params(key):
    n_pool = len(POOL_RATIOS)
    n_attn = n_pool - 1
    keys = iter(jax.random.split(key, 3 * n_pool + 8 * n_attn))
    scale = 1.0 / math.sqrt(HIDDEN_DIM)
    params = {"pool_w": [], "proj": [], "attn": []}
    for _ in range(n_pool):
        params["pool_w"].append(
            jax.random.normal(next(keys), (HIDDEN_DIM,), jnp.float32) * 0.5)
        w = jax.random.normal(next(keys), (HIDDEN_DIM, HIDDEN_DIM), jnp.float32) * scale
        b = jax.random.normal(next(keys), (HIDDEN_DIM,), jnp.float32) * 0.01
        params["proj"].append((w, b))
    for _ in range(n_attn):
        wq, wk, wv, wo = (
            jax.random.normal(next(keys), (HIDDEN_DIM, HIDDEN_DIM), jnp.float32) * scale
            for _ in range(4))
        bq, bk, bv, bo = (
            jax.random.normal(next(keys), (HIDDEN_DIM,), jnp.float32) * 0.01
            for _ in range(4))
        params["attn"].append((wq, wk, wv, wo, bq, bk, bv, bo))
    return params


def graph_pooling_hierarchy_forward(params, x, edge_src, edge_dst, edge_valid,
                                    *, level_counts, use_pallas=None):
    hierarchical_features = [x]
    aux_attended = []
    aux_edges = []
    cur_x = x
    cur_src, cur_dst, cur_valid = edge_src, edge_dst, edge_valid
    for i, _ratio in enumerate(POOL_RATIOS):
        counts_in = level_counts[i]
        counts_out = level_counts[i + 1]
        n_in = int(np.sum(counts_in))
        k_out = int(np.sum(counts_out))

        # ---- TopKPooling score + batched per-graph top-k ----
        # TODO(synk): data-dependent per-graph top-k selection / edge filtering are
        # dynamic-index bookkeeping; they run as XLA top_k/gather/scatter inside this
        # same jit rather than inside a Pallas kernel.
        w = params["pool_w"][i]
        wn = w * lax.rsqrt(jnp.sum(w * w))               # w / ||w||
        scores = jnp.tanh(cur_x @ wn)                    # [n_in]
        perm = _batched_topk_perm(scores, counts_in, counts_out)
        x_sel = jnp.take(cur_x, perm, axis=0)

        # ---- fused gate (tanh(x@wn) * (x@Wp^T)) + bias (Pallas) ----
        wp, bp = params["proj"][i]
        pooled_x = pool_gate_project(x_sel, wn, wp, bp, use_pallas=use_pallas)

        # ---- edge bookkeeping: PyG filter_adj, fixed-size arrays + validity mask ----
        pos = jnp.full((n_in,), -1, jnp.int32).at[perm].set(
            jnp.arange(k_out, dtype=jnp.int32))
        new_src = pos[cur_src]
        new_dst = pos[cur_dst]
        new_valid = cur_valid & (new_src >= 0) & (new_dst >= 0)
        cur_src = jnp.where(new_valid, new_src, 0)
        cur_dst = jnp.where(new_valid, new_dst, 0)
        cur_valid = new_valid
        aux_edges.append((cur_src, cur_dst, cur_valid))

        # ---- cross-scale MHA (Pallas); its result is discarded by the reference forward
        #      (current_x = attended[mask] is immediately overwritten by pooled_x). ----
        if i > 0:
            dense_cur, _mask_cur = to_dense_batch_device(cur_x, counts_in)
            dense_pool, _ = to_dense_batch_device(pooled_x, counts_out)
            attended = cross_scale_mha(dense_cur, dense_pool, params["attn"][i - 1],
                                       use_pallas=use_pallas)
            aux_attended.append(attended)

        hierarchical_features.append(pooled_x)
        cur_x = pooled_x
    return hierarchical_features, {"attended": aux_attended, "edges": aux_edges}


# ------------------------------------------------------------------ main

if __name__ == "__main__":
    key = jax.random.PRNGKey(0)
    k_x, k_p = jax.random.split(key)

    # Small deterministic graph batch: 2 graphs x 8 nodes, ring edges per graph.
    nodes_per_graph = [8, 8]
    N = sum(nodes_per_graph)
    batch_np = np.repeat(np.arange(len(nodes_per_graph)), nodes_per_graph).astype(np.int64)
    edges = []
    off = 0
    for n in nodes_per_graph:
        for j in range(n):
            edges.append((off + j, off + (j + 1) % n))
        off += n
    edge_index = np.array(edges, dtype=np.int32).T          # [2, E]

    x = jax.random.normal(k_x, (N, HIDDEN_DIM), jnp.float32)
    params = init_params(k_p)

    level_counts = build_level_counts(batch_np, POOL_RATIOS)
    args = (params, x,
            jnp.asarray(edge_index[0]), jnp.asarray(edge_index[1]),
            jnp.ones((edge_index.shape[1],), jnp.bool_))

    # Pallas path (forced so the kernels run even at demo sizes) ...
    fwd_pallas = jax.jit(partial(graph_pooling_hierarchy_forward,
                                 level_counts=level_counts, use_pallas=True))
    feats, aux = fwd_pallas(*args)
    jax.block_until_ready((feats, aux))

    # ... cross-checked against the plain-XLA fallback path.
    fwd_xla = jax.jit(partial(graph_pooling_hierarchy_forward,
                              level_counts=level_counts, use_pallas=False))
    feats_ref, aux_ref = fwd_xla(*args)
    jax.block_until_ready((feats_ref, aux_ref))

    # Expected hierarchy: [16, 12, 6, 2] nodes x 32 features; attended: [2,6,32], [2,3,32]
    assert [tuple(f.shape) for f in feats] == [(16, 32), (12, 32), (6, 32), (2, 32)]
    assert [tuple(a.shape) for a in aux["attended"]] == [(2, 6, 32), (2, 3, 32)]
    for a, b in zip(feats, feats_ref):
        np.testing.assert_allclose(np.asarray(a), np.asarray(b), rtol=1e-4, atol=1e-4)
    for a, b in zip(aux["attended"], aux_ref["attended"]):
        np.testing.assert_allclose(np.asarray(a), np.asarray(b), rtol=2e-2, atol=2e-2)
    print("KERNEL_OK")
</pallas_src>

<mosaic_0001>
module attributes {stable_mosaic.version = 11 : i64} {
  func.func @_pool_gate_project_kernel(%arg0: i32, %arg1: memref<12x32xf32, #tpu.memory_space<vmem>>, %arg2: memref<32x64xf32, #tpu.memory_space<vmem>>, %arg3: memref<1x32xf32, #tpu.memory_space<vmem>>, %arg4: memref<12x32xf32, #tpu.memory_space<vmem>>) attributes {dimension_semantics = [#tpu.dimension_semantics<parallel>], iteration_bounds = array<i64: 1>, scalar_prefetch = 0 : i64, scratch_operands = 0 : i64, tpu.core_type = #tpu.core_type<tc>, window_params = [{transform_indices = @transform_0, window_bounds = array<i64: 12, 32>}, {pipeline_mode = #tpu.pipeline_mode<synchronous>, transform_indices = @transform_1, window_bounds = array<i64: 32, 64>}, {pipeline_mode = #tpu.pipeline_mode<synchronous>, transform_indices = @transform_2, window_bounds = array<i64: 1, 32>}, {transform_indices = @transform_3, window_bounds = array<i64: 12, 32>}]} {
    %c0 = arith.constant 0 : index
    %c0_0 = arith.constant 0 : index
    %0 = vector.load %arg1[%c0, %c0_0] : memref<12x32xf32, #tpu.memory_space<vmem>>, vector<12x32xf32>
    %c0_1 = arith.constant 0 : index
    %c0_2 = arith.constant 0 : index
    %1 = vector.load %arg2[%c0_1, %c0_2] : memref<32x64xf32, #tpu.memory_space<vmem>>, vector<32x64xf32>
    %cst = arith.constant dense<0.000000e+00> : vector<12x64xf32>
    %2 = tpu.matmul %0, %1, %cst {dimension_numbers = #tpu.dot_dimension_numbers<[1], [0], [0], [1], [0, 0, 1, 1], [], []>} : vector<12x32xf32>, vector<32x64xf32>, vector<12x64xf32> -> vector<12x64xf32>
    %3 = vector.extract_strided_slice %2 {offsets = [0, 0], sizes = [12, 32], strides = [1, 1]} : vector<12x64xf32> to vector<12x32xf32>
    %4 = vector.extract_strided_slice %2 {offsets = [0, 32], sizes = [12, 32], strides = [1, 1]} : vector<12x64xf32> to vector<12x32xf32>
    %5 = math.tanh %4 : vector<12x32xf32>
    %6 = arith.mulf %5, %3 : vector<12x32xf32>
    %c0_3 = arith.constant 0 : index
    %c0_4 = arith.constant 0 : index
    %7 = vector.load %arg3[%c0_3, %c0_4] : memref<1x32xf32, #tpu.memory_space<vmem>>, vector<1x32xf32>
    %8 = vector.broadcast %7 : vector<1x32xf32> to vector<12x32xf32>
    %9 = arith.addf %6, %8 : vector<12x32xf32>
    %c0_5 = arith.constant 0 : index
    %c0_6 = arith.constant 0 : index
    %10 = vector.load %arg4[%c0_5, %c0_6] : memref<12x32xf32, #tpu.memory_space<vmem>>, vector<12x32xf32>
    tpu.vector_store %arg4[%c0_5, %c0_6], %9 {strides = array<i32>} : memref<12x32xf32, #tpu.memory_space<vmem>>, vector<12x32xf32>,
    return
  }
  func.func @transform_0(%arg0: i32) -> (i32, i32) {
    %c0_i32 = arith.constant 0 : i32
    %c0_i32_0 = arith.constant 0 : i32
    return %arg0, %c0_i32 : i32, i32
  }
  func.func @transform_1(%arg0: i32) -> (i32, i32) {
    %c0_i32 = arith.constant 0 : i32
    %c0_i32_0 = arith.constant 0 : i32
    %c0_i32_1 = arith.constant 0 : i32
    return %c0_i32, %c0_i32_0 : i32, i32
  }
  func.func @transform_2(%arg0: i32) -> (i32, i32) {
    %c0_i32 = arith.constant 0 : i32
    %c0_i32_0 = arith.constant 0 : i32
    %c0_i32_1 = arith.constant 0 : i32
    return %c0_i32, %c0_i32_0 : i32, i32
  }
  func.func @transform_3(%arg0: i32) -> (i32, i32) {
    %c0_i32 = arith.constant 0 : i32
    %c0_i32_0 = arith.constant 0 : i32
    return %arg0, %c0_i32 : i32, i32
  }
}

module attributes {stable_mosaic.version = 11 : i64} {
  func.func @_pool_gate_project_kernel(%arg0: i32, %arg1: memref<6x32xf32, #tpu.memory_space<vmem>>, %arg2: memref<32x64xf32, #tpu.memory_space<vmem>>, %arg3: memref<1x32xf32, #tpu.memory_space<vmem>>, %arg4: memref<6x32xf32, #tpu.memory_space<vmem>>) attributes {dimension_semantics = [#tpu.dimension_semantics<parallel>], iteration_bounds = array<i64: 1>, scalar_prefetch = 0 : i64, scratch_operands = 0 : i64, tpu.core_type = #tpu.core_type<tc>, window_params = [{transform_indices = @transform_0, window_bounds = array<i64: 6, 32>}, {pipeline_mode = #tpu.pipeline_mode<synchronous>, transform_indices = @transform_1, window_bounds = array<i64: 32, 64>}, {pipeline_mode = #tpu.pipeline_mode<synchronous>, transform_indices = @transform_2, window_bounds = array<i64: 1, 32>}, {transform_indices = @transform_3, window_bounds = array<i64: 6, 32>}]} {
    %c0 = arith.constant 0 : index
    %c0_0 = arith.constant 0 : index
    %0 = vector.load %arg1[%c0, %c0_0] : memref<6x32xf32, #tpu.memory_space<vmem>>, vector<6x32xf32>
    %c0_1 = arith.constant 0 : index
    %c0_2 = arith.constant 0 : index
    %1 = vector.load %arg2[%c0_1, %c0_2] : memref<32x64xf32, #tpu.memory_space<vmem>>, vector<32x64xf32>
    %cst = arith.constant dense<0.000000e+00> : vector<6x64xf32>
    %2 = tpu.matmul %0, %1, %cst {dimension_numbers = #tpu.dot_dimension_numbers<[1], [0], [0], [1], [0, 0, 1, 1], [], []>} : vector<6x32xf32>, vector<32x64xf32>, vector<6x64xf32> -> vector<6x64xf32>
    %3 = vector.extract_strided_slice %2 {offsets = [0, 0], sizes = [6, 32], strides = [1, 1]} : vector<6x64xf32> to vector<6x32xf32>
    %4 = vector.extract_strided_slice %2 {offsets = [0, 32], sizes = [6, 32], strides = [1, 1]} : vector<6x64xf32> to vector<6x32xf32>
    %5 = math.tanh %4 : vector<6x32xf32>
    %6 = arith.mulf %5, %3 : vector<6x32xf32>
    %c0_3 = arith.constant 0 : index
    %c0_4 = arith.constant 0 : index
    %7 = vector.load %arg3[%c0_3, %c0_4] : memref<1x32xf32, #tpu.memory_space<vmem>>, vector<1x32xf32>
    %8 = vector.broadcast %7 : vector<1x32xf32> to vector<6x32xf32>
    %9 = arith.addf %6, %8 : vector<6x32xf32>
    %c0_5 = arith.constant 0 : index
    %c0_6 = arith.constant 0 : index
    %10 = vector.load %arg4[%c0_5, %c0_6] : memref<6x32xf32, #tpu.memory_space<vmem>>, vector<6x32xf32>
    tpu.vector_store %arg4[%c0_5, %c0_6], %9 {strides = array<i32>} : memref<6x32xf32, #tpu.memory_space<vmem>>, vector<6x32xf32>,
    return
  }
  func.func @transform_0(%arg0: i32) -> (i32, i32) {
    %c0_i32 = arith.constant 0 : i32
    %c0_i32_0 = arith.constant 0 : i32
    return %arg0, %c0_i32 : i32, i32
  }
  func.func @transform_1(%arg0: i32) -> (i32, i32) {
    %c0_i32 = arith.constant 0 : i32
    %c0_i32_0 = arith.constant 0 : i32
    %c0_i32_1 = arith.constant 0 : i32
    return %c0_i32, %c0_i32_0 : i32, i32
  }
  func.func @transform_2(%arg0: i32) -> (i32, i32) {
    %c0_i32 = arith.constant 0 : i32
    %c0_i32_0 = arith.constant 0 : i32
    %c0_i32_1 = arith.constant 0 : i32
    return %c0_i32, %c0_i32_0 : i32, i32
  }
  func.func @transform_3(%arg0: i32) -> (i32, i32) {
    %c0_i32 = arith.constant 0 : i32
    %c0_i32_0 = arith.constant 0 : i32
    return %arg0, %c0_i32 : i32, i32
  }
}

module attributes {stable_mosaic.version = 11 : i64} {
  func.func @_pool_gate_project_kernel(%arg0: i32, %arg1: memref<2x32xf32, #tpu.memory_space<vmem>>, %arg2: memref<32x64xf32, #tpu.memory_space<vmem>>, %arg3: memref<1x32xf32, #tpu.memory_space<vmem>>, %arg4: memref<2x32xf32, #tpu.memory_space<vmem>>) attributes {dimension_semantics = [#tpu.dimension_semantics<parallel>], iteration_bounds = array<i64: 1>, scalar_prefetch = 0 : i64, scratch_operands = 0 : i64, tpu.core_type = #tpu.core_type<tc>, window_params = [{transform_indices = @transform_0, window_bounds = array<i64: 2, 32>}, {pipeline_mode = #tpu.pipeline_mode<synchronous>, transform_indices = @transform_1, window_bounds = array<i64: 32, 64>}, {pipeline_mode = #tpu.pipeline_mode<synchronous>, transform_indices = @transform_2, window_bounds = array<i64: 1, 32>}, {transform_indices = @transform_3, window_bounds = array<i64: 2, 32>}]} {
    %c0 = arith.constant 0 : index
    %c0_0 = arith.constant 0 : index
    %0 = vector.load %arg1[%c0, %c0_0] : memref<2x32xf32, #tpu.memory_space<vmem>>, vector<2x32xf32>
    %c0_1 = arith.constant 0 : index
    %c0_2 = arith.constant 0 : index
    %1 = vector.load %arg2[%c0_1, %c0_2] : memref<32x64xf32, #tpu.memory_space<vmem>>, vector<32x64xf32>
    %cst = arith.constant dense<0.000000e+00> : vector<2x64xf32>
    %2 = tpu.matmul %0, %1, %cst {dimension_numbers = #tpu.dot_dimension_numbers<[1], [0], [0], [1], [0, 0, 1, 1], [], []>} : vector<2x32xf32>, vector<32x64xf32>, vector<2x64xf32> -> vector<2x64xf32>
    %3 = vector.extract_strided_slice %2 {offsets = [0, 0], sizes = [2, 32], strides = [1, 1]} : vector<2x64xf32> to vector<2x32xf32>
    %4 = vector.extract_strided_slice %2 {offsets = [0, 32], sizes = [2, 32], strides = [1, 1]} : vector<2x64xf32> to vector<2x32xf32>
    %5 = math.tanh %4 : vector<2x32xf32>
    %6 = arith.mulf %5, %3 : vector<2x32xf32>
    %c0_3 = arith.constant 0 : index
    %c0_4 = arith.constant 0 : index
    %7 = vector.load %arg3[%c0_3, %c0_4] : memref<1x32xf32, #tpu.memory_space<vmem>>, vector<1x32xf32>
    %8 = vector.broadcast %7 : vector<1x32xf32> to vector<2x32xf32>
    %9 = arith.addf %6, %8 : vector<2x32xf32>
    %c0_5 = arith.constant 0 : index
    %c0_6 = arith.constant 0 : index
    %10 = vector.load %arg4[%c0_5, %c0_6] : memref<2x32xf32, #tpu.memory_space<vmem>>, vector<2x32xf32>
    tpu.vector_store %arg4[%c0_5, %c0_6], %9 {strides = array<i32>} : memref<2x32xf32, #tpu.memory_space<vmem>>, vector<2x32xf32>,
    return
  }
  func.func @transform_0(%arg0: i32) -> (i32, i32) {
    %c0_i32 = arith.constant 0 : i32
    %c0_i32_0 = arith.constant 0 : i32
    return %arg0, %c0_i32 : i32, i32
  }
  func.func @transform_1(%arg0: i32) -> (i32, i32) {
    %c0_i32 = arith.constant 0 : i32
    %c0_i32_0 = arith.constant 0 : i32
    %c0_i32_1 = arith.constant 0 : i32
    return %c0_i32, %c0_i32_0 : i32, i32
  }
  func.func @transform_2(%arg0: i32) -> (i32, i32) {
    %c0_i32 = arith.constant 0 : i32
    %c0_i32_0 = arith.constant 0 : i32
    %c0_i32_1 = arith.constant 0 : i32
    return %c0_i32, %c0_i32_0 : i32, i32
  }
  func.func @transform_3(%arg0: i32) -> (i32, i32) {
    %c0_i32 = arith.constant 0 : i32
    %c0_i32_0 = arith.constant 0 : i32
    return %arg0, %c0_i32 : i32, i32
  }
}

module attributes {stable_mosaic.version = 11 : i64} {
  func.func @_mha_kernel(%arg0: i32, %arg1: memref<1x3x32xf32, #tpu.memory_space<vmem>>, %arg2: memref<1x1x32xf32, #tpu.memory_space<vmem>>, %arg3: memref<32x128xf32, #tpu.memory_space<vmem>>, %arg4: memref<1x128xf32, #tpu.memory_space<vmem>>, %arg5: memref<32x32xf32, #tpu.memory_space<vmem>>, %arg6: memref<1x32xf32, #tpu.memory_space<vmem>>, %arg7: memref<8x1xf32, #tpu.memory_space<vmem>>, %arg8: memref<8x32xf32, #tpu.memory_space<vmem>>, %arg9: memref<8x8xf32, #tpu.memory_space<vmem>>, %arg10: memref<1x3x32xf32, #tpu.memory_space<vmem>>) attributes {dimension_semantics = [#tpu.dimension_semantics<parallel>], iteration_bounds = array<i64: 2>, scalar_prefetch = 0 : i64, scratch_operands = 0 : i64, tpu.core_type = #tpu.core_type<tc>, window_params = [{transform_indices = @transform_0, window_bounds = array<i64: 1, 3, 32>}, {transform_indices = @transform_1, window_bounds = array<i64: 1, 1, 32>}, {pipeline_mode = #tpu.pipeline_mode<synchronous>, transform_indices = @transform_2, window_bounds = array<i64: 32, 128>}, {pipeline_mode = #tpu.pipeline_mode<synchronous>, transform_indices = @transform_3, window_bounds = array<i64: 1, 128>}, {pipeline_mode = #tpu.pipeline_mode<synchronous>, transform_indices = @transform_4, window_bounds = array<i64: 32, 32>}, {pipeline_mode = #tpu.pipeline_mode<synchronous>, transform_indices = @transform_5, window_bounds = array<i64: 1, 32>}, {pipeline_mode = #tpu.pipeline_mode<synchronous>, transform_indices = @transform_6, window_bounds = array<i64: 8, 1>}, {pipeline_mode = #tpu.pipeline_mode<synchronous>, transform_indices = @transform_7, window_bounds = array<i64: 8, 32>}, {pipeline_mode = #tpu.pipeline_mode<synchronous>, transform_indices = @transform_8, window_bounds = array<i64: 8, 8>}, {transform_indices = @transform_9, window_bounds = array<i64: 1, 3, 32>}]} {
    %c0 = arith.constant 0 : index
    %c0_0 = arith.constant 0 : index
    %0 = vector.load %arg3[%c0, %c0_0] : memref<32x128xf32, #tpu.memory_space<vmem>>, vector<32x128xf32>
    %c0_1 = arith.constant 0 : index
    %c0_2 = arith.constant 0 : index
    %1 = vector.load %arg4[%c0_1, %c0_2] : memref<1x128xf32, #tpu.memory_space<vmem>>, vector<1x128xf32>
    %c0_3 = arith.constant 0 : index
    %c0_4 = arith.constant 0 : index
    %c0_5 = arith.constant 0 : index
    %2 = vector.load %arg1[%c0_3, %c0_4, %c0_5] : memref<1x3x32xf32, #tpu.memory_space<vmem>>, vector<1x3x32xf32>
    %3 = vector.shape_cast %2 : vector<1x3x32xf32> to vector<3x32xf32>
    %cst = arith.constant dense<0.000000e+00> : vector<3x128xf32>
    %4 = tpu.matmul %3, %0, %cst {dimension_numbers = #tpu.dot_dimension_numbers<[1], [0], [0], [1], [0, 0, 1, 1], [], []>} : vector<3x32xf32>, vector<32x128xf32>, vector<3x128xf32> -> vector<3x128xf32>
    %5 = vector.broadcast %1 : vector<1x128xf32> to vector<3x128xf32>
    %6 = arith.addf %4, %5 : vector<3x128xf32>
    %c0_6 = arith.constant 0 : index
    %c0_7 = arith.constant 0 : index
    %c0_8 = arith.constant 0 : index
    %7 = vector.load %arg2[%c0_6, %c0_7, %c0_8] : memref<1x1x32xf32, #tpu.memory_space<vmem>>, vector<1x1x32xf32>
    %8 = vector.shape_cast %7 : vector<1x1x32xf32> to vector<1x32xf32>
    %cst_9 = arith.constant dense<0.000000e+00> : vector<1x128xf32>
    %9 = tpu.matmul %8, %0, %cst_9 {dimension_numbers = #tpu.dot_dimension_numbers<[1], [0], [0], [1], [0, 0, 1, 1], [], []>} : vector<1x32xf32>, vector<32x128xf32>, vector<1x128xf32> -> vector<1x128xf32>
    %10 = arith.addf %9, %1 : vector<1x128xf32>
    %11 = vector.extract_strided_slice %6 {offsets = [0, 0], sizes = [3, 32], strides = [1, 1]} : vector<3x128xf32> to vector<3x32xf32>
    %12 = vector.extract_strided_slice %10 {offsets = [0, 32], sizes = [1, 32], strides = [1, 1]} : vector<1x128xf32> to vector<1x32xf32>
    %13 = vector.extract_strided_slice %10 {offsets = [0, 64], sizes = [1, 32], strides = [1, 1]} : vector<1x128xf32> to vector<1x32xf32>
    %c0_10 = arith.constant 0 : index
    %c0_11 = arith.constant 0 : index
    %14 = vector.load %arg7[%c0_10, %c0_11] : memref<8x1xf32, #tpu.memory_space<vmem>>, vector<8x1xf32>
    %c0_12 = arith.constant 0 : index
    %c0_13 = arith.constant 0 : index
    %15 = vector.load %arg8[%c0_12, %c0_13] : memref<8x32xf32, #tpu.memory_space<vmem>>, vector<8x32xf32>
    %cst_14 = arith.constant dense<0.000000e+00> : vector<8x32xf32>
    %16 = tpu.matmul %14, %12, %cst_14 {dimension_numbers = #tpu.dot_dimension_numbers<[1], [0], [0], [1], [0, 0, 1, 1], [], []>} : vector<8x1xf32>, vector<1x32xf32>, vector<8x32xf32> -> vector<8x32xf32>
    %17 = arith.mulf %16, %15 : vector<8x32xf32>
    %cst_15 = arith.constant dense<0.000000e+00> : vector<8x32xf32>
    %18 = tpu.matmul %14, %13, %cst_15 {dimension_numbers = #tpu.dot_dimension_numbers<[1], [0], [0], [1], [0, 0, 1, 1], [], []>} : vector<8x1xf32>, vector<1x32xf32>, vector<8x32xf32> -> vector<8x32xf32>
    %19 = arith.mulf %18, %15 : vector<8x32xf32>
    %cst_16 = arith.constant dense<0.000000e+00> : vector<3x8xf32>
    %20 = tpu.matmul %11, %17, %cst_16 {dimension_numbers = #tpu.dot_dimension_numbers<[1], [1], [0], [0], [0, 0, 1, 0], [], []>} : vector<3x32xf32>, vector<8x32xf32>, vector<3x8xf32> -> vector<3x8xf32>
    %cst_17 = arith.constant 5.000000e-01 : f32
    %21 = vector.broadcast %cst_17 : f32 to vector<3x8xf32>
    %22 = arith.mulf %20, %21 : vector<3x8xf32>
    %cst_18 = arith.constant dense<0xFF800000> : vector<3xf32>
    %23 = vector.multi_reduction <maximumf>, %22, %cst_18 [1] : vector<3x8xf32> to vector<3xf32>
    %24 = vector.shape_cast %23 : vector<3xf32> to vector<3x1xf32>
    %25 = vector.broadcast %24 : vector<3x1xf32> to vector<3x8xf32>
    %26 = arith.subf %22, %25 : vector<3x8xf32>
    %27 = math.exp %26 : vector<3x8xf32>
    %c0_19 = arith.constant 0 : index
    %c0_20 = arith.constant 0 : index
    %28 = vector.load %arg9[%c0_19, %c0_20] : memref<8x8xf32, #tpu.memory_space<vmem>>, vector<8x8xf32>
    %cst_21 = arith.constant dense<0.000000e+00> : vector<3x8xf32>
    %29 = tpu.matmul %27, %28, %cst_21 {dimension_numbers = #tpu.dot_dimension_numbers<[1], [0], [0], [1], [0, 0, 1, 1], [], []>} : vector<3x8xf32>, vector<8x8xf32>, vector<3x8xf32> -> vector<3x8xf32>
    %cst_22 = arith.constant dense<0.000000e+00> : vector<3x8xf32>
    %30 = tpu.matmul %29, %28, %cst_22 {dimension_numbers = #tpu.dot_dimension_numbers<[1], [1], [0], [0], [0, 0, 1, 0], [], []>} : vector<3x8xf32>, vector<8x8xf32>, vector<3x8xf32> -> vector<3x8xf32>
    %cst_23 = arith.constant 9.99999968E-21 : f32
    %31 = vector.broadcast %cst_23 : f32 to vector<3x8xf32>
    %32 = arith.addf %30, %31 : vector<3x8xf32>
    %33 = tpu.reciprocal %32 {approx = true} : vector<3x8xf32> -> vector<3x8xf32>
    %34 = arith.mulf %27, %33 : vector<3x8xf32>
    %cst_24 = arith.constant dense<0.000000e+00> : vector<3x32xf32>
    %35 = tpu.matmul %34, %19, %cst_24 {dimension_numbers = #tpu.dot_dimension_numbers<[1], [0], [0], [1], [0, 0, 1, 1], [], []>} : vector<3x8xf32>, vector<8x32xf32>, vector<3x32xf32> -> vector<3x32xf32>
    %c0_25 = arith.constant 0 : index
    %c0_26 = arith.constant 0 : index
    %36 = vector.load %arg5[%c0_25, %c0_26] : memref<32x32xf32, #tpu.memory_space<vmem>>, vector<32x32xf32>
    %cst_27 = arith.constant dense<0.000000e+00> : vector<3x32xf32>
    %37 = tpu.matmul %35, %36, %cst_27 {dimension_numbers = #tpu.dot_dimension_numbers<[1], [0], [0], [1], [0, 0, 1, 1], [], []>} : vector<3x32xf32>, vector<32x32xf32>, vector<3x32xf32> -> vector<3x32xf32>
    %c0_28 = arith.constant 0 : index
    %c0_29 = arith.constant 0 : index
    %38 = vector.load %arg6[%c0_28, %c0_29] : memref<1x32xf32, #tpu.memory_space<vmem>>, vector<1x32xf32>
    %39 = vector.broadcast %38 : vector<1x32xf32> to vector<3x32xf32>
    %40 = arith.addf %37, %39 : vector<3x32xf32>
    %c0_30 = arith.constant 0 : index
    %c0_31 = arith.constant 0 : index
    %c0_32 = arith.constant 0 : index
    %41 = vector.load %arg10[%c0_30, %c0_31, %c0_32] : memref<1x3x32xf32, #tpu.memory_space<vmem>>, vector<1x3x32xf32>
    %42 = vector.shape_cast %41 : vector<1x3x32xf32> to vector<3x32xf32>
    %43 = vector.shape_cast %40 : vector<3x32xf32> to vector<1x3x32xf32>
    tpu.vector_store %arg10[%c0_30, %c0_31, %c0_32], %43 {strides = array<i32>} : memref<1x3x32xf32, #tpu.memory_space<vmem>>, vector<1x3x32xf32>,
    return
  }
  func.func @transform_0(%arg0: i32) -> (i32, i32, i32) {
    %c0_i32 = arith.constant 0 : i32
    %c0_i32_0 = arith.constant 0 : i32
    %c0_i32_1 = arith.constant 0 : i32
    return %arg0, %c0_i32, %c0_i32_0 : i32, i32, i32
  }
  func.func @transform_1(%arg0: i32) -> (i32, i32, i32) {
    %c0_i32 = arith.constant 0 : i32
    %c0_i32_0 = arith.constant 0 : i32
    %c0_i32_1 = arith.constant 0 : i32
    return %arg0, %c0_i32, %c0_i32_0 : i32, i32, i32
  }
  func.func @transform_2(%arg0: i32) -> (i32, i32) {
    %c0_i32 = arith.constant 0 : i32
    %c0_i32_0 = arith.constant 0 : i32
    %c0_i32_1 = arith.constant 0 : i32
    return %c0_i32, %c0_i32_0 : i32, i32
  }
  func.func @transform_3(%arg0: i32) -> (i32, i32) {
    %c0_i32 = arith.constant 0 : i32
    %c0_i32_0 = arith.constant 0 : i32
    %c0_i32_1 = arith.constant 0 : i32
    return %c0_i32, %c0_i32_0 : i32, i32
  }
  func.func @transform_4(%arg0: i32) -> (i32, i32) {
    %c0_i32 = arith.constant 0 : i32
    %c0_i32_0 = arith.constant 0 : i32
    %c0_i32_1 = arith.constant 0 : i32
    return %c0_i32, %c0_i32_0 : i32, i32
  }
  func.func @transform_5(%arg0: i32) -> (i32, i32) {
    %c0_i32 = arith.constant 0 : i32
    %c0_i32_0 = arith.constant 0 : i32
    %c0_i32_1 = arith.constant 0 : i32
    return %c0_i32, %c0_i32_0 : i32, i32
  }
  func.func @transform_6(%arg0: i32) -> (i32, i32) {
    %c0_i32 = arith.constant 0 : i32
    %c0_i32_0 = arith.constant 0 : i32
    %c0_i32_1 = arith.constant 0 : i32
    return %c0_i32, %c0_i32_0 : i32, i32
  }
  func.func @transform_7(%arg0: i32) -> (i32, i32) {
    %c0_i32 = arith.constant 0 : i32
    %c0_i32_0 = arith.constant 0 : i32
    %c0_i32_1 = arith.constant 0 : i32
    return %c0_i32, %c0_i32_0 : i32, i32
  }
  func.func @transform_8(%arg0: i32) -> (i32, i32) {
    %c0_i32 = arith.constant 0 : i32
    %c0_i32_0 = arith.constant 0 : i32
    %c0_i32_1 = arith.constant 0 : i32
    return %c0_i32, %c0_i32_0 : i32, i32
  }
  func.func @transform_9(%arg0: i32) -> (i32, i32, i32) {
    %c0_i32 = arith.constant 0 : i32
    %c0_i32_0 = arith.constant 0 : i32
    %c0_i32_1 = arith.constant 0 : i32
    return %arg0, %c0_i32, %c0_i32_0 : i32, i32, i32
  }
}

module attributes {stable_mosaic.version = 11 : i64} {
  func.func @_mha_kernel(%arg0: i32, %arg1: memref<1x6x32xf32, #tpu.memory_space<vmem>>, %arg2: memref<1x3x32xf32, #tpu.memory_space<vmem>>, %arg3: memref<32x128xf32, #tpu.memory_space<vmem>>, %arg4: memref<1x128xf32, #tpu.memory_space<vmem>>, %arg5: memref<32x32xf32, #tpu.memory_space<vmem>>, %arg6: memref<1x32xf32, #tpu.memory_space<vmem>>, %arg7: memref<24x3xf32, #tpu.memory_space<vmem>>, %arg8: memref<24x32xf32, #tpu.memory_space<vmem>>, %arg9: memref<24x8xf32, #tpu.memory_space<vmem>>, %arg10: memref<1x6x32xf32, #tpu.memory_space<vmem>>) attributes {dimension_semantics = [#tpu.dimension_semantics<parallel>], iteration_bounds = array<i64: 2>, scalar_prefetch = 0 : i64, scratch_operands = 0 : i64, tpu.core_type = #tpu.core_type<tc>, window_params = [{transform_indices = @transform_0, window_bounds = array<i64: 1, 6, 32>}, {transform_indices = @transform_1, window_bounds = array<i64: 1, 3, 32>}, {pipeline_mode = #tpu.pipeline_mode<synchronous>, transform_indices = @transform_2, window_bounds = array<i64: 32, 128>}, {pipeline_mode = #tpu.pipeline_mode<synchronous>, transform_indices = @transform_3, window_bounds = array<i64: 1, 128>}, {pipeline_mode = #tpu.pipeline_mode<synchronous>, transform_indices = @transform_4, window_bounds = array<i64: 32, 32>}, {pipeline_mode = #tpu.pipeline_mode<synchronous>, transform_indices = @transform_5, window_bounds = array<i64: 1, 32>}, {pipeline_mode = #tpu.pipeline_mode<synchronous>, transform_indices = @transform_6, window_bounds = array<i64: 24, 3>}, {pipeline_mode = #tpu.pipeline_mode<synchronous>, transform_indices = @transform_7, window_bounds = array<i64: 24, 32>}, {pipeline_mode = #tpu.pipeline_mode<synchronous>, transform_indices = @transform_8, window_bounds = array<i64: 24, 8>}, {transform_indices = @transform_9, window_bounds = array<i64: 1, 6, 32>}]} {
    %c0 = arith.constant 0 : index
    %c0_0 = arith.constant 0 : index
    %0 = vector.load %arg3[%c0, %c0_0] : memref<32x128xf32, #tpu.memory_space<vmem>>, vector<32x128xf32>
    %c0_1 = arith.constant 0 : index
    %c0_2 = arith.constant 0 : index
    %1 = vector.load %arg4[%c0_1, %c0_2] : memref<1x128xf32, #tpu.memory_space<vmem>>, vector<1x128xf32>
    %c0_3 = arith.constant 0 : index
    %c0_4 = arith.constant 0 : index
    %c0_5 = arith.constant 0 : index
    %2 = vector.load %arg1[%c0_3, %c0_4, %c0_5] : memref<1x6x32xf32, #tpu.memory_space<vmem>>, vector<1x6x32xf32>
    %3 = vector.shape_cast %2 : vector<1x6x32xf32> to vector<6x32xf32>
    %cst = arith.constant dense<0.000000e+00> : vector<6x128xf32>
    %4 = tpu.matmul %3, %0, %cst {dimension_numbers = #tpu.dot_dimension_numbers<[1], [0], [0], [1], [0, 0, 1, 1], [], []>} : vector<6x32xf32>, vector<32x128xf32>, vector<6x128xf32> -> vector<6x128xf32>
    %5 = vector.broadcast %1 : vector<1x128xf32> to vector<6x128xf32>
    %6 = arith.addf %4, %5 : vector<6x128xf32>
    %c0_6 = arith.constant 0 : index
    %c0_7 = arith.constant 0 : index
    %c0_8 = arith.constant 0 : index
    %7 = vector.load %arg2[%c0_6, %c0_7, %c0_8] : memref<1x3x32xf32, #tpu.memory_space<vmem>>, vector<1x3x32xf32>
    %8 = vector.shape_cast %7 : vector<1x3x32xf32> to vector<3x32xf32>
    %cst_9 = arith.constant dense<0.000000e+00> : vector<3x128xf32>
    %9 = tpu.matmul %8, %0, %cst_9 {dimension_numbers = #tpu.dot_dimension_numbers<[1], [0], [0], [1], [0, 0, 1, 1], [], []>} : vector<3x32xf32>, vector<32x128xf32>, vector<3x128xf32> -> vector<3x128xf32>
    %10 = vector.broadcast %1 : vector<1x128xf32> to vector<3x128xf32>
    %11 = arith.addf %9, %10 : vector<3x128xf32>
    %12 = vector.extract_strided_slice %6 {offsets = [0, 0], sizes = [6, 32], strides = [1, 1]} : vector<6x128xf32> to vector<6x32xf32>
    %13 = vector.extract_strided_slice %11 {offsets = [0, 32], sizes = [3, 32], strides = [1, 1]} : vector<3x128xf32> to vector<3x32xf32>
    %14 = vector.extract_strided_slice %11 {offsets = [0, 64], sizes = [3, 32], strides = [1, 1]} : vector<3x128xf32> to vector<3x32xf32>
    %c0_10 = arith.constant 0 : index
    %c0_11 = arith.constant 0 : index
    %15 = vector.load %arg7[%c0_10, %c0_11] : memref<24x3xf32, #tpu.memory_space<vmem>>, vector<24x3xf32>
    %c0_12 = arith.constant 0 : index
    %c0_13 = arith.constant 0 : index
    %16 = vector.load %arg8[%c0_12, %c0_13] : memref<24x32xf32, #tpu.memory_space<vmem>>, vector<24x32xf32>
    %cst_14 = arith.constant dense<0.000000e+00> : vector<24x32xf32>
    %17 = tpu.matmul %15, %13, %cst_14 {dimension_numbers = #tpu.dot_dimension_numbers<[1], [0], [0], [1], [0, 0, 1, 1], [], []>} : vector<24x3xf32>, vector<3x32xf32>, vector<24x32xf32> -> vector<24x32xf32>
    %18 = arith.mulf %17, %16 : vector<24x32xf32>
    %cst_15 = arith.constant dense<0.000000e+00> : vector<24x32xf32>
    %19 = tpu.matmul %15, %14, %cst_15 {dimension_numbers = #tpu.dot_dimension_numbers<[1], [0], [0], [1], [0, 0, 1, 1], [], []>} : vector<24x3xf32>, vector<3x32xf32>, vector<24x32xf32> -> vector<24x32xf32>
    %20 = arith.mulf %19, %16 : vector<24x32xf32>
    %cst_16 = arith.constant dense<0.000000e+00> : vector<6x24xf32>
    %21 = tpu.matmul %12, %18, %cst_16 {dimension_numbers = #tpu.dot_dimension_numbers<[1], [1], [0], [0], [0, 0, 1, 0], [], []>} : vector<6x32xf32>, vector<24x32xf32>, vector<6x24xf32> -> vector<6x24xf32>
    %cst_17 = arith.constant 5.000000e-01 : f32
    %22 = vector.broadcast %cst_17 : f32 to vector<6x24xf32>
    %23 = arith.mulf %21, %22 : vector<6x24xf32>
    %cst_18 = arith.constant dense<0xFF800000> : vector<6xf32>
    %24 = vector.multi_reduction <maximumf>, %23, %cst_18 [1] : vector<6x24xf32> to vector<6xf32>
    %25 = vector.shape_cast %24 : vector<6xf32> to vector<6x1xf32>
    %26 = vector.broadcast %25 : vector<6x1xf32> to vector<6x24xf32>
    %27 = arith.subf %23, %26 : vector<6x24xf32>
    %28 = math.exp %27 : vector<6x24xf32>
    %c0_19 = arith.constant 0 : index
    %c0_20 = arith.constant 0 : index
    %29 = vector.load %arg9[%c0_19, %c0_20] : memref<24x8xf32, #tpu.memory_space<vmem>>, vector<24x8xf32>
    %cst_21 = arith.constant dense<0.000000e+00> : vector<6x8xf32>
    %30 = tpu.matmul %28, %29, %cst_21 {dimension_numbers = #tpu.dot_dimension_numbers<[1], [0], [0], [1], [0, 0, 1, 1], [], []>} : vector<6x24xf32>, vector<24x8xf32>, vector<6x8xf32> -> vector<6x8xf32>
    %cst_22 = arith.constant dense<0.000000e+00> : vector<6x24xf32>
    %31 = tpu.matmul %30, %29, %cst_22 {dimension_numbers = #tpu.dot_dimension_numbers<[1], [1], [0], [0], [0, 0, 1, 0], [], []>} : vector<6x8xf32>, vector<24x8xf32>, vector<6x24xf32> -> vector<6x24xf32>
    %cst_23 = arith.constant 9.99999968E-21 : f32
    %32 = vector.broadcast %cst_23 : f32 to vector<6x24xf32>
    %33 = arith.addf %31, %32 : vector<6x24xf32>
    %34 = tpu.reciprocal %33 {approx = true} : vector<6x24xf32> -> vector<6x24xf32>
    %35 = arith.mulf %28, %34 : vector<6x24xf32>
    %cst_24 = arith.constant dense<0.000000e+00> : vector<6x32xf32>
    %36 = tpu.matmul %35, %20, %cst_24 {dimension_numbers = #tpu.dot_dimension_numbers<[1], [0], [0], [1], [0, 0, 1, 1], [], []>} : vector<6x24xf32>, vector<24x32xf32>, vector<6x32xf32> -> vector<6x32xf32>
    %c0_25 = arith.constant 0 : index
    %c0_26 = arith.constant 0 : index
    %37 = vector.load %arg5[%c0_25, %c0_26] : memref<32x32xf32, #tpu.memory_space<vmem>>, vector<32x32xf32>
    %cst_27 = arith.constant dense<0.000000e+00> : vector<6x32xf32>
    %38 = tpu.matmul %36, %37, %cst_27 {dimension_numbers = #tpu.dot_dimension_numbers<[1], [0], [0], [1], [0, 0, 1, 1], [], []>} : vector<6x32xf32>, vector<32x32xf32>, vector<6x32xf32> -> vector<6x32xf32>
    %c0_28 = arith.constant 0 : index
    %c0_29 = arith.constant 0 : index
    %39 = vector.load %arg6[%c0_28, %c0_29] : memref<1x32xf32, #tpu.memory_space<vmem>>, vector<1x32xf32>
    %40 = vector.broadcast %39 : vector<1x32xf32> to vector<6x32xf32>
    %41 = arith.addf %38, %40 : vector<6x32xf32>
    %c0_30 = arith.constant 0 : index
    %c0_31 = arith.constant 0 : index
    %c0_32 = arith.constant 0 : index
    %42 = vector.load %arg10[%c0_30, %c0_31, %c0_32] : memref<1x6x32xf32, #tpu.memory_space<vmem>>, vector<1x6x32xf32>
    %43 = vector.shape_cast %42 : vector<1x6x32xf32> to vector<6x32xf32>
    %44 = vector.shape_cast %41 : vector<6x32xf32> to vector<1x6x32xf32>
    tpu.vector_store %arg10[%c0_30, %c0_31, %c0_32], %44 {strides = array<i32>} : memref<1x6x32xf32, #tpu.memory_space<vmem>>, vector<1x6x32xf32>,
    return
  }
  func.func @transform_0(%arg0: i32) -> (i32, i32, i32) {
    %c0_i32 = arith.constant 0 : i32
    %c0_i32_0 = arith.constant 0 : i32
    %c0_i32_1 = arith.constant 0 : i32
    return %arg0, %c0_i32, %c0_i32_0 : i32, i32, i32
  }
  func.func @transform_1(%arg0: i32) -> (i32, i32, i32) {
    %c0_i32 = arith.constant 0 : i32
    %c0_i32_0 = arith.constant 0 : i32
    %c0_i32_1 = arith.constant 0 : i32
    return %arg0, %c0_i32, %c0_i32_0 : i32, i32, i32
  }
  func.func @transform_2(%arg0: i32) -> (i32, i32) {
    %c0_i32 = arith.constant 0 : i32
    %c0_i32_0 = arith.constant 0 : i32
    %c0_i32_1 = arith.constant 0 : i32
    return %c0_i32, %c0_i32_0 : i32, i32
  }
  func.func @transform_3(%arg0: i32) -> (i32, i32) {
    %c0_i32 = arith.constant 0 : i32
    %c0_i32_0 = arith.constant 0 : i32
    %c0_i32_1 = arith.constant 0 : i32
    return %c0_i32, %c0_i32_0 : i32, i32
  }
  func.func @transform_4(%arg0: i32) -> (i32, i32) {
    %c0_i32 = arith.constant 0 : i32
    %c0_i32_0 = arith.constant 0 : i32
    %c0_i32_1 = arith.constant 0 : i32
    return %c0_i32, %c0_i32_0 : i32, i32
  }
  func.func @transform_5(%arg0: i32) -> (i32, i32) {
    %c0_i32 = arith.constant 0 : i32
    %c0_i32_0 = arith.constant 0 : i32
    %c0_i32_1 = arith.constant 0 : i32
    return %c0_i32, %c0_i32_0 : i32, i32
  }
  func.func @transform_6(%arg0: i32) -> (i32, i32) {
    %c0_i32 = arith.constant 0 : i32
    %c0_i32_0 = arith.constant 0 : i32
    %c0_i32_1 = arith.constant 0 : i32
    return %c0_i32, %c0_i32_0 : i32, i32
  }
  func.func @transform_7(%arg0: i32) -> (i32, i32) {
    %c0_i32 = arith.constant 0 : i32
    %c0_i32_0 = arith.constant 0 : i32
    %c0_i32_1 = arith.constant 0 : i32
    return %c0_i32, %c0_i32_0 : i32, i32
  }
  func.func @transform_8(%arg0: i32) -> (i32, i32) {
    %c0_i32 = arith.constant 0 : i32
    %c0_i32_0 = arith.constant 0 : i32
    %c0_i32_1 = arith.constant 0 : i32
    return %c0_i32, %c0_i32_0 : i32, i32
  }
  func.func @transform_9(%arg0: i32) -> (i32, i32, i32) {
    %c0_i32 = arith.constant 0 : i32
    %c0_i32_0 = arith.constant 0 : i32
    %c0_i32_1 = arith.constant 0 : i32
    return %arg0, %c0_i32, %c0_i32_0 : i32, i32, i32
  }
}

</mosaic_0001>

<llo_original>
// kernel: graph_pooling_hierarchy_forward.5
$region0: #{graph_pooling_hierarchy_forward.5}
  #allocation0 [shape = 'u32[]', space=smem, size = 0x4, offset = 0x4, fixed_abs, tag = 'smem constant byte address 0x4 - core index']
  #allocation1 [shape = 'u32[144,128]{1,0:T(1,128)}', space=vmem, size = 0x12000, scoped, tag = 'internal scratch']
  %s0 = inlined_call_operand.vmem [shape: f32[12,32], index: 0, kind: input, shape index: {}]
  %s1 = inlined_call_operand.vmem [shape: f32[32,64], index: 1, kind: input, shape index: {}]
  %s2 = inlined_call_operand.vmem [shape: f32[1,32], index: 2, kind: input, shape index: {}]
  %s3 = inlined_call_operand.vmem [shape: f32[12,32], index: 3, kind: output, shape index: {}]
  %s4 = sld [smem:[#allocation0]]
  $region22: #{graph_pooling_hierarchy_forward.5} parent=0
    _
  %s6 = ssub.s32 1, %s4
  %s7 = scalar_select 0, %s6, %s4
  // Predicated region
  $region2: #{graph_pooling_hierarchy_forward.5} parent=0 // pred_check
    _
  $region3: #{graph_pooling_hierarchy_forward.5} parent=0 // pred_check_branch
    %9 = sbr.rel (0) target = $region5
  $region4: #{graph_pooling_hierarchy_forward.5} parent=0 // pred_region
    _
  $region5: #{graph_pooling_hierarchy_forward.5} parent=0 // pred_fallthru
    _
  // Predicated region
  $region6: #{graph_pooling_hierarchy_forward.5} parent=0 // pred_check
    _
  $region7: #{graph_pooling_hierarchy_forward.5} parent=0 // pred_check_branch
    %11 = sbr.rel (0) target = $region9
  $region8: #{graph_pooling_hierarchy_forward.5} parent=0 // pred_region
    _
  $region9: #{graph_pooling_hierarchy_forward.5} parent=0 // pred_fallthru
    _
  // Predicated region
  $region10: #{graph_pooling_hierarchy_forward.5} parent=0 // pred_check
    _
  $region11: #{graph_pooling_hierarchy_forward.5} parent=0 // pred_check_branch
    %13 = sbr.rel (0) target = $region13
  $region12: #{graph_pooling_hierarchy_forward.5} parent=0 // pred_region
    _
  $region13: #{graph_pooling_hierarchy_forward.5} parent=0 // pred_fallthru
    _
  %v14 = vld [vmem:[%s0] sm:$0xff]
  %v15 = vld [vmem:[%s0 + $0x8] sm:$0xf]
  %v16 = vld [vmem:[%s1] sm:$0xff]
  %v17 = vld [vmem:[%s1 + $0x8] sm:$0xff]
  %v18 = vld [vmem:[%s1 + $0x10] sm:$0xff]
  %v19 = vld [vmem:[%s1 + $0x18] sm:$0xff]
  %vm20 = vcmask 261120
  %v22 = vsel %vm20, %v14, 0
  %v25 = vsel %vm20, %v15, 0
  %27 = vmatprep.subr.mxu0 0.0
  %28 = vmatpush1.msra.mxu0 0.0
  %29 = vmatprep.subr.mxu0 0.0
  %30 = vmatpush1.msra.mxu0 0.0
  %31 = vmatprep.subr.mxu0 0.0
  %32 = vmatpush1.msra.mxu0 0.0
  %33 = vmatprep.subr.mxu0 0.0
  %34 = vmatpush1.msra.mxu0 0.0
  %35 = vmatprep.subr.mxu0 0.0
  %36 = vmatpush1.msra.mxu0 0.0
  %37 = vmatprep.subr.mxu0 0.0
  %38 = vmatpush1.msra.mxu0 0.0
  %39 = vmatprep.subr.mxu0 0.0
  %40 = vmatpush1.msra.mxu0 0.0
  %41 = vmatprep.subr.mxu0 0.0
  %42 = vmatpush1.msra.mxu0 0.0
  %43 = vmatprep.subr.mxu0 0.0
  %44 = vmatpush1.msra.mxu0 0.0
  %45 = vmatprep.subr.mxu0 0.0
  %46 = vmatpush1.msra.mxu0 0.0
  %47 = vmatprep.subr.mxu0 0.0
  %48 = vmatpush1.msra.mxu0 0.0
  %49 = vmatprep.subr.mxu0 0.0
  %50 = vmatpush1.msra.mxu0 0.0
  %51 = vmatprep.subr.mxu0 0.0
  %52 = vmatpush1.msra.mxu0 %v19
  %53 = vmatprep.subr.mxu0 0.0
  %54 = vmatpush1.msra.mxu0 %v18
  %55 = vmatprep.subr.mxu0 0.0
  %56 = vmatpush1.msra.mxu0 %v17
  %57 = vmatprep.subr.mxu0 0.0
  %58 = vmatpush1.msra.mxu0 %v16
  %59 = vmatprep.subr.mxu0 0.0
  %60 = vmatpush2.msra.mxu0 0.0
  %61 = vmatprep.subr.mxu0 0.0
  %62 = vmatpush2.msra.mxu0 0.0
  %63 = vmatprep.subr.mxu0 0.0
  %64 = vmatpush2.msra.mxu0 0.0
  %65 = vmatprep.subr.mxu0 0.0
  %66 = vmatpush2.msra.mxu0 0.0
  %67 = vmatprep.subr.mxu0 0.0
  %68 = vmatpush2.msra.mxu0 0.0
  %69 = vmatprep.subr.mxu0 0.0
  %70 = vmatpush2.msra.mxu0 0.0
  %71 = vmatprep.subr.mxu0 0.0
  %72 = vmatpush2.msra.mxu0 0.0
  %73 = vmatprep.subr.mxu0 0.0
  %74 = vmatpush2.msra.mxu0 0.0
  %75 = vmatprep.subr.mxu0 0.0
  %76 = vmatpush2.msra.mxu0 0.0
  %77 = vmatprep.subr.mxu0 0.0
  %78 = vmatpush2.msra.mxu0 0.0
  %79 = vmatprep.subr.mxu0 0.0
  %80 = vmatpush2.msra.mxu0 0.0
  %81 = vmatprep.subr.mxu0 0.0
  %82 = vmatpush2.msra.mxu0 0.0
  %83 = vmatprep.subr.mxu0 0.0
  %84 = vmatpush2.msra.mxu0 0.0
  %85 = vmatprep.subr.mxu0 0.0
  %86 = vmatpush2.msra.mxu0 0.0
  %87 = vmatprep.subr.mxu0 0.0
  %88 = vmatpush2.msra.mxu0 0.0
  %89 = vmatprep.subr.mxu0 0.0
  %90 = vmatpush2.msra.mxu0 0.0
  %91 = vmatprep.mubr.f32.mxu0 0.0
  %92 = vmatmul.mubr.f32.gmra.mxu0 %v22
  %v93 = vpop.f32.mrf.mxu0
  %v94 = vadd.f32 0.0, %v93
  %v95 = vpop.f32.mrf.mxu0
  %96 = vmatprep.mubr.f32.mxu0 0.0
  %97 = vmatmul.mubr.f32.gmra.mxu0 %v25
  %v98 = vpop.f32.mrf.mxu0
  %v99 = vadd.f32 0.0, %v98
  %v100 = vpop.f32.mrf.mxu0
  %101 = vdwg.mxu0
  %v102 = vtanh.pop %v94
  %v103 = vtanh.pop %v99
  %106 = vrot.lane.b32.xlu0 %v94, 32
  %v107 = vpop.permute.xlu0 %106
  %108 = vrot.lane.b32.xlu0 %v99, 32
  %v109 = vpop.permute.xlu0 %108
  %v112 = vmul.f32 %v102, %v107
  %v113 = vmul.f32 %v103, %v109
  %v114 = vld [vmem:[%s2] sm:$0x1]
  %v116 = vlaneseq
  %v117 = vshrl.u32 %v116, 7
  %v118 = vsub.s32 0, %v117
  %v119 = vrot.slane %v114, %v118
  %120 = vrot.lane.b32.xlu0 %v119, 32
  %v121 = vpop.permute.xlu0 %120
  %v123 = vadd.f32 %v112, %v121
  %v124 = vadd.f32 %v113, %v121
  %127 = vrot.lane.b32.xlu0 %v123, 96
  %v128 = vpop.permute.xlu0 %127
  %129 = vrot.lane.b32.xlu0 %v124, 96
  %v130 = vpop.permute.xlu0 %129
  %133 = vst.msk [vmem:[%s3] sm:$0xff] %vm20, %v128
  %vm134 = vcmask 257024
  %135 = vst.msk [vmem:[%s3 + $0x8] sm:$0xf] %vm134, %v130
  // Predicated region
  $region14: #{graph_pooling_hierarchy_forward.5} parent=0 // pred_check
    _
  $region15: #{graph_pooling_hierarchy_forward.5} parent=0 // pred_check_branch
    %137 = sbr.rel (0) target = $region17
  $region16: #{graph_pooling_hierarchy_forward.5} parent=0 // pred_region
    _
  $region17: #{graph_pooling_hierarchy_forward.5} parent=0 // pred_fallthru
    _
  // Predicated region
  $region18: #{graph_pooling_hierarchy_forward.5} parent=0 // pred_check
    _
  $region19: #{graph_pooling_hierarchy_forward.5} parent=0 // pred_check_branch
    %139 = sbr.rel (0) target = $region21
  $region20: #{graph_pooling_hierarchy_forward.5} parent=0 // pred_region
    _
  $region21: #{graph_pooling_hierarchy_forward.5} parent=0 // pred_fallthru
    _

// kernel: graph_pooling_hierarchy_forward.6
$region0: #{graph_pooling_hierarchy_forward.6}
  #allocation0 [shape = 'u32[]', space=smem, size = 0x4, offset = 0x4, fixed_abs, tag = 'smem constant byte address 0x4 - core index']
  #allocation1 [shape = 'u32[144,128]{1,0:T(1,128)}', space=vmem, size = 0x12000, scoped, tag = 'internal scratch']
  %s0 = inlined_call_operand.vmem [shape: f32[6,32], index: 0, kind: input, shape index: {}]
  %s1 = inlined_call_operand.vmem [shape: f32[32,64], index: 1, kind: input, shape index: {}]
  %s2 = inlined_call_operand.vmem [shape: f32[1,32], index: 2, kind: input, shape index: {}]
  %s3 = inlined_call_operand.vmem [shape: f32[6,32], index: 3, kind: output, shape index: {}]
  %s4 = sld [smem:[#allocation0]]
  $region22: #{graph_pooling_hierarchy_forward.6} parent=0
    _
  %s6 = ssub.s32 1, %s4
  %s7 = scalar_select 0, %s6, %s4
  // Predicated region
  $region2: #{graph_pooling_hierarchy_forward.6} parent=0 // pred_check
    _
  $region3: #{graph_pooling_hierarchy_forward.6} parent=0 // pred_check_branch
    %9 = sbr.rel (0) target = $region5
  $region4: #{graph_pooling_hierarchy_forward.6} parent=0 // pred_region
    _
  $region5: #{graph_pooling_hierarchy_forward.6} parent=0 // pred_fallthru
    _
  // Predicated region
  $region6: #{graph_pooling_hierarchy_forward.6} parent=0 // pred_check
    _
  $region7: #{graph_pooling_hierarchy_forward.6} parent=0 // pred_check_branch
    %11 = sbr.rel (0) target = $region9
  $region8: #{graph_pooling_hierarchy_forward.6} parent=0 // pred_region
    _
  $region9: #{graph_pooling_hierarchy_forward.6} parent=0 // pred_fallthru
    _
  // Predicated region
  $region10: #{graph_pooling_hierarchy_forward.6} parent=0 // pred_check
    _
  $region11: #{graph_pooling_hierarchy_forward.6} parent=0 // pred_check_branch
    %13 = sbr.rel (0) target = $region13
  $region12: #{graph_pooling_hierarchy_forward.6} parent=0 // pred_region
    _
  $region13: #{graph_pooling_hierarchy_forward.6} parent=0 // pred_fallthru
    _
  %v14 = vld [vmem:[%s0] sm:$0x3f]
  %v15 = vld [vmem:[%s1] sm:$0xff]
  %v16 = vld [vmem:[%s1 + $0x8] sm:$0xff]
  %v17 = vld [vmem:[%s1 + $0x10] sm:$0xff]
  %v18 = vld [vmem:[%s1 + $0x18] sm:$0xff]
  %vm19 = vcmask 261120
  %v21 = vsel %vm19, %v14, 0
  %23 = vmatprep.subr.mxu0 0.0
  %24 = vmatpush1.msra.mxu0 0.0
  %25 = vmatprep.subr.mxu0 0.0
  %26 = vmatpush1.msra.mxu0 0.0
  %27 = vmatprep.subr.mxu0 0.0
  %28 = vmatpush1.msra.mxu0 0.0
  %29 = vmatprep.subr.mxu0 0.0
  %30 = vmatpush1.msra.mxu0 0.0
  %31 = vmatprep.subr.mxu0 0.0
  %32 = vmatpush1.msra.mxu0 0.0
  %33 = vmatprep.subr.mxu0 0.0
  %34 = vmatpush1.msra.mxu0 0.0
  %35 = vmatprep.subr.mxu0 0.0
  %36 = vmatpush1.msra.mxu0 0.0
  %37 = vmatprep.subr.mxu0 0.0
  %38 = vmatpush1.msra.mxu0 0.0
  %39 = vmatprep.subr.mxu0 0.0
  %40 = vmatpush1.msra.mxu0 0.0
  %41 = vmatprep.subr.mxu0 0.0
  %42 = vmatpush1.msra.mxu0 0.0
  %43 = vmatprep.subr.mxu0 0.0
  %44 = vmatpush1.msra.mxu0 0.0
  %45 = vmatprep.subr.mxu0 0.0
  %46 = vmatpush1.msra.mxu0 0.0
  %47 = vmatprep.subr.mxu0 0.0
  %48 = vmatpush1.msra.mxu0 %v18
  %49 = vmatprep.subr.mxu0 0.0
  %50 = vmatpush1.msra.mxu0 %v17
  %51 = vmatprep.subr.mxu0 0.0
  %52 = vmatpush1.msra.mxu0 %v16
  %53 = vmatprep.subr.mxu0 0.0
  %54 = vmatpush1.msra.mxu0 %v15
  %55 = vmatprep.subr.mxu0 0.0
  %56 = vmatpush2.msra.mxu0 0.0
  %57 = vmatprep.subr.mxu0 0.0
  %58 = vmatpush2.msra.mxu0 0.0
  %59 = vmatprep.subr.mxu0 0.0
  %60 = vmatpush2.msra.mxu0 0.0
  %61 = vmatprep.subr.mxu0 0.0
  %62 = vmatpush2.msra.mxu0 0.0
  %63 = vmatprep.subr.mxu0 0.0
  %64 = vmatpush2.msra.mxu0 0.0
  %65 = vmatprep.subr.mxu0 0.0
  %66 = vmatpush2.msra.mxu0 0.0
  %67 = vmatprep.subr.mxu0 0.0
  %68 = vmatpush2.msra.mxu0 0.0
  %69 = vmatprep.subr.mxu0 0.0
  %70 = vmatpush2.msra.mxu0 0.0
  %71 = vmatprep.subr.mxu0 0.0
  %72 = vmatpush2.msra.mxu0 0.0
  %73 = vmatprep.subr.mxu0 0.0
  %74 = vmatpush2.msra.mxu0 0.0
  %75 = vmatprep.subr.mxu0 0.0
  %76 = vmatpush2.msra.mxu0 0.0
  %77 = vmatprep.subr.mxu0 0.0
  %78 = vmatpush2.msra.mxu0 0.0
  %79 = vmatprep.subr.mxu0 0.0
  %80 = vmatpush2.msra.mxu0 0.0
  %81 = vmatprep.subr.mxu0 0.0
  %82 = vmatpush2.msra.mxu0 0.0
  %83 = vmatprep.subr.mxu0 0.0
  %84 = vmatpush2.msra.mxu0 0.0
  %85 = vmatprep.subr.mxu0 0.0
  %86 = vmatpush2.msra.mxu0 0.0
  %87 = vmatprep.mubr.f32.mxu0 0.0
  %88 = vmatmul.mubr.f32.gmra.mxu0 %v21
  %v89 = vpop.f32.mrf.mxu0
  %v90 = vadd.f32 0.0, %v89
  %v91 = vpop.f32.mrf.mxu0
  %92 = vdwg.mxu0
  %v93 = vtanh.pop %v90
  %95 = vrot.lane.b32.xlu0 %v90, 32
  %v96 = vpop.permute.xlu0 %95
  %v98 = vmul.f32 %v93, %v96
  %v99 = vld [vmem:[%s2] sm:$0x1]
  %v101 = vlaneseq
  %v102 = vshrl.u32 %v101, 7
  %v103 = vsub.s32 0, %v102
  %v104 = vrot.slane %v99, %v103
  %105 = vrot.lane.b32.xlu0 %v104, 32
  %v106 = vpop.permute.xlu0 %105
  %v108 = vadd.f32 %v98, %v106
  %110 = vrot.lane.b32.xlu0 %v108, 96
  %v111 = vpop.permute.xlu0 %110
  %vm113 = vcmask 259072
  %114 = vst.msk [vmem:[%s3] sm:$0x3f] %vm113, %v111
  // Predicated region
  $region14: #{graph_pooling_hierarchy_forward.6} parent=0 // pred_check
    _
  $region15: #{graph_pooling_hierarchy_forward.6} parent=0 // pred_check_branch
    %116 = sbr.rel (0) target = $region17
  $region16: #{graph_pooling_hierarchy_forward.6} parent=0 // pred_region
    _
  $region17: #{graph_pooling_hierarchy_forward.6} parent=0 // pred_fallthru
    _
  // Predicated region
  $region18: #{graph_pooling_hierarchy_forward.6} parent=0 // pred_check
    _
  $region19: #{graph_pooling_hierarchy_forward.6} parent=0 // pred_check_branch
    %118 = sbr.rel (0) target = $region21
  $region20: #{graph_pooling_hierarchy_forward.6} parent=0 // pred_region
    _
  $region21: #{graph_pooling_hierarchy_forward.6} parent=0 // pred_fallthru
    _

// kernel: graph_pooling_hierarchy_forward.8
$region0: #{graph_pooling_hierarchy_forward.8}
  #allocation0 [shape = 'u32[]', space=smem, size = 0x4, offset = 0x4, fixed_abs, tag = 'smem constant byte address 0x4 - core index']
  #allocation1 [shape = 'u32[144,128]{1,0:T(1,128)}', space=vmem, size = 0x12000, scoped, tag = 'internal scratch']
  %s0 = inlined_call_operand.vmem [shape: f32[2,32], index: 0, kind: input, shape index: {}]
  %s1 = inlined_call_operand.vmem [shape: f32[32,64], index: 1, kind: input, shape index: {}]
  %s2 = inlined_call_operand.vmem [shape: f32[1,32], index: 2, kind: input, shape index: {}]
  %s3 = inlined_call_operand.vmem [shape: f32[2,32], index: 3, kind: output, shape index: {}]
  %s4 = sld [smem:[#allocation0]]
  $region22: #{graph_pooling_hierarchy_forward.8} parent=0
    _
  %s6 = ssub.s32 1, %s4
  %s7 = scalar_select 0, %s6, %s4
  // Predicated region
  $region2: #{graph_pooling_hierarchy_forward.8} parent=0 // pred_check
    _
  $region3: #{graph_pooling_hierarchy_forward.8} parent=0 // pred_check_branch
    %9 = sbr.rel (0) target = $region5
  $region4: #{graph_pooling_hierarchy_forward.8} parent=0 // pred_region
    _
  $region5: #{graph_pooling_hierarchy_forward.8} parent=0 // pred_fallthru
    _
  // Predicated region
  $region6: #{graph_pooling_hierarchy_forward.8} parent=0 // pred_check
    _
  $region7: #{graph_pooling_hierarchy_forward.8} parent=0 // pred_check_branch
    %11 = sbr.rel (0) target = $region9
  $region8: #{graph_pooling_hierarchy_forward.8} parent=0 // pred_region
    _
  $region9: #{graph_pooling_hierarchy_forward.8} parent=0 // pred_fallthru
    _
  // Predicated region
  $region10: #{graph_pooling_hierarchy_forward.8} parent=0 // pred_check
    _
  $region11: #{graph_pooling_hierarchy_forward.8} parent=0 // pred_check_branch
    %13 = sbr.rel (0) target = $region13
  $region12: #{graph_pooling_hierarchy_forward.8} parent=0 // pred_region
    _
  $region13: #{graph_pooling_hierarchy_forward.8} parent=0 // pred_fallthru
    _
  %v14 = vld [vmem:[%s0] sm:$0x3]
  %v15 = vld [vmem:[%s1] sm:$0xff]
  %v16 = vld [vmem:[%s1 + $0x8] sm:$0xff]
  %v17 = vld [vmem:[%s1 + $0x10] sm:$0xff]
  %v18 = vld [vmem:[%s1 + $0x18] sm:$0xff]
  %vm19 = vcmask 261120
  %v21 = vsel %vm19, %v14, 0
  %23 = vmatprep.subr.mxu0 0.0
  %24 = vmatpush1.msra.mxu0 0.0
  %25 = vmatprep.subr.mxu0 0.0
  %26 = vmatpush1.msra.mxu0 0.0
  %27 = vmatprep.subr.mxu0 0.0
  %28 = vmatpush1.msra.mxu0 0.0
  %29 = vmatprep.subr.mxu0 0.0
  %30 = vmatpush1.msra.mxu0 0.0
  %31 = vmatprep.subr.mxu0 0.0
  %32 = vmatpush1.msra.mxu0 0.0
  %33 = vmatprep.subr.mxu0 0.0
  %34 = vmatpush1.msra.mxu0 0.0
  %35 = vmatprep.subr.mxu0 0.0
  %36 = vmatpush1.msra.mxu0 0.0
  %37 = vmatprep.subr.mxu0 0.0
  %38 = vmatpush1.msra.mxu0 0.0
  %39 = vmatprep.subr.mxu0 0.0
  %40 = vmatpush1.msra.mxu0 0.0
  %41 = vmatprep.subr.mxu0 0.0
  %42 = vmatpush1.msra.mxu0 0.0
  %43 = vmatprep.subr.mxu0 0.0
  %44 = vmatpush1.msra.mxu0 0.0
  %45 = vmatprep.subr.mxu0 0.0
  %46 = vmatpush1.msra.mxu0 0.0
  %47 = vmatprep.subr.mxu0 0.0
  %48 = vmatpush1.msra.mxu0 %v18
  %49 = vmatprep.subr.mxu0 0.0
  %50 = vmatpush1.msra.mxu0 %v17
  %51 = vmatprep.subr.mxu0 0.0
  %52 = vmatpush1.msra.mxu0 %v16
  %53 = vmatprep.subr.mxu0 0.0
  %54 = vmatpush1.msra.mxu0 %v15
  %55 = vmatprep.subr.mxu0 0.0
  %56 = vmatpush2.msra.mxu0 0.0
  %57 = vmatprep.subr.mxu0 0.0
  %58 = vmatpush2.msra.mxu0 0.0
  %59 = vmatprep.subr.mxu0 0.0
  %60 = vmatpush2.msra.mxu0 0.0
  %61 = vmatprep.subr.mxu0 0.0
  %62 = vmatpush2.msra.mxu0 0.0
  %63 = vmatprep.subr.mxu0 0.0
  %64 = vmatpush2.msra.mxu0 0.0
  %65 = vmatprep.subr.mxu0 0.0
  %66 = vmatpush2.msra.mxu0 0.0
  %67 = vmatprep.subr.mxu0 0.0
  %68 = vmatpush2.msra.mxu0 0.0
  %69 = vmatprep.subr.mxu0 0.0
  %70 = vmatpush2.msra.mxu0 0.0
  %71 = vmatprep.subr.mxu0 0.0
  %72 = vmatpush2.msra.mxu0 0.0
  %73 = vmatprep.subr.mxu0 0.0
  %74 = vmatpush2.msra.mxu0 0.0
  %75 = vmatprep.subr.mxu0 0.0
  %76 = vmatpush2.msra.mxu0 0.0
  %77 = vmatprep.subr.mxu0 0.0
  %78 = vmatpush2.msra.mxu0 0.0
  %79 = vmatprep.subr.mxu0 0.0
  %80 = vmatpush2.msra.mxu0 0.0
  %81 = vmatprep.subr.mxu0 0.0
  %82 = vmatpush2.msra.mxu0 0.0
  %83 = vmatprep.subr.mxu0 0.0
  %84 = vmatpush2.msra.mxu0 0.0
  %85 = vmatprep.subr.mxu0 0.0
  %86 = vmatpush2.msra.mxu0 0.0
  %87 = vmatprep.mubr.f32.mxu0 0.0
  %88 = vmatmul.mubr.f32.gmra.mxu0 %v21
  %v89 = vpop.f32.mrf.mxu0
  %v90 = vadd.f32 0.0, %v89
  %v91 = vpop.f32.mrf.mxu0
  %92 = vdwg.mxu0
  %v93 = vtanh.pop %v90
  %95 = vrot.lane.b32.xlu0 %v90, 32
  %v96 = vpop.permute.xlu0 %95
  %v98 = vmul.f32 %v93, %v96
  %v99 = vld [vmem:[%s2] sm:$0x1]
  %v101 = vlaneseq
  %v102 = vshrl.u32 %v101, 7
  %v103 = vsub.s32 0, %v102
  %v104 = vrot.slane %v99, %v103
  %105 = vrot.lane.b32.xlu0 %v104, 32
  %v106 = vpop.permute.xlu0 %105
  %v108 = vadd.f32 %v98, %v106
  %110 = vrot.lane.b32.xlu0 %v108, 96
  %v111 = vpop.permute.xlu0 %110
  %vm113 = vcmask 254976
  %114 = vst.msk [vmem:[%s3] sm:$0x3] %vm113, %v111
  // Predicated region
  $region14: #{graph_pooling_hierarchy_forward.8} parent=0 // pred_check
    _
  $region15: #{graph_pooling_hierarchy_forward.8} parent=0 // pred_check_branch
    %116 = sbr.rel (0) target = $region17
  $region16: #{graph_pooling_hierarchy_forward.8} parent=0 // pred_region
    _
  $region17: #{graph_pooling_hierarchy_forward.8} parent=0 // pred_fallthru
    _
  // Predicated region
  $region18: #{graph_pooling_hierarchy_forward.8} parent=0 // pred_check
    _
  $region19: #{graph_pooling_hierarchy_forward.8} parent=0 // pred_check_branch
    %118 = sbr.rel (0) target = $region21
  $region20: #{graph_pooling_hierarchy_forward.8} parent=0 // pred_region
    _
  $region21: #{graph_pooling_hierarchy_forward.8} parent=0 // pred_fallthru
    _

// kernel: graph_pooling_hierarchy_forward.9
$region0: #{graph_pooling_hierarchy_forward.9}
  #allocation0 [shape = 'u32[]', space=smem, size = 0x4, offset = 0x4, fixed_abs, tag = 'smem constant byte address 0x4 - core index']
  #allocation1 [shape = 'u32[144,128]{1,0:T(1,128)}', space=vmem, size = 0x12000, scoped, tag = 'internal scratch']
  %s0 = inlined_call_operand.vmem [shape: f32[2,3,32], index: 0, kind: input, shape index: {}]
  %s1 = inlined_call_operand.vmem [shape: f32[2,1,32], index: 1, kind: input, shape index: {}]
  %s2 = inlined_call_operand.vmem [shape: f32[32,128], index: 2, kind: input, shape index: {}]
  %s3 = inlined_call_operand.vmem [shape: f32[1,128], index: 3, kind: input, shape index: {}]
  %s4 = inlined_call_operand.vmem [shape: f32[32,32], index: 4, kind: input, shape index: {}]
  %s5 = inlined_call_operand.vmem [shape: f32[1,32], index: 5, kind: input, shape index: {}]
  %s6 = inlined_call_operand.vmem [shape: f32[8,1], index: 6, kind: input, shape index: {}]
  %s7 = inlined_call_operand.vmem [shape: f32[8,32], index: 7, kind: input, shape index: {}]
  %s8 = inlined_call_operand.vmem [shape: f32[8,8], index: 8, kind: input, shape index: {}]
  %s9 = inlined_call_operand.vmem [shape: f32[2,3,32], index: 9, kind: output, shape index: {}]
  %s10 = sld [smem:[#allocation0]]
  $region69: #{graph_pooling_hierarchy_forward.9} parent=0
    _
  %s12 = ssub.s32 1, %s10
  %s13 = scalar_select 0, %s12, %s10
  loop: start=0, step=1, limit=4
  $region2: #{graph_pooling_hierarchy_forward.9} parent=0 // loop_pre_header
    _
  $region3: #{graph_pooling_hierarchy_forward.9} parent=0 // loop_header
    %s15 = sphi 0, %s19
    %p16 = scmp.ge.s32.totalorder %s15, 4
    %s25 = sphi 0, %s27
    %s28 = sphi 0, %s25
    %s29 = sphi 0, %s28
    %s45 = sphi 0, %s29
    %s51 = sphi 0, %s53
    %s54 = sphi 0, %s51
    %s55 = sphi 0, %s54
    %s71 = sphi 0, %s55
    %s75 = sphi 0, %s75
    %s77 = sphi 0, %s75
    %s78 = sphi 0, %s77
    %s92 = sphi 0, %s78
    %s96 = sphi 0, %s96
    %s98 = sphi 0, %s96
    %s99 = sphi 0, %s98
    %s113 = sphi 0, %s99
    %s117 = sphi 0, %s117
    %s119 = sphi 0, %s117
    %s120 = sphi 0, %s119
    %s134 = sphi 0, %s120
    %s138 = sphi 0, %s138
    %s140 = sphi 0, %s138
    %s141 = sphi 0, %s140
    %s155 = sphi 0, %s141
    %s159 = sphi 0, %s159
    %s161 = sphi 0, %s159
    %s162 = sphi 0, %s161
    %s176 = sphi 0, %s162
    %s180 = sphi 0, %s180
    %s182 = sphi 0, %s180
    %s183 = sphi 0, %s182
    %s197 = sphi 0, %s183
    %s201 = sphi 0, %s201
    %s203 = sphi 0, %s201
    %s204 = sphi 0, %s203
    %s218 = sphi 0, %s204
    %s224 = sphi 0, %s226
    %s227 = sphi 0, %s224
    %s228 = sphi 0, %s227
    %s244 = sphi 0, %s228
  $region4: #{graph_pooling_hierarchy_forward.9} parent=0 // loop_header_branch
    %18 = sbr.rel (%p16) target = $region8
  $region5: #{graph_pooling_hierarchy_forward.9} parent=0 // loop_body
    %s20 = ssub.s32 %s15, 1
    %s21 = ssub.s32 %s15, 2
    %s22 = sadd.s32 %s15, 1
    %s23 = ssub.s32 %s15, %s22
    %p24 = scmp.eq.s32.totalorder %s23, 0
    %s26 = sadd.s32 %s25, 1
    %s27 = scalar_select %p24, %s25, %s26
    %p30 = pneg %p24
    %p31 = scmp.eq.s32.totalorder %s15, 1
    %p32 = por %p30, %p31
    %p33 = scmp.ne.s32.totalorder %s25, %s28
    %p34 = scmp.eq.s32.totalorder %s15, 0
    %p35 = por %p33, %p34
    %p36 = scmp.ne.s32.totalorder %s25, %s28
    %p37 = scmp.eq.s32.totalorder %s20, 1
    %p38 = por %p36, %p37
    %p39 = scmp.ne.s32.totalorder %s28, %s29
    %p40 = scmp.eq.s32.totalorder %s20, 0
    %p41 = por %p39, %p40
    %p42 = scmp.ne.s32.totalorder %s28, %s29
    %p43 = scmp.eq.s32.totalorder %s21, 1
    %p44 = por %p42, %p43
    %p46 = scmp.ne.s32.totalorder %s29, %s45
    %p47 = scmp.eq.s32.totalorder %s21, 0
    %p48 = por %p46, %p47
    %s49 = ssub.s32 %s15, %s22
    %p50 = scmp.eq.s32.totalorder %s49, 0
    %s52 = sadd.s32 %s51, 1
    %s53 = scalar_select %p50, %s51, %s52
    %p56 = pneg %p50
    %p57 = scmp.eq.s32.totalorder %s15, 1
    %p58 = por %p56, %p57
    %p59 = scmp.ne.s32.totalorder %s51, %s54
    %p60 = scmp.eq.s32.totalorder %s15, 0
    %p61 = por %p59, %p60
    %p62 = scmp.ne.s32.totalorder %s51, %s54
    %p63 = scmp.eq.s32.totalorder %s20, 1
    %p64 = por %p62, %p63
    %p65 = scmp.ne.s32.totalorder %s54, %s55
    %p66 = scmp.eq.s32.totalorder %s20, 0
    %p67 = por %p65, %p66
    %p68 = scmp.ne.s32.totalorder %s54, %s55
    %p69 = scmp.eq.s32.totalorder %s21, 1
    %p70 = por %p68, %p69
    %p72 = scmp.ne.s32.totalorder %s55, %s71
    %p73 = scmp.eq.s32.totalorder %s21, 0
    %p74 = por %p72, %p73
    %s76 = sadd.s32 %s75, 1
    %p79 = scmp.eq.s32.totalorder %s15, 1
    %p80 = scmp.ne.s32.totalorder %s75, %s77
    %p81 = scmp.eq.s32.totalorder %s15, 0
    %p82 = por %p80, %p81
    %p83 = scmp.ne.s32.totalorder %s75, %s77
    %p84 = scmp.eq.s32.totalorder %s20, 1
    %p85 = por %p83, %p84
    %p86 = scmp.ne.s32.totalorder %s77, %s78
    %p87 = scmp.eq.s32.totalorder %s20, 0
    %p88 = por %p86, %p87
    %p89 = scmp.ne.s32.totalorder %s77, %s78
    %p90 = scmp.eq.s32.totalorder %s21, 1
    %p91 = por %p89, %p90
    %p93 = scmp.ne.s32.totalorder %s78, %s92
    %p94 = scmp.eq.s32.totalorder %s21, 0
    %p95 = por %p93, %p94
    %s97 = sadd.s32 %s96, 1
    %p100 = scmp.eq.s32.totalorder %s15, 1
    %p101 = scmp.ne.s32.totalorder %s96, %s98
    %p102 = scmp.eq.s32.totalorder %s15, 0
    %p103 = por %p101, %p102
    %p104 = scmp.ne.s32.totalorder %s96, %s98
    %p105 = scmp.eq.s32.totalorder %s20, 1
    %p106 = por %p104, %p105
    %p107 = scmp.ne.s32.totalorder %s98, %s99
    %p108 = scmp.eq.s32.totalorder %s20, 0
    %p109 = por %p107, %p108
    %p110 = scmp.ne.s32.totalorder %s98, %s99
    %p111 = scmp.eq.s32.totalorder %s21, 1
    %p112 = por %p110, %p111
    %p114 = scmp.ne.s32.totalorder %s99, %s113
    %p115 = scmp.eq.s32.totalorder %s21, 0
    %p116 = por %p114, %p115
    %s118 = sadd.s32 %s117, 1
    %p121 = scmp.eq.s32.totalorder %s15, 1
    %p122 = scmp.ne.s32.totalorder %s117, %s119
    %p123 = scmp.eq.s32.totalorder %s15, 0
    %p124 = por %p122, %p123
    %p125 = scmp.ne.s32.totalorder %s117, %s119
    %p126 = scmp.eq.s32.totalorder %s20, 1
    %p127 = por %p125, %p126
    %p128 = scmp.ne.s32.totalorder %s119, %s120
    %p129 = scmp.eq.s32.totalorder %s20, 0
    %p130 = por %p128, %p129
    %p131 = scmp.ne.s32.totalorder %s119, %s120
    %p132 = scmp.eq.s32.totalorder %s21, 1
    %p133 = por %p131, %p132
    %p135 = scmp.ne.s32.totalorder %s120, %s134
    %p136 = scmp.eq.s32.totalorder %s21, 0
    %p137 = por %p135, %p136
    %s139 = sadd.s32 %s138, 1
    %p142 = scmp.eq.s32.totalorder %s15, 1
    %p143 = scmp.ne.s32.totalorder %s138, %s140
    %p144 = scmp.eq.s32.totalorder %s15, 0
    %p145 = por %p143, %p144
    %p146 = scmp.ne.s32.totalorder %s138, %s140
    %p147 = scmp.eq.s32.totalorder %s20, 1
    %p148 = por %p146, %p147
    %p149 = scmp.ne.s32.totalorder %s140, %s141
    %p150 = scmp.eq.s32.totalorder %s20, 0
    %p151 = por %p149, %p150
    %p152 = scmp.ne.s32.totalorder %s140, %s141
    %p153 = scmp.eq.s32.totalorder %s21, 1
    %p154 = por %p152, %p153
    %p156 = scmp.ne.s32.totalorder %s141, %s155
    %p157 = scmp.eq.s32.totalorder %s21, 0
    %p158 = por %p156, %p157
    %s160 = sadd.s32 %s159, 1
    %p163 = scmp.eq.s32.totalorder %s15, 1
    %p164 = scmp.ne.s32.totalorder %s159, %s161
    %p165 = scmp.eq.s32.totalorder %s15, 0
    %p166 = por %p164, %p165
    %p167 = scmp.ne.s32.totalorder %s159, %s161
    %p168 = scmp.eq.s32.totalorder %s20, 1
    %p169 = por %p167, %p168
    %p170 = scmp.ne.s32.totalorder %s161, %s162
    %p171 = scmp.eq.s32.totalorder %s20, 0
    %p172 = por %p170, %p171
    %p173 = scmp.ne.s32.totalorder %s161, %s162
    %p174 = scmp.eq.s32.totalorder %s21, 1
    %p175 = por %p173, %p174
    %p177 = scmp.ne.s32.totalorder %s162, %s176
    %p178 = scmp.eq.s32.totalorder %s21, 0
    %p179 = por %p177, %p178
    %s181 = sadd.s32 %s180, 1
    %p184 = scmp.eq.s32.totalorder %s15, 1
    %p185 = scmp.ne.s32.totalorder %s180, %s182
    %p186 = scmp.eq.s32.totalorder %s15, 0
    %p187 = por %p185, %p186
    %p188 = scmp.ne.s32.totalorder %s180, %s182
    %p189 = scmp.eq.s32.totalorder %s20, 1
    %p190 = por %p188, %p189
    %p191 = scmp.ne.s32.totalorder %s182, %s183
    %p192 = scmp.eq.s32.totalorder %s20, 0
    %p193 = por %p191, %p192
    %p194 = scmp.ne.s32.totalorder %s182, %s183
    %p195 = scmp.eq.s32.totalorder %s21, 1
    %p196 = por %p194, %p195
    %p198 = scmp.ne.s32.totalorder %s183, %s197
    %p199 = scmp.eq.s32.totalorder %s21, 0
    %p200 = por %p198, %p199
    %s202 = sadd.s32 %s201, 1
    %p205 = scmp.eq.s32.totalorder %s15, 1
    %p206 = scmp.ne.s32.totalorder %s201, %s203
    %p207 = scmp.eq.s32.totalorder %s15, 0
    %p208 = por %p206, %p207
    %p209 = scmp.ne.s32.totalorder %s201, %s203
    %p210 = scmp.eq.s32.totalorder %s20, 1
    %p211 = por %p209, %p210
    %p212 = scmp.ne.s32.totalorder %s203, %s204
    %p213 = scmp.eq.s32.totalorder %s20, 0
    %p214 = por %p212, %p213
    %p215 = scmp.ne.s32.totalorder %s203, %s204
    %p216 = scmp.eq.s32.totalorder %s21, 1
    %p217 = por %p215, %p216
    %p219 = scmp.ne.s32.totalorder %s204, %s218
    %p220 = scmp.eq.s32.totalorder %s21, 0
    %p221 = por %p219, %p220
    %s222 = ssub.s32 %s15, %s22
    %p223 = scmp.eq.s32.totalorder %s222, 0
    %s225 = sadd.s32 %s224, 1
    %s226 = scalar_select %p223, %s224, %s225
    %p229 = pneg %p223
    %p230 = scmp.eq.s32.totalorder %s15, 1
    %p231 = por %p229, %p230
    %p232 = scmp.ne.s32.totalorder %s224, %s227
    %p233 = scmp.eq.s32.totalorder %s15, 0
    %p234 = por %p232, %p233
    %p235 = scmp.ne.s32.totalorder %s224, %s227
    %p236 = scmp.eq.s32.totalorder %s20, 1
    %p237 = por %p235, %p236
    %p238 = scmp.ne.s32.totalorder %s227, %s228
    %p239 = scmp.eq.s32.totalorder %s20, 0
    %p240 = por %p238, %p239
    %p241 = scmp.ne.s32.totalorder %s227, %s228
    %p242 = scmp.eq.s32.totalorder %s21, 1
    %p243 = por %p241, %p242
    %p245 = scmp.ne.s32.totalorder %s228, %s244
    %p246 = scmp.eq.s32.totalorder %s21, 0
    %p247 = por %p245, %p246
    %p248 = scmp.le.s32.totalorder 1, %s15
    %p249 = scmp.lt.s32.totalorder %s15, 3
    %p250 = pnand %p248, %p249
    %p251 = pneg %p250
    // Predicated region
    $region9: #{graph_pooling_hierarchy_forward.9} parent=5 // pred_check
      _
    $region10: #{graph_pooling_hierarchy_forward.9} parent=5 // pred_check_branch
      %253 = sbr.rel (%p250) target = $region12
    $region11: #{graph_pooling_hierarchy_forward.9} parent=5 // pred_region
      %s254 = ssub.s32 %s15, 1
      // Predicated region
      $region13: #{graph_pooling_hierarchy_forward.9} parent=11 // pred_check
        %p255 = pneg %p88
      $region14: #{graph_pooling_hierarchy_forward.9} parent=11 // pred_check_branch
        %257 = sbr.rel (%p255) target = $region16
      $region15: #{graph_pooling_hierarchy_forward.9} parent=11 // pred_region
        _
      $region16: #{graph_pooling_hierarchy_forward.9} parent=11 // pred_fallthru
        _
      // Predicated region
      $region17: #{graph_pooling_hierarchy_forward.9} parent=11 // pred_check
        %p258 = pneg %p109
      $region18: #{graph_pooling_hierarchy_forward.9} parent=11 // pred_check_branch
        %260 = sbr.rel (%p258) target = $region20
      $region19: #{graph_pooling_hierarchy_forward.9} parent=11 // pred_region
        _
      $region20: #{graph_pooling_hierarchy_forward.9} parent=11 // pred_fallthru
        _
      // Predicated region
      $region21: #{graph_pooling_hierarchy_forward.9} parent=11 // pred_check
        %p261 = pneg %p130
      $region22: #{graph_pooling_hierarchy_forward.9} parent=11 // pred_check_branch
        %263 = sbr.rel (%p261) target = $region24
      $region23: #{graph_pooling_hierarchy_forward.9} parent=11 // pred_region
        _
      $region24: #{graph_pooling_hierarchy_forward.9} parent=11 // pred_fallthru
        _
      // Predicated region
      $region25: #{graph_pooling_hierarchy_forward.9} parent=11 // pred_check
        %p264 = pneg %p151
      $region26: #{graph_pooling_hierarchy_forward.9} parent=11 // pred_check_branch
        %266 = sbr.rel (%p264) target = $region28
      $region27: #{graph_pooling_hierarchy_forward.9} parent=11 // pred_region
        _
      $region28: #{graph_pooling_hierarchy_forward.9} parent=11 // pred_fallthru
        _
      // Predicated region
      $region29: #{graph_pooling_hierarchy_forward.9} parent=11 // pred_check
        %p267 = pneg %p172
      $region30: #{graph_pooling_hierarchy_forward.9} parent=11 // pred_check_branch
        %269 = sbr.rel (%p267) target = $region32
      $region31: #{graph_pooling_hierarchy_forward.9} parent=11 // pred_region
        _
      $region32: #{graph_pooling_hierarchy_forward.9} parent=11 // pred_fallthru
        _
      // Predicated region
      $region33: #{graph_pooling_hierarchy_forward.9} parent=11 // pred_check
        %p270 = pneg %p193
      $region34: #{graph_pooling_hierarchy_forward.9} parent=11 // pred_check_branch
        %272 = sbr.rel (%p270) target = $region36
      $region35: #{graph_pooling_hierarchy_forward.9} parent=11 // pred_region
        _
      $region36: #{graph_pooling_hierarchy_forward.9} parent=11 // pred_fallthru
        _
      // Predicated region
      $region37: #{graph_pooling_hierarchy_forward.9} parent=11 // pred_check
        %p273 = pneg %p214
      $region38: #{graph_pooling_hierarchy_forward.9} parent=11 // pred_check_branch
        %275 = sbr.rel (%p273) target = $region40
      $region39: #{graph_pooling_hierarchy_forward.9} parent=11 // pred_region
        _
      $region40: #{graph_pooling_hierarchy_forward.9} parent=11 // pred_fallthru
        _
    $region12: #{graph_pooling_hierarchy_forward.9} parent=5 // pred_fallthru
      _
    %p276 = scmp.lt.s32.totalorder %s15, 2
    // Predicated region
    $region41: #{graph_pooling_hierarchy_forward.9} parent=5 // pred_check
      %p277 = pneg %p276
    $region42: #{graph_pooling_hierarchy_forward.9} parent=5 // pred_check_branch
      %279 = sbr.rel (%p277) target = $region44
    $region43: #{graph_pooling_hierarchy_forward.9} parent=5 // pred_region
      // Predicated region
      $region45: #{graph_pooling_hierarchy_forward.9} parent=43 // pred_check
        %p280 = pneg %p35
      $region46: #{graph_pooling_hierarchy_forward.9} parent=43 // pred_check_branch
        %282 = sbr.rel (%p280) target = $region48
      $region47: #{graph_pooling_hierarchy_forward.9} parent=43 // pred_region
        %p283 = scmp.lt.s32.totalorder %s15, 1
        %s284 = scalar_select %p283, %s15, 1
        %s285 = smul.addr %s284, 4
        %s286 = scalar_lea.vmem %s0, %s285
      $region48: #{graph_pooling_hierarchy_forward.9} parent=43 // pred_fallthru
        _
      // Predicated region
      $region49: #{graph_pooling_hierarchy_forward.9} parent=43 // pred_check
        %p287 = pneg %p61
      $region50: #{graph_pooling_hierarchy_forward.9} parent=43 // pred_check_branch
        %289 = sbr.rel (%p287) target = $region52
      $region51: #{graph_pooling_hierarchy_forward.9} parent=43 // pred_region
        %p290 = scmp.lt.s32.totalorder %s15, 1
        %s291 = scalar_select %p290, %s15, 1
        %s292 = scalar_lea.vmem %s1, %s291
      $region52: #{graph_pooling_hierarchy_forward.9} parent=43 // pred_fallthru
        _
    $region44: #{graph_pooling_hierarchy_forward.9} parent=5 // pred_fallthru
      _
    %p293 = scmp.le.s32.totalorder 1, %s15
    %p294 = scmp.lt.s32.totalorder %s15, 3
    %p295 = pnand %p293, %p294
    %p296 = pneg %p295
    // Predicated region
    $region53: #{graph_pooling_hierarchy_forward.9} parent=5 // pred_check
      _
    $region54: #{graph_pooling_hierarchy_forward.9} parent=5 // pred_check_branch
      %298 = sbr.rel (%p295) target = $region56
    $region55: #{graph_pooling_hierarchy_forward.9} parent=5 // pred_region
      %s299 = ssub.s32 %s15, 1
      %p300 = scmp.lt.s32.totalorder %s20, 1
      %s301 = scalar_select %p300, %s20, 1
      %s302 = smul.addr %s301, 4
      %s303 = scalar_lea.vmem %s0, %s302
      %p304 = pneg %p41
      %p305 = pneg %p38
      %p306 = scmp.lt.s32.totalorder %s20, 1
      %s307 = scalar_select %p306, %s20, 1
      %s308 = scalar_lea.vmem %s1, %s307
      %p309 = pneg %p67
      %p310 = pneg %p64
      %p311 = pneg %p88
      %p312 = pneg %p85
      %p313 = pneg %p109
      %p314 = pneg %p106
      %p315 = pneg %p130
      %p316 = pneg %p127
      %p317 = pneg %p151
      %p318 = pneg %p148
      %p319 = pneg %p172
      %p320 = pneg %p169
      %p321 = pneg %p193
      %p322 = pneg %p190
      %p323 = pneg %p214
      %p324 = pneg %p211
      %p325 = pneg %p240
      %p326 = pneg %p237
      %p327 = scmp.lt.s32.totalorder %s20, 1
      %s328 = scalar_select %p327, %s20, 1
      %s329 = smul.addr %s328, 4
      %s330 = scalar_lea.vmem %s9, %s329
      %p331 = scmp.lt.s32.totalorder %s20, 1
      %s332 = scalar_select %p331, %s20, 1
      %s333 = smul.addr %s332, 4
      %s334 = scalar_lea.vmem %s0, %s333
      %p335 = scmp.lt.s32.totalorder %s20, 1
      %s336 = scalar_select %p335, %s20, 1
      %s337 = scalar_lea.vmem %s1, %s336
      %p338 = scmp.lt.s32.totalorder %s20, 1
      %s339 = scalar_select %p338, %s20, 1
      %s340 = smul.addr %s339, 4
      %s341 = scalar_lea.vmem %s9, %s340
      %v342 = vld [vmem:[%s2] sm:$0xff]
      %v343 = vld [vmem:[%s2 + $0x8] sm:$0xff]
      %v344 = vld [vmem:[%s2 + $0x10] sm:$0xff]
      %v345 = vld [vmem:[%s2 + $0x18] sm:$0xff]
      %v346 = vld [vmem:[%s3] sm:$0x1]
      %v347 = vld [vmem:[%s334] sm:$0x7]
      %v349 = vlaneseq
      %v350 = vshrl.u32 %v349, 7
      %v351 = vsub.s32 0, %v350
      %v352 = vrot.slane %v346, %v351
      %vm354 = vcmask 261120
      %v356 = vsel %vm354, %v347, 0
      %358 = vmatprep.subr.mxu0 0.0
      %359 = vmatpush1.msra.mxu0 0.0
      %360 = vmatprep.subr.mxu0 0.0
      %361 = vmatpush1.msra.mxu0 0.0
      %362 = vmatprep.subr.mxu0 0.0
      %363 = vmatpush1.msra.mxu0 0.0
      %364 = vmatprep.subr.mxu0 0.0
      %365 = vmatpush1.msra.mxu0 0.0
      %366 = vmatprep.subr.mxu0 0.0
      %367 = vmatpush1.msra.mxu0 0.0
      %368 = vmatprep.subr.mxu0 0.0
      %369 = vmatpush1.msra.mxu0 0.0
      %370 = vmatprep.subr.mxu0 0.0
      %371 = vmatpush1.msra.mxu0 0.0
      %372 = vmatprep.subr.mxu0 0.0
      %373 = vmatpush1.msra.mxu0 0.0
      %374 = vmatprep.subr.mxu0 0.0
      %375 = vmatpush1.msra.mxu0 0.0
      %376 = vmatprep.subr.mxu0 0.0
      %377 = vmatpush1.msra.mxu0 0.0
      %378 = vmatprep.subr.mxu0 0.0
      %379 = vmatpush1.msra.mxu0 0.0
      %380 = vmatprep.subr.mxu0 0.0
      %381 = vmatpush1.msra.mxu0 0.0
      %382 = vmatprep.subr.mxu0 0.0
      %383 = vmatpush1.msra.mxu0 %v345
      %384 = vmatprep.subr.mxu0 0.0
      %385 = vmatpush1.msra.mxu0 %v344
      %386 = vmatprep.subr.mxu0 0.0
      %387 = vmatpush1.msra.mxu0 %v343
      %388 = vmatprep.subr.mxu0 0.0
      %389 = vmatpush1.msra.mxu0 %v342
      %390 = vmatprep.subr.mxu0 0.0
      %391 = vmatpush2.msra.mxu0 0.0
      %392 = vmatprep.subr.mxu0 0.0
      %393 = vmatpush2.msra.mxu0 0.0
      %394 = vmatprep.subr.mxu0 0.0
      %395 = vmatpush2.msra.mxu0 0.0
      %396 = vmatprep.subr.mxu0 0.0
      %397 = vmatpush2.msra.mxu0 0.0
      %398 = vmatprep.subr.mxu0 0.0
      %399 = vmatpush2.msra.mxu0 0.0
      %400 = vmatprep.subr.mxu0 0.0
      %401 = vmatpush2.msra.mxu0 0.0
      %402 = vmatprep.subr.mxu0 0.0
      %403 = vmatpush2.msra.mxu0 0.0
      %404 = vmatprep.subr.mxu0 0.0
      %405 = vmatpush2.msra.mxu0 0.0
      %406 = vmatprep.subr.mxu0 0.0
      %407 = vmatpush2.msra.mxu0 0.0
      %408 = vmatprep.subr.mxu0 0.0
      %409 = vmatpush2.msra.mxu0 0.0
      %410 = vmatprep.subr.mxu0 0.0
      %411 = vmatpush2.msra.mxu0 0.0
      %412 = vmatprep.subr.mxu0 0.0
      %413 = vmatpush2.msra.mxu0 0.0
      %414 = vmatprep.subr.mxu0 0.0
      %415 = vmatpush2.msra.mxu0 0.0
      %416 = vmatprep.subr.mxu0 0.0
      %417 = vmatpush2.msra.mxu0 0.0
      %418 = vmatprep.subr.mxu0 0.0
      %419 = vmatpush2.msra.mxu0 0.0
      %420 = vmatprep.subr.mxu0 0.0
      %421 = vmatpush2.msra.mxu0 0.0
      %422 = vmatprep.mubr.f32.mxu0 0.0
      %423 = vmatmul.mubr.f32.gmra.mxu0 %v356
      %v424 = vpop.f32.mrf.mxu0
      %v425 = vadd.f32 %v352, %v424
      %v426 = vpop.f32.mrf.mxu0
      %427 = vdwg.mxu0
      %v428 = vld [vmem:[%s337] sm:$0x1]
      %v430 = vsel %vm354, %v428, 0
      %432 = vmatprep.subr.mxu0 0.0
      %433 = vmatpush1.msra.mxu0 0.0
      %434 = vmatprep.subr.mxu0 0.0
      %435 = vmatpush1.msra.mxu0 0.0
      %436 = vmatprep.subr.mxu0 0.0
      %437 = vmatpush1.msra.mxu0 0.0
      %438 = vmatprep.subr.mxu0 0.0
      %439 = vmatpush1.msra.mxu0 0.0
      %440 = vmatprep.subr.mxu0 0.0
      %441 = vmatpush1.msra.mxu0 0.0
      %442 = vmatprep.subr.mxu0 0.0
      %443 = vmatpush1.msra.mxu0 0.0
      %444 = vmatprep.subr.mxu0 0.0
      %445 = vmatpush1.msra.mxu0 0.0
      %446 = vmatprep.subr.mxu0 0.0
      %447 = vmatpush1.msra.mxu0 0.0
      %448 = vmatprep.subr.mxu0 0.0
      %449 = vmatpush1.msra.mxu0 0.0
      %450 = vmatprep.subr.mxu0 0.0
      %451 = vmatpush1.msra.mxu0 0.0
      %452 = vmatprep.subr.mxu0 0.0
      %453 = vmatpush1.msra.mxu0 0.0
      %454 = vmatprep.subr.mxu0 0.0
      %455 = vmatpush1.msra.mxu0 0.0
      %456 = vmatprep.subr.mxu0 0.0
      %457 = vmatpush1.msra.mxu0 %v345
      %458 = vmatprep.subr.mxu0 0.0
      %459 = vmatpush1.msra.mxu0 %v344
      %460 = vmatprep.subr.mxu0 0.0
      %461 = vmatpush1.msra.mxu0 %v343
      %462 = vmatprep.subr.mxu0 0.0
      %463 = vmatpush1.msra.mxu0 %v342
      %464 = vmatprep.subr.mxu0 0.0
      %465 = vmatpush2.msra.mxu0 0.0
      %466 = vmatprep.subr.mxu0 0.0
      %467 = vmatpush2.msra.mxu0 0.0
      %468 = vmatprep.subr.mxu0 0.0
      %469 = vmatpush2.msra.mxu0 0.0
      %470 = vmatprep.subr.mxu0 0.0
      %471 = vmatpush2.msra.mxu0 0.0
      %472 = vmatprep.subr.mxu0 0.0
      %473 = vmatpush2.msra.mxu0 0.0
      %474 = vmatprep.subr.mxu0 0.0
      %475 = vmatpush2.msra.mxu0 0.0
      %476 = vmatprep.subr.mxu0 0.0
      %477 = vmatpush2.msra.mxu0 0.0
      %478 = vmatprep.subr.mxu0 0.0
      %479 = vmatpush2.msra.mxu0 0.0
      %480 = vmatprep.subr.mxu0 0.0
      %481 = vmatpush2.msra.mxu0 0.0
      %482 = vmatprep.subr.mxu0 0.0
      %483 = vmatpush2.msra.mxu0 0.0
      %484 = vmatprep.subr.mxu0 0.0
      %485 = vmatpush2.msra.mxu0 0.0
      %486 = vmatprep.subr.mxu0 0.0
      %487 = vmatpush2.msra.mxu0 0.0
      %488 = vmatprep.subr.mxu0 0.0
      %489 = vmatpush2.msra.mxu0 0.0
      %490 = vmatprep.subr.mxu0 0.0
      %491 = vmatpush2.msra.mxu0 0.0
      %492 = vmatprep.subr.mxu0 0.0
      %493 = vmatpush2.msra.mxu0 0.0
      %494 = vmatprep.subr.mxu0 0.0
      %495 = vmatpush2.msra.mxu0 0.0
      %496 = vmatprep.mubr.f32.mxu0 0.0
      %497 = vmatmul.mubr.f32.gmra.mxu0 %v430
      %v498 = vpop.f32.mrf.mxu0
      %v499 = vadd.f32 %v346, %v498
      %v500 = vpop.f32.mrf.mxu0
      %501 = vdwg.mxu0
      %v502 = vld [vmem:[%s6] sm:$0xff]
      %v503 = vld [vmem:[%s7] sm:$0xff]
      %505 = vrot.lane.b32.xlu0 %v499, 96
      %v506 = vpop.permute.xlu0 %505
      %vm507 = vcmask 7168
      %v509 = vsel %vm507, %v502, 0
      %vm511 = vcmask 1040384
      %v512 = vsel %vm511, %v506, 0
      %514 = vmatprep.subr.mxu0 0.0
      %515 = vmatpush1.msra.mxu0 0.0
      %516 = vmatprep.subr.mxu0 0.0
      %517 = vmatpush1.msra.mxu0 0.0
      %518 = vmatprep.subr.mxu0 0.0
      %519 = vmatpush1.msra.mxu0 0.0
      %520 = vmatprep.subr.mxu0 0.0
      %521 = vmatpush1.msra.mxu0 0.0
      %522 = vmatprep.subr.mxu0 0.0
      %523 = vmatpush1.msra.mxu0 0.0
      %524 = vmatprep.subr.mxu0 0.0
      %525 = vmatpush1.msra.mxu0 0.0
      %526 = vmatprep.subr.mxu0 0.0
      %527 = vmatpush1.msra.mxu0 0.0
      %528 = vmatprep.subr.mxu0 0.0
      %529 = vmatpush1.msra.mxu0 0.0
      %530 = vmatprep.subr.mxu0 0.0
      %531 = vmatpush1.msra.mxu0 0.0
      %532 = vmatprep.subr.mxu0 0.0
      %533 = vmatpush1.msra.mxu0 0.0
      %534 = vmatprep.subr.mxu0 0.0
      %535 = vmatpush1.msra.mxu0 0.0
      %536 = vmatprep.subr.mxu0 0.0
      %537 = vmatpush1.msra.mxu0 0.0
      %538 = vmatprep.subr.mxu0 0.0
      %539 = vmatpush1.msra.mxu0 0.0
      %540 = vmatprep.subr.mxu0 0.0
      %541 = vmatpush1.msra.mxu0 0.0
      %542 = vmatprep.subr.mxu0 0.0
      %543 = vmatpush1.msra.mxu0 0.0
      %544 = vmatprep.subr.mxu0 0.0
      %545 = vmatpush1.msra.mxu0 %v512
      %546 = vmatprep.subr.mxu0 0.0
      %547 = vmatpush2.msra.mxu0 0.0
      %548 = vmatprep.subr.mxu0 0.0
      %549 = vmatpush2.msra.mxu0 0.0
      %550 = vmatprep.subr.mxu0 0.0
      %551 = vmatpush2.msra.mxu0 0.0
      %552 = vmatprep.subr.mxu0 0.0
      %553 = vmatpush2.msra.mxu0 0.0
      %554 = vmatprep.subr.mxu0 0.0
      %555 = vmatpush2.msra.mxu0 0.0
      %556 = vmatprep.subr.mxu0 0.0
      %557 = vmatpush2.msra.mxu0 0.0
      %558 = vmatprep.subr.mxu0 0.0
      %559 = vmatpush2.msra.mxu0 0.0
      %560 = vmatprep.subr.mxu0 0.0
      %561 = vmatpush2.msra.mxu0 0.0
      %562 = vmatprep.subr.mxu0 0.0
      %563 = vmatpush2.msra.mxu0 0.0
      %564 = vmatprep.subr.mxu0 0.0
      %565 = vmatpush2.msra.mxu0 0.0
      %566 = vmatprep.subr.mxu0 0.0
      %567 = vmatpush2.msra.mxu0 0.0
      %568 = vmatprep.subr.mxu0 0.0
      %569 = vmatpush2.msra.mxu0 0.0
      %570 = vmatprep.subr.mxu0 0.0
      %571 = vmatpush2.msra.mxu0 0.0
      %572 = vmatprep.subr.mxu0 0.0
      %573 = vmatpush2.msra.mxu0 0.0
      %574 = vmatprep.subr.mxu0 0.0
      %575 = vmatpush2.msra.mxu0 0.0
      %576 = vmatprep.subr.mxu0 0.0
      %577 = vmatpush2.msra.mxu0 0.0
      %578 = vmatprep.mubr.f32.mxu0 0.0
      %579 = vmatmul.mubr.f32.gmra.mxu0 %v509
      %v580 = vpop.f32.mrf.mxu0
      %v581 = vadd.f32 0.0, %v580
      %v582 = vpop.f32.mrf.mxu0
      %583 = vdwg.mxu0
      %v584 = vmul.f32 %v581, %v503
      %585 = vrot.lane.b32.xlu0 %v499, 64
      %v586 = vpop.permute.xlu0 %585
      %v587 = vsel %vm511, %v586, 0
      %589 = vmatprep.subr.mxu0 0.0
      %590 = vmatpush1.msra.mxu0 0.0
      %591 = vmatprep.subr.mxu0 0.0
      %592 = vmatpush1.msra.mxu0 0.0
      %593 = vmatprep.subr.mxu0 0.0
      %594 = vmatpush1.msra.mxu0 0.0
      %595 = vmatprep.subr.mxu0 0.0
      %596 = vmatpush1.msra.mxu0 0.0
      %597 = vmatprep.subr.mxu0 0.0
      %598 = vmatpush1.msra.mxu0 0.0
      %599 = vmatprep.subr.mxu0 0.0
      %600 = vmatpush1.msra.mxu0 0.0
      %601 = vmatprep.subr.mxu0 0.0
      %602 = vmatpush1.msra.mxu0 0.0
      %603 = vmatprep.subr.mxu0 0.0
      %604 = vmatpush1.msra.mxu0 0.0
      %605 = vmatprep.subr.mxu0 0.0
      %606 = vmatpush1.msra.mxu0 0.0
      %607 = vmatprep.subr.mxu0 0.0
      %608 = vmatpush1.msra.mxu0 0.0
      %609 = vmatprep.subr.mxu0 0.0
      %610 = vmatpush1.msra.mxu0 0.0
      %611 = vmatprep.subr.mxu0 0.0
      %612 = vmatpush1.msra.mxu0 0.0
      %613 = vmatprep.subr.mxu0 0.0
      %614 = vmatpush1.msra.mxu0 0.0
      %615 = vmatprep.subr.mxu0 0.0
      %616 = vmatpush1.msra.mxu0 0.0
      %617 = vmatprep.subr.mxu0 0.0
      %618 = vmatpush1.msra.mxu0 0.0
      %619 = vmatprep.subr.mxu0 0.0
      %620 = vmatpush1.msra.mxu0 %v587
      %621 = vmatprep.subr.mxu0 0.0
      %622 = vmatpush2.msra.mxu0 0.0
      %623 = vmatprep.subr.mxu0 0.0
      %624 = vmatpush2.msra.mxu0 0.0
      %625 = vmatprep.subr.mxu0 0.0
      %626 = vmatpush2.msra.mxu0 0.0
      %627 = vmatprep.subr.mxu0 0.0
      %628 = vmatpush2.msra.mxu0 0.0
      %629 = vmatprep.subr.mxu0 0.0
      %630 = vmatpush2.msra.mxu0 0.0
      %631 = vmatprep.subr.mxu0 0.0
      %632 = vmatpush2.msra.mxu0 0.0
      %633 = vmatprep.subr.mxu0 0.0
      %634 = vmatpush2.msra.mxu0 0.0
      %635 = vmatprep.subr.mxu0 0.0
      %636 = vmatpush2.msra.mxu0 0.0
      %637 = vmatprep.subr.mxu0 0.0
      %638 = vmatpush2.msra.mxu0 0.0
      %639 = vmatprep.subr.mxu0 0.0
      %640 = vmatpush2.msra.mxu0 0.0
      %641 = vmatprep.subr.mxu0 0.0
      %642 = vmatpush2.msra.mxu0 0.0
      %643 = vmatprep.subr.mxu0 0.0
      %644 = vmatpush2.msra.mxu0 0.0
      %645 = vmatprep.subr.mxu0 0.0
      %646 = vmatpush2.msra.mxu0 0.0
      %647 = vmatprep.subr.mxu0 0.0
      %648 = vmatpush2.msra.mxu0 0.0
      %649 = vmatprep.subr.mxu0 0.0
      %650 = vmatpush2.msra.mxu0 0.0
      %651 = vmatprep.subr.mxu0 0.0
      %652 = vmatpush2.msra.mxu0 0.0
      %653 = vmatprep.mubr.f32.mxu0 0.0
      %654 = vmatmul.mubr.f32.gmra.mxu0 %v509
      %v655 = vpop.f32.mrf.mxu0
      %v656 = vadd.f32 0.0, %v655
      %v657 = vpop.f32.mrf.mxu0
      %658 = vdwg.mxu0
      %v659 = vmul.f32 %v656, %v503
      %v661 = vsel %vm354, %v425, 0
      %v664 = vsel %vm354, %v584, 0
      %666 = vmatprep.subr.mxu0 0.0
      %667 = vmatpush1.xpose.msra.mxu0 0.0
      %668 = vmatprep.subr.mxu0 0.0
      %669 = vmatpush1.xpose.msra.mxu0 0.0
      %670 = vmatprep.subr.mxu0 0.0
      %671 = vmatpush1.xpose.msra.mxu0 0.0
      %672 = vmatprep.subr.mxu0 0.0
      %673 = vmatpush1.xpose.msra.mxu0 0.0
      %674 = vmatprep.subr.mxu0 0.0
      %675 = vmatpush1.xpose.msra.mxu0 0.0
      %676 = vmatprep.subr.mxu0 0.0
      %677 = vmatpush1.xpose.msra.mxu0 0.0
      %678 = vmatprep.subr.mxu0 0.0
      %679 = vmatpush1.xpose.msra.mxu0 0.0
      %680 = vmatprep.subr.mxu0 0.0
      %681 = vmatpush1.xpose.msra.mxu0 0.0
      %682 = vmatprep.subr.mxu0 0.0
      %683 = vmatpush1.xpose.msra.mxu0 0.0
      %684 = vmatprep.subr.mxu0 0.0
      %685 = vmatpush1.xpose.msra.mxu0 0.0
      %686 = vmatprep.subr.mxu0 0.0
      %687 = vmatpush1.xpose.msra.mxu0 0.0
      %688 = vmatprep.subr.mxu0 0.0
      %689 = vmatpush1.xpose.msra.mxu0 0.0
      %690 = vmatprep.subr.mxu0 0.0
      %691 = vmatpush1.xpose.msra.mxu0 0.0
      %692 = vmatprep.subr.mxu0 0.0
      %693 = vmatpush1.xpose.msra.mxu0 0.0
      %694 = vmatprep.subr.mxu0 0.0
      %695 = vmatpush1.xpose.msra.mxu0 0.0
      %696 = vmatprep.subr.mxu0 0.0
      %697 = vmatpush1.xpose.msra.mxu0 %v664
      %698 = vmatprep.subr.mxu0 0.0
      %699 = vmatpush2.xpose.msra.mxu0 0.0
      %700 = vmatprep.subr.mxu0 0.0
      %701 = vmatpush2.xpose.msra.mxu0 0.0
      %702 = vmatprep.subr.mxu0 0.0
      %703 = vmatpush2.xpose.msra.mxu0 0.0
      %704 = vmatprep.subr.mxu0 0.0
      %705 = vmatpush2.xpose.msra.mxu0 0.0
      %706 = vmatprep.subr.mxu0 0.0
      %707 = vmatpush2.xpose.msra.mxu0 0.0
      %708 = vmatprep.subr.mxu0 0.0
      %709 = vmatpush2.xpose.msra.mxu0 0.0
      %710 = vmatprep.subr.mxu0 0.0
      %711 = vmatpush2.xpose.msra.mxu0 0.0
      %712 = vmatprep.subr.mxu0 0.0
      %713 = vmatpush2.xpose.msra.mxu0 0.0
      %714 = vmatprep.subr.mxu0 0.0
      %715 = vmatpush2.xpose.msra.mxu0 0.0
      %716 = vmatprep.subr.mxu0 0.0
      %717 = vmatpush2.xpose.msra.mxu0 0.0
      %718 = vmatprep.subr.mxu0 0.0
      %719 = vmatpush2.xpose.msra.mxu0 0.0
      %720 = vmatprep.subr.mxu0 0.0
      %721 = vmatpush2.xpose.msra.mxu0 0.0
      %722 = vmatprep.subr.mxu0 0.0
      %723 = vmatpush2.xpose.msra.mxu0 0.0
      %724 = vmatprep.subr.mxu0 0.0
      %725 = vmatpush2.xpose.msra.mxu0 0.0
      %726 = vmatprep.subr.mxu0 0.0
      %727 = vmatpush2.xpose.msra.mxu0 0.0
      %728 = vmatprep.subr.mxu0 0.0
      %729 = vmatpush2.xpose.msra.mxu0 0.0
      %730 = vmatprep.mubr.f32.mxu0 0.0
      %731 = vmatmul.mubr.f32.gmra.mxu0 %v661
      %v732 = vpop.f32.mrf.mxu0
      %v733 = vadd.f32 0.0, %v732
      %v734 = vpop.f32.mrf.mxu0
      %735 = vdwg.mxu0
      %v736 = vmul.f32 %v733, 0.5
      %vm737 = vcmask 59392
      %v738 = vsel %vm737, %v736, -inf
      %739 = vmax.xlane.f32.xlu0 %v738
      %v740 = vpop.xlane.xlu0 %739
      %v741 = vsub.f32 %v736, %v740
      %v742 = vmul.f32 %v741, 1.442695
      %v743 = vpow.pop %v742
      %v744 = vld [vmem:[%s8] sm:$0xff]
      %vm745 = vcmask 64512
      %v747 = vsel %vm745, %v743, 0
      %749 = vmatprep.subr.mxu0 0.0
      %750 = vmatpush1.msra.mxu0 0.0
      %751 = vmatprep.subr.mxu0 0.0
      %752 = vmatpush1.msra.mxu0 0.0
      %753 = vmatprep.subr.mxu0 0.0
      %754 = vmatpush1.msra.mxu0 0.0
      %755 = vmatprep.subr.mxu0 0.0
      %756 = vmatpush1.msra.mxu0 0.0
      %757 = vmatprep.subr.mxu0 0.0
      %758 = vmatpush1.msra.mxu0 0.0
      %759 = vmatprep.subr.mxu0 0.0
      %760 = vmatpush1.msra.mxu0 0.0
      %761 = vmatprep.subr.mxu0 0.0
      %762 = vmatpush1.msra.mxu0 0.0
      %763 = vmatprep.subr.mxu0 0.0
      %764 = vmatpush1.msra.mxu0 0.0
      %765 = vmatprep.subr.mxu0 0.0
      %766 = vmatpush1.msra.mxu0 0.0
      %767 = vmatprep.subr.mxu0 0.0
      %768 = vmatpush1.msra.mxu0 0.0
      %769 = vmatprep.subr.mxu0 0.0
      %770 = vmatpush1.msra.mxu0 0.0
      %771 = vmatprep.subr.mxu0 0.0
      %772 = vmatpush1.msra.mxu0 0.0
      %773 = vmatprep.subr.mxu0 0.0
      %774 = vmatpush1.msra.mxu0 0.0
      %775 = vmatprep.subr.mxu0 0.0
      %776 = vmatpush1.msra.mxu0 0.0
      %777 = vmatprep.subr.mxu0 0.0
      %778 = vmatpush1.msra.mxu0 0.0
      %779 = vmatprep.subr.mxu0 0.0
      %780 = vmatpush1.msra.mxu0 %v744
      %781 = vmatprep.subr.mxu0 0.0
      %782 = vmatpush2.msra.mxu0 0.0
      %783 = vmatprep.subr.mxu0 0.0
      %784 = vmatpush2.msra.mxu0 0.0
      %785 = vmatprep.subr.mxu0 0.0
      %786 = vmatpush2.msra.mxu0 0.0
      %787 = vmatprep.subr.mxu0 0.0
      %788 = vmatpush2.msra.mxu0 0.0
      %789 = vmatprep.subr.mxu0 0.0
      %790 = vmatpush2.msra.mxu0 0.0
      %791 = vmatprep.subr.mxu0 0.0
      %792 = vmatpush2.msra.mxu0 0.0
      %793 = vmatprep.subr.mxu0 0.0
      %794 = vmatpush2.msra.mxu0 0.0
      %795 = vmatprep.subr.mxu0 0.0
      %796 = vmatpush2.msra.mxu0 0.0
      %797 = vmatprep.subr.mxu0 0.0
      %798 = vmatpush2.msra.mxu0 0.0
      %799 = vmatprep.subr.mxu0 0.0
      %800 = vmatpush2.msra.mxu0 0.0
      %801 = vmatprep.subr.mxu0 0.0
      %802 = vmatpush2.msra.mxu0 0.0
      %803 = vmatprep.subr.mxu0 0.0
      %804 = vmatpush2.msra.mxu0 0.0
      %805 = vmatprep.subr.mxu0 0.0
      %806 = vmatpush2.msra.mxu0 0.0
      %807 = vmatprep.subr.mxu0 0.0
      %808 = vmatpush2.msra.mxu0 0.0
      %809 = vmatprep.subr.mxu0 0.0
      %810 = vmatpush2.msra.mxu0 0.0
      %811 = vmatprep.subr.mxu0 0.0
      %812 = vmatpush2.msra.mxu0 0.0
      %813 = vmatprep.mubr.f32.mxu0 0.0
      %814 = vmatmul.mubr.f32.gmra.mxu0 %v747
      %v815 = vpop.f32.mrf.mxu0
      %v816 = vadd.f32 0.0, %v815
      %v817 = vpop.f32.mrf.mxu0
      %818 = vdwg.mxu0
      %v820 = vsel %vm745, %v816, 0
      %v823 = vsel %vm745, %v744, 0
      %825 = vmatprep.subr.mxu0 0.0
      %826 = vmatpush1.xpose.msra.mxu0 0.0
      %827 = vmatprep.subr.mxu0 0.0
      %828 = vmatpush1.xpose.msra.mxu0 0.0
      %829 = vmatprep.subr.mxu0 0.0
      %830 = vmatpush1.xpose.msra.mxu0 0.0
      %831 = vmatprep.subr.mxu0 0.0
      %832 = vmatpush1.xpose.msra.mxu0 0.0
      %833 = vmatprep.subr.mxu0 0.0
      %834 = vmatpush1.xpose.msra.mxu0 0.0
      %835 = vmatprep.subr.mxu0 0.0
      %836 = vmatpush1.xpose.msra.mxu0 0.0
      %837 = vmatprep.subr.mxu0 0.0
      %838 = vmatpush1.xpose.msra.mxu0 0.0
      %839 = vmatprep.subr.mxu0 0.0
      %840 = vmatpush1.xpose.msra.mxu0 0.0
      %841 = vmatprep.subr.mxu0 0.0
      %842 = vmatpush1.xpose.msra.mxu0 0.0
      %843 = vmatprep.subr.mxu0 0.0
      %844 = vmatpush1.xpose.msra.mxu0 0.0
      %845 = vmatprep.subr.mxu0 0.0
      %846 = vmatpush1.xpose.msra.mxu0 0.0
      %847 = vmatprep.subr.mxu0 0.0
      %848 = vmatpush1.xpose.msra.mxu0 0.0
      %849 = vmatprep.subr.mxu0 0.0
      %850 = vmatpush1.xpose.msra.mxu0 0.0
      %851 = vmatprep.subr.mxu0 0.0
      %852 = vmatpush1.xpose.msra.mxu0 0.0
      %853 = vmatprep.subr.mxu0 0.0
      %854 = vmatpush1.xpose.msra.mxu0 0.0
      %855 = vmatprep.subr.mxu0 0.0
      %856 = vmatpush1.xpose.msra.mxu0 %v823
      %857 = vmatprep.subr.mxu0 0.0
      %858 = vmatpush2.xpose.msra.mxu0 0.0
      %859 = vmatprep.subr.mxu0 0.0
      %860 = vmatpush2.xpose.msra.mxu0 0.0
      %861 = vmatprep.subr.mxu0 0.0
      %862 = vmatpush2.xpose.msra.mxu0 0.0
      %863 = vmatprep.subr.mxu0 0.0
      %864 = vmatpush2.xpose.msra.mxu0 0.0
      %865 = vmatprep.subr.mxu0 0.0
      %866 = vmatpush2.xpose.msra.mxu0 0.0
      %867 = vmatprep.subr.mxu0 0.0
      %868 = vmatpush2.xpose.msra.mxu0 0.0
      %869 = vmatprep.subr.mxu0 0.0
      %870 = vmatpush2.xpose.msra.mxu0 0.0
      %871 = vmatprep.subr.mxu0 0.0
      %872 = vmatpush2.xpose.msra.mxu0 0.0
      %873 = vmatprep.subr.mxu0 0.0
      %874 = vmatpush2.xpose.msra.mxu0 0.0
      %875 = vmatprep.subr.mxu0 0.0
      %876 = vmatpush2.xpose.msra.mxu0 0.0
      %877 = vmatprep.subr.mxu0 0.0
      %878 = vmatpush2.xpose.msra.mxu0 0.0
      %879 = vmatprep.subr.mxu0 0.0
      %880 = vmatpush2.xpose.msra.mxu0 0.0
      %881 = vmatprep.subr.mxu0 0.0
      %882 = vmatpush2.xpose.msra.mxu0 0.0
      %883 = vmatprep.subr.mxu0 0.0
      %884 = vmatpush2.xpose.msra.mxu0 0.0
      %885 = vmatprep.subr.mxu0 0.0
      %886 = vmatpush2.xpose.msra.mxu0 0.0
      %887 = vmatprep.subr.mxu0 0.0
      %888 = vmatpush2.xpose.msra.mxu0 0.0
      %889 = vmatprep.mubr.f32.mxu0 0.0
      %890 = vmatmul.mubr.f32.gmra.mxu0 %v820
      %v891 = vpop.f32.mrf.mxu0
      %v892 = vadd.f32 1e-20, %v891
      %v893 = vpop.f32.mrf.mxu0
      %894 = vdwg.mxu0
      %v895 = vrcp.pop %v892
      %v896 = vmul.f32 %v743, %v895
      %v898 = vsel %vm745, %v896, 0
      %900 = vmatprep.subr.mxu0 0.0
      %901 = vmatpush1.msra.mxu0 0.0
      %902 = vmatprep.subr.mxu0 0.0
      %903 = vmatpush1.msra.mxu0 0.0
      %904 = vmatprep.subr.mxu0 0.0
      %905 = vmatpush1.msra.mxu0 0.0
      %906 = vmatprep.subr.mxu0 0.0
      %907 = vmatpush1.msra.mxu0 0.0
      %908 = vmatprep.subr.mxu0 0.0
      %909 = vmatpush1.msra.mxu0 0.0
      %910 = vmatprep.subr.mxu0 0.0
      %911 = vmatpush1.msra.mxu0 0.0
      %912 = vmatprep.subr.mxu0 0.0
      %913 = vmatpush1.msra.mxu0 0.0
      %914 = vmatprep.subr.mxu0 0.0
      %915 = vmatpush1.msra.mxu0 0.0
      %916 = vmatprep.subr.mxu0 0.0
      %917 = vmatpush1.msra.mxu0 0.0
      %918 = vmatprep.subr.mxu0 0.0
      %919 = vmatpush1.msra.mxu0 0.0
      %920 = vmatprep.subr.mxu0 0.0
      %921 = vmatpush1.msra.mxu0 0.0
      %922 = vmatprep.subr.mxu0 0.0
      %923 = vmatpush1.msra.mxu0 0.0
      %924 = vmatprep.subr.mxu0 0.0
      %925 = vmatpush1.msra.mxu0 0.0
      %926 = vmatprep.subr.mxu0 0.0
      %927 = vmatpush1.msra.mxu0 0.0
      %928 = vmatprep.subr.mxu0 0.0
      %929 = vmatpush1.msra.mxu0 0.0
      %930 = vmatprep.subr.mxu0 0.0
      %931 = vmatpush1.msra.mxu0 %v659
      %932 = vmatprep.subr.mxu0 0.0
      %933 = vmatpush2.msra.mxu0 0.0
      %934 = vmatprep.subr.mxu0 0.0
      %935 = vmatpush2.msra.mxu0 0.0
      %936 = vmatprep.subr.mxu0 0.0
      %937 = vmatpush2.msra.mxu0 0.0
      %938 = vmatprep.subr.mxu0 0.0
      %939 = vmatpush2.msra.mxu0 0.0
      %940 = vmatprep.subr.mxu0 0.0
      %941 = vmatpush2.msra.mxu0 0.0
      %942 = vmatprep.subr.mxu0 0.0
      %943 = vmatpush2.msra.mxu0 0.0
      %944 = vmatprep.subr.mxu0 0.0
      %945 = vmatpush2.msra.mxu0 0.0
      %946 = vmatprep.subr.mxu0 0.0
      %947 = vmatpush2.msra.mxu0 0.0
      %948 = vmatprep.subr.mxu0 0.0
      %949 = vmatpush2.msra.mxu0 0.0
      %950 = vmatprep.subr.mxu0 0.0
      %951 = vmatpush2.msra.mxu0 0.0
      %952 = vmatprep.subr.mxu0 0.0
      %953 = vmatpush2.msra.mxu0 0.0
      %954 = vmatprep.subr.mxu0 0.0
      %955 = vmatpush2.msra.mxu0 0.0
      %956 = vmatprep.subr.mxu0 0.0
      %957 = vmatpush2.msra.mxu0 0.0
      %958 = vmatprep.subr.mxu0 0.0
      %959 = vmatpush2.msra.mxu0 0.0
      %960 = vmatprep.subr.mxu0 0.0
      %961 = vmatpush2.msra.mxu0 0.0
      %962 = vmatprep.subr.mxu0 0.0
      %963 = vmatpush2.msra.mxu0 0.0
      %964 = vmatprep.mubr.f32.mxu0 0.0
      %965 = vmatmul.mubr.f32.gmra.mxu0 %v898
      %v966 = vpop.f32.mrf.mxu0
      %v967 = vadd.f32 0.0, %v966
      %v968 = vpop.f32.mrf.mxu0
      %969 = vdwg.mxu0
      %v970 = vld [vmem:[%s4] sm:$0xff]
      %v971 = vld [vmem:[%s4 + $0x8] sm:$0xff]
      %v972 = vld [vmem:[%s4 + $0x10] sm:$0xff]
      %v973 = vld [vmem:[%s4 + $0x18] sm:$0xff]
      %v974 = vld [vmem:[%s5] sm:$0x1]
      %v976 = vlaneseq
      %v977 = vshrl.u32 %v976, 7
      %v978 = vsub.s32 0, %v977
      %v979 = vrot.slane %v974, %v978
      %v982 = vsel %vm354, %v967, 0
      %984 = vmatprep.subr.mxu0 0.0
      %985 = vmatpush1.msra.mxu0 0.0
      %986 = vmatprep.subr.mxu0 0.0
      %987 = vmatpush1.msra.mxu0 0.0
      %988 = vmatprep.subr.mxu0 0.0
      %989 = vmatpush1.msra.mxu0 0.0
      %990 = vmatprep.subr.mxu0 0.0
      %991 = vmatpush1.msra.mxu0 0.0
      %992 = vmatprep.subr.mxu0 0.0
      %993 = vmatpush1.msra.mxu0 0.0
      %994 = vmatprep.subr.mxu0 0.0
      %995 = vmatpush1.msra.mxu0 0.0
      %996 = vmatprep.subr.mxu0 0.0
      %997 = vmatpush1.msra.mxu0 0.0
      %998 = vmatprep.subr.mxu0 0.0
      %999 = vmatpush1.msra.mxu0 0.0
      %1000 = vmatprep.subr.mxu0 0.0
      %1001 = vmatpush1.msra.mxu0 0.0
      %1002 = vmatprep.subr.mxu0 0.0
      %1003 = vmatpush1.msra.mxu0 0.0
      %1004 = vmatprep.subr.mxu0 0.0
      %1005 = vmatpush1.msra.mxu0 0.0
      %1006 = vmatprep.subr.mxu0 0.0
      %1007 = vmatpush1.msra.mxu0 0.0
      %1008 = vmatprep.subr.mxu0 0.0
      %1009 = vmatpush1.msra.mxu0 %v973
      %1010 = vmatprep.subr.mxu0 0.0
      %1011 = vmatpush1.msra.mxu0 %v972
      %1012 = vmatprep.subr.mxu0 0.0
      %1013 = vmatpush1.msra.mxu0 %v971
      %1014 = vmatprep.subr.mxu0 0.0
      %1015 = vmatpush1.msra.mxu0 %v970
      %1016 = vmatprep.subr.mxu0 0.0
      %1017 = vmatpush2.msra.mxu0 0.0
      %1018 = vmatprep.subr.mxu0 0.0
      %1019 = vmatpush2.msra.mxu0 0.0
      %1020 = vmatprep.subr.mxu0 0.0
      %1021 = vmatpush2.msra.mxu0 0.0
      %1022 = vmatprep.subr.mxu0 0.0
      %1023 = vmatpush2.msra.mxu0 0.0
      %1024 = vmatprep.subr.mxu0 0.0
      %1025 = vmatpush2.msra.mxu0 0.0
      %1026 = vmatprep.subr.mxu0 0.0
      %1027 = vmatpush2.msra.mxu0 0.0
      %1028 = vmatprep.subr.mxu0 0.0
      %1029 = vmatpush2.msra.mxu0 0.0
      %1030 = vmatprep.subr.mxu0 0.0
      %1031 = vmatpush2.msra.mxu0 0.0
      %1032 = vmatprep.subr.mxu0 0.0
      %1033 = vmatpush2.msra.mxu0 0.0
      %1034 = vmatprep.subr.mxu0 0.0
      %1035 = vmatpush2.msra.mxu0 0.0
      %1036 = vmatprep.subr.mxu0 0.0
      %1037 = vmatpush2.msra.mxu0 0.0
      %1038 = vmatprep.subr.mxu0 0.0
      %1039 = vmatpush2.msra.mxu0 0.0
      %1040 = vmatprep.subr.mxu0 0.0
      %1041 = vmatpush2.msra.mxu0 0.0
      %1042 = vmatprep.subr.mxu0 0.0
      %1043 = vmatpush2.msra.mxu0 0.0
      %1044 = vmatprep.subr.mxu0 0.0
      %1045 = vmatpush2.msra.mxu0 0.0
      %1046 = vmatprep.subr.mxu0 0.0
      %1047 = vmatpush2.msra.mxu0 0.0
      %1048 = vmatprep.mubr.f32.mxu0 0.0
      %1049 = vmatmul.mubr.f32.gmra.mxu0 %v982
      %v1050 = vpop.f32.mrf.mxu0
      %v1051 = vadd.f32 %v979, %v1050
      %v1052 = vpop.f32.mrf.mxu0
      %1053 = vdwg.mxu0
      %vm1054 = vcmask 256000
      %1055 = vst.msk [vmem:[%s341] sm:$0x7] %vm1054, %v1051
      %p1056 = scmp.lt.s32.totalorder %s20, 1
      %s1057 = scalar_select %p1056, %s20, 1
      %s1058 = smul.addr %s1057, 4
      %s1059 = scalar_lea.vmem %s9, %s1058
      // Predicated region
      $region57: #{graph_pooling_hierarchy_forward.9} parent=55 // pred_check
        %p1060 = pneg %p237
      $region58: #{graph_pooling_hierarchy_forward.9} parent=55 // pred_check_branch
        %1062 = sbr.rel (%p1060) target = $region60
      $region59: #{graph_pooling_hierarchy_forward.9} parent=55 // pred_region
        _
      $region60: #{graph_pooling_hierarchy_forward.9} parent=55 // pred_fallthru
        _
    $region56: #{graph_pooling_hierarchy_forward.9} parent=5 // pred_fallthru
      _
    %p1063 = scmp.le.s32.totalorder 2, %s15
    // Predicated region
    $region61: #{graph_pooling_hierarchy_forward.9} parent=5 // pred_check
      %p1064 = pneg %p1063
    $region62: #{graph_pooling_hierarchy_forward.9} parent=5 // pred_check_branch
      %1066 = sbr.rel (%p1064) target = $region64
    $region63: #{graph_pooling_hierarchy_forward.9} parent=5 // pred_region
      %s1067 = ssub.s32 %s15, 2
      // Predicated region
      $region65: #{graph_pooling_hierarchy_forward.9} parent=63 // pred_check
        %p1068 = pneg %p243
      $region66: #{graph_pooling_hierarchy_forward.9} parent=63 // pred_check_branch
        %1070 = sbr.rel (%p1068) target = $region68
      $region67: #{graph_pooling_hierarchy_forward.9} parent=63 // pred_region
        %p1071 = scmp.lt.s32.totalorder %s21, 1
        %s1072 = scalar_select %p1071, %s21, 1
        %s1073 = smul.addr %s1072, 4
        %s1074 = scalar_lea.vmem %s9, %s1073
      $region68: #{graph_pooling_hierarchy_forward.9} parent=63 // pred_fallthru
        _
    $region64: #{graph_pooling_hierarchy_forward.9} parent=5 // pred_fallthru
      _
  $region6: #{graph_pooling_hierarchy_forward.9} parent=0 // loop_footer
    %s19 = sadd.s32 1, %s15
  $region7: #{graph_pooling_hierarchy_forward.9} parent=0 // loop_footer_branch
    %14 = sbr.rel target = $region3
  $region8: #{graph_pooling_hierarchy_forward.9} parent=0 // loop_exit
    _

// kernel: graph_pooling_hierarchy_forward.7
$region0: #{graph_pooling_hierarchy_forward.7}
  #allocation0 [shape = 'u32[]', space=smem, size = 0x4, offset = 0x4, fixed_abs, tag = 'smem constant byte address 0x4 - core index']
  #allocation1 [shape = 'u32[144,128]{1,0:T(1,128)}', space=vmem, size = 0x12000, scoped, tag = 'internal scratch']
  %s0 = inlined_call_operand.vmem [shape: f32[2,6,32], index: 0, kind: input, shape index: {}]
  %s1 = inlined_call_operand.vmem [shape: f32[2,3,32], index: 1, kind: input, shape index: {}]
  %s2 = inlined_call_operand.vmem [shape: f32[32,128], index: 2, kind: input, shape index: {}]
  %s3 = inlined_call_operand.vmem [shape: f32[1,128], index: 3, kind: input, shape index: {}]
  %s4 = inlined_call_operand.vmem [shape: f32[32,32], index: 4, kind: input, shape index: {}]
  %s5 = inlined_call_operand.vmem [shape: f32[1,32], index: 5, kind: input, shape index: {}]
  %s6 = inlined_call_operand.vmem [shape: f32[24,3], index: 6, kind: input, shape index: {}]
  %s7 = inlined_call_operand.vmem [shape: f32[24,32], index: 7, kind: input, shape index: {}]
  %s8 = inlined_call_operand.vmem [shape: f32[24,8], index: 8, kind: input, shape index: {}]
  %s9 = inlined_call_operand.vmem [shape: f32[2,6,32], index: 9, kind: output, shape index: {}]
  %s10 = sld [smem:[#allocation0]]
  $region69: #{graph_pooling_hierarchy_forward.7} parent=0
    _
  %s12 = ssub.s32 1, %s10
  %s13 = scalar_select 0, %s12, %s10
  loop: start=0, step=1, limit=4
  $region2: #{graph_pooling_hierarchy_forward.7} parent=0 // loop_pre_header
    _
  $region3: #{graph_pooling_hierarchy_forward.7} parent=0 // loop_header
    %s15 = sphi 0, %s19
    %p16 = scmp.ge.s32.totalorder %s15, 4
    %s25 = sphi 0, %s27
    %s28 = sphi 0, %s25
    %s29 = sphi 0, %s28
    %s45 = sphi 0, %s29
    %s51 = sphi 0, %s53
    %s54 = sphi 0, %s51
    %s55 = sphi 0, %s54
    %s71 = sphi 0, %s55
    %s75 = sphi 0, %s75
    %s77 = sphi 0, %s75
    %s78 = sphi 0, %s77
    %s92 = sphi 0, %s78
    %s96 = sphi 0, %s96
    %s98 = sphi 0, %s96
    %s99 = sphi 0, %s98
    %s113 = sphi 0, %s99
    %s117 = sphi 0, %s117
    %s119 = sphi 0, %s117
    %s120 = sphi 0, %s119
    %s134 = sphi 0, %s120
    %s138 = sphi 0, %s138
    %s140 = sphi 0, %s138
    %s141 = sphi 0, %s140
    %s155 = sphi 0, %s141
    %s159 = sphi 0, %s159
    %s161 = sphi 0, %s159
    %s162 = sphi 0, %s161
    %s176 = sphi 0, %s162
    %s180 = sphi 0, %s180
    %s182 = sphi 0, %s180
    %s183 = sphi 0, %s182
    %s197 = sphi 0, %s183
    %s201 = sphi 0, %s201
    %s203 = sphi 0, %s201
    %s204 = sphi 0, %s203
    %s218 = sphi 0, %s204
    %s224 = sphi 0, %s226
    %s227 = sphi 0, %s224
    %s228 = sphi 0, %s227
    %s244 = sphi 0, %s228
  $region4: #{graph_pooling_hierarchy_forward.7} parent=0 // loop_header_branch
    %18 = sbr.rel (%p16) target = $region8
  $region5: #{graph_pooling_hierarchy_forward.7} parent=0 // loop_body
    %s20 = ssub.s32 %s15, 1
    %s21 = ssub.s32 %s15, 2
    %s22 = sadd.s32 %s15, 1
    %s23 = ssub.s32 %s15, %s22
    %p24 = scmp.eq.s32.totalorder %s23, 0
    %s26 = sadd.s32 %s25, 1
    %s27 = scalar_select %p24, %s25, %s26
    %p30 = pneg %p24
    %p31 = scmp.eq.s32.totalorder %s15, 1
    %p32 = por %p30, %p31
    %p33 = scmp.ne.s32.totalorder %s25, %s28
    %p34 = scmp.eq.s32.totalorder %s15, 0
    %p35 = por %p33, %p34
    %p36 = scmp.ne.s32.totalorder %s25, %s28
    %p37 = scmp.eq.s32.totalorder %s20, 1
    %p38 = por %p36, %p37
    %p39 = scmp.ne.s32.totalorder %s28, %s29
    %p40 = scmp.eq.s32.totalorder %s20, 0
    %p41 = por %p39, %p40
    %p42 = scmp.ne.s32.totalorder %s28, %s29
    %p43 = scmp.eq.s32.totalorder %s21, 1
    %p44 = por %p42, %p43
    %p46 = scmp.ne.s32.totalorder %s29, %s45
    %p47 = scmp.eq.s32.totalorder %s21, 0
    %p48 = por %p46, %p47
    %s49 = ssub.s32 %s15, %s22
    %p50 = scmp.eq.s32.totalorder %s49, 0
    %s52 = sadd.s32 %s51, 1
    %s53 = scalar_select %p50, %s51, %s52
    %p56 = pneg %p50
    %p57 = scmp.eq.s32.totalorder %s15, 1
    %p58 = por %p56, %p57
    %p59 = scmp.ne.s32.totalorder %s51, %s54
    %p60 = scmp.eq.s32.totalorder %s15, 0
    %p61 = por %p59, %p60
    %p62 = scmp.ne.s32.totalorder %s51, %s54
    %p63 = scmp.eq.s32.totalorder %s20, 1
    %p64 = por %p62, %p63
    %p65 = scmp.ne.s32.totalorder %s54, %s55
    %p66 = scmp.eq.s32.totalorder %s20, 0
    %p67 = por %p65, %p66
    %p68 = scmp.ne.s32.totalorder %s54, %s55
    %p69 = scmp.eq.s32.totalorder %s21, 1
    %p70 = por %p68, %p69
    %p72 = scmp.ne.s32.totalorder %s55, %s71
    %p73 = scmp.eq.s32.totalorder %s21, 0
    %p74 = por %p72, %p73
    %s76 = sadd.s32 %s75, 1
    %p79 = scmp.eq.s32.totalorder %s15, 1
    %p80 = scmp.ne.s32.totalorder %s75, %s77
    %p81 = scmp.eq.s32.totalorder %s15, 0
    %p82 = por %p80, %p81
    %p83 = scmp.ne.s32.totalorder %s75, %s77
    %p84 = scmp.eq.s32.totalorder %s20, 1
    %p85 = por %p83, %p84
    %p86 = scmp.ne.s32.totalorder %s77, %s78
    %p87 = scmp.eq.s32.totalorder %s20, 0
    %p88 = por %p86, %p87
    %p89 = scmp.ne.s32.totalorder %s77, %s78
    %p90 = scmp.eq.s32.totalorder %s21, 1
    %p91 = por %p89, %p90
    %p93 = scmp.ne.s32.totalorder %s78, %s92
    %p94 = scmp.eq.s32.totalorder %s21, 0
    %p95 = por %p93, %p94
    %s97 = sadd.s32 %s96, 1
    %p100 = scmp.eq.s32.totalorder %s15, 1
    %p101 = scmp.ne.s32.totalorder %s96, %s98
    %p102 = scmp.eq.s32.totalorder %s15, 0
    %p103 = por %p101, %p102
    %p104 = scmp.ne.s32.totalorder %s96, %s98
    %p105 = scmp.eq.s32.totalorder %s20, 1
    %p106 = por %p104, %p105
    %p107 = scmp.ne.s32.totalorder %s98, %s99
    %p108 = scmp.eq.s32.totalorder %s20, 0
    %p109 = por %p107, %p108
    %p110 = scmp.ne.s32.totalorder %s98, %s99
    %p111 = scmp.eq.s32.totalorder %s21, 1
    %p112 = por %p110, %p111
    %p114 = scmp.ne.s32.totalorder %s99, %s113
    %p115 = scmp.eq.s32.totalorder %s21, 0
    %p116 = por %p114, %p115
    %s118 = sadd.s32 %s117, 1
    %p121 = scmp.eq.s32.totalorder %s15, 1
    %p122 = scmp.ne.s32.totalorder %s117, %s119
    %p123 = scmp.eq.s32.totalorder %s15, 0
    %p124 = por %p122, %p123
    %p125 = scmp.ne.s32.totalorder %s117, %s119
    %p126 = scmp.eq.s32.totalorder %s20, 1
    %p127 = por %p125, %p126
    %p128 = scmp.ne.s32.totalorder %s119, %s120
    %p129 = scmp.eq.s32.totalorder %s20, 0
    %p130 = por %p128, %p129
    %p131 = scmp.ne.s32.totalorder %s119, %s120
    %p132 = scmp.eq.s32.totalorder %s21, 1
    %p133 = por %p131, %p132
    %p135 = scmp.ne.s32.totalorder %s120, %s134
    %p136 = scmp.eq.s32.totalorder %s21, 0
    %p137 = por %p135, %p136
    %s139 = sadd.s32 %s138, 1
    %p142 = scmp.eq.s32.totalorder %s15, 1
    %p143 = scmp.ne.s32.totalorder %s138, %s140
    %p144 = scmp.eq.s32.totalorder %s15, 0
    %p145 = por %p143, %p144
    %p146 = scmp.ne.s32.totalorder %s138, %s140
    %p147 = scmp.eq.s32.totalorder %s20, 1
    %p148 = por %p146, %p147
    %p149 = scmp.ne.s32.totalorder %s140, %s141
    %p150 = scmp.eq.s32.totalorder %s20, 0
    %p151 = por %p149, %p150
    %p152 = scmp.ne.s32.totalorder %s140, %s141
    %p153 = scmp.eq.s32.totalorder %s21, 1
    %p154 = por %p152, %p153
    %p156 = scmp.ne.s32.totalorder %s141, %s155
    %p157 = scmp.eq.s32.totalorder %s21, 0
    %p158 = por %p156, %p157
    %s160 = sadd.s32 %s159, 1
    %p163 = scmp.eq.s32.totalorder %s15, 1
    %p164 = scmp.ne.s32.totalorder %s159, %s161
    %p165 = scmp.eq.s32.totalorder %s15, 0
    %p166 = por %p164, %p165
    %p167 = scmp.ne.s32.totalorder %s159, %s161
    %p168 = scmp.eq.s32.totalorder %s20, 1
    %p169 = por %p167, %p168
    %p170 = scmp.ne.s32.totalorder %s161, %s162
    %p171 = scmp.eq.s32.totalorder %s20, 0
    %p172 = por %p170, %p171
    %p173 = scmp.ne.s32.totalorder %s161, %s162
    %p174 = scmp.eq.s32.totalorder %s21, 1
    %p175 = por %p173, %p174
    %p177 = scmp.ne.s32.totalorder %s162, %s176
    %p178 = scmp.eq.s32.totalorder %s21, 0
    %p179 = por %p177, %p178
    %s181 = sadd.s32 %s180, 1
    %p184 = scmp.eq.s32.totalorder %s15, 1
    %p185 = scmp.ne.s32.totalorder %s180, %s182
    %p186 = scmp.eq.s32.totalorder %s15, 0
    %p187 = por %p185, %p186
    %p188 = scmp.ne.s32.totalorder %s180, %s182
    %p189 = scmp.eq.s32.totalorder %s20, 1
    %p190 = por %p188, %p189
    %p191 = scmp.ne.s32.totalorder %s182, %s183
    %p192 = scmp.eq.s32.totalorder %s20, 0
    %p193 = por %p191, %p192
    %p194 = scmp.ne.s32.totalorder %s182, %s183
    %p195 = scmp.eq.s32.totalorder %s21, 1
    %p196 = por %p194, %p195
    %p198 = scmp.ne.s32.totalorder %s183, %s197
    %p199 = scmp.eq.s32.totalorder %s21, 0
    %p200 = por %p198, %p199
    %s202 = sadd.s32 %s201, 1
    %p205 = scmp.eq.s32.totalorder %s15, 1
    %p206 = scmp.ne.s32.totalorder %s201, %s203
    %p207 = scmp.eq.s32.totalorder %s15, 0
    %p208 = por %p206, %p207
    %p209 = scmp.ne.s32.totalorder %s201, %s203
    %p210 = scmp.eq.s32.totalorder %s20, 1
    %p211 = por %p209, %p210
    %p212 = scmp.ne.s32.totalorder %s203, %s204
    %p213 = scmp.eq.s32.totalorder %s20, 0
    %p214 = por %p212, %p213
    %p215 = scmp.ne.s32.totalorder %s203, %s204
    %p216 = scmp.eq.s32.totalorder %s21, 1
    %p217 = por %p215, %p216
    %p219 = scmp.ne.s32.totalorder %s204, %s218
    %p220 = scmp.eq.s32.totalorder %s21, 0
    %p221 = por %p219, %p220
    %s222 = ssub.s32 %s15, %s22
    %p223 = scmp.eq.s32.totalorder %s222, 0
    %s225 = sadd.s32 %s224, 1
    %s226 = scalar_select %p223, %s224, %s225
    %p229 = pneg %p223
    %p230 = scmp.eq.s32.totalorder %s15, 1
    %p231 = por %p229, %p230
    %p232 = scmp.ne.s32.totalorder %s224, %s227
    %p233 = scmp.eq.s32.totalorder %s15, 0
    %p234 = por %p232, %p233
    %p235 = scmp.ne.s32.totalorder %s224, %s227
    %p236 = scmp.eq.s32.totalorder %s20, 1
    %p237 = por %p235, %p236
    %p238 = scmp.ne.s32.totalorder %s227, %s228
    %p239 = scmp.eq.s32.totalorder %s20, 0
    %p240 = por %p238, %p239
    %p241 = scmp.ne.s32.totalorder %s227, %s228
    %p242 = scmp.eq.s32.totalorder %s21, 1
    %p243 = por %p241, %p242
    %p245 = scmp.ne.s32.totalorder %s228, %s244
    %p246 = scmp.eq.s32.totalorder %s21, 0
    %p247 = por %p245, %p246
    %p248 = scmp.le.s32.totalorder 1, %s15
    %p249 = scmp.lt.s32.totalorder %s15, 3
    %p250 = pnand %p248, %p249
    %p251 = pneg %p250
    // Predicated region
    $region9: #{graph_pooling_hierarchy_forward.7} parent=5 // pred_check
      _
    $region10: #{graph_pooling_hierarchy_forward.7} parent=5 // pred_check_branch
      %253 = sbr.rel (%p250) target = $region12
    $region11: #{graph_pooling_hierarchy_forward.7} parent=5 // pred_region
      %s254 = ssub.s32 %s15, 1
      // Predicated region
      $region13: #{graph_pooling_hierarchy_forward.7} parent=11 // pred_check
        %p255 = pneg %p88
      $region14: #{graph_pooling_hierarchy_forward.7} parent=11 // pred_check_branch
        %257 = sbr.rel (%p255) target = $region16
      $region15: #{graph_pooling_hierarchy_forward.7} parent=11 // pred_region
        _
      $region16: #{graph_pooling_hierarchy_forward.7} parent=11 // pred_fallthru
        _
      // Predicated region
      $region17: #{graph_pooling_hierarchy_forward.7} parent=11 // pred_check
        %p258 = pneg %p109
      $region18: #{graph_pooling_hierarchy_forward.7} parent=11 // pred_check_branch
        %260 = sbr.rel (%p258) target = $region20
      $region19: #{graph_pooling_hierarchy_forward.7} parent=11 // pred_region
        _
      $region20: #{graph_pooling_hierarchy_forward.7} parent=11 // pred_fallthru
        _
      // Predicated region
      $region21: #{graph_pooling_hierarchy_forward.7} parent=11 // pred_check
        %p261 = pneg %p130
      $region22: #{graph_pooling_hierarchy_forward.7} parent=11 // pred_check_branch
        %263 = sbr.rel (%p261) target = $region24
      $region23: #{graph_pooling_hierarchy_forward.7} parent=11 // pred_region
        _
      $region24: #{graph_pooling_hierarchy_forward.7} parent=11 // pred_fallthru
        _
      // Predicated region
      $region25: #{graph_pooling_hierarchy_forward.7} parent=11 // pred_check
        %p264 = pneg %p151
      $region26: #{graph_pooling_hierarchy_forward.7} parent=11 // pred_check_branch
        %266 = sbr.rel (%p264) target = $region28
      $region27: #{graph_pooling_hierarchy_forward.7} parent=11 // pred_region
        _
      $region28: #{graph_pooling_hierarchy_forward.7} parent=11 // pred_fallthru
        _
      // Predicated region
      $region29: #{graph_pooling_hierarchy_forward.7} parent=11 // pred_check
        %p267 = pneg %p172
      $region30: #{graph_pooling_hierarchy_forward.7} parent=11 // pred_check_branch
        %269 = sbr.rel (%p267) target = $region32
      $region31: #{graph_pooling_hierarchy_forward.7} parent=11 // pred_region
        _
      $region32: #{graph_pooling_hierarchy_forward.7} parent=11 // pred_fallthru
        _
      // Predicated region
      $region33: #{graph_pooling_hierarchy_forward.7} parent=11 // pred_check
        %p270 = pneg %p193
      $region34: #{graph_pooling_hierarchy_forward.7} parent=11 // pred_check_branch
        %272 = sbr.rel (%p270) target = $region36
      $region35: #{graph_pooling_hierarchy_forward.7} parent=11 // pred_region
        _
      $region36: #{graph_pooling_hierarchy_forward.7} parent=11 // pred_fallthru
        _
      // Predicated region
      $region37: #{graph_pooling_hierarchy_forward.7} parent=11 // pred_check
        %p273 = pneg %p214
      $region38: #{graph_pooling_hierarchy_forward.7} parent=11 // pred_check_branch
        %275 = sbr.rel (%p273) target = $region40
      $region39: #{graph_pooling_hierarchy_forward.7} parent=11 // pred_region
        _
      $region40: #{graph_pooling_hierarchy_forward.7} parent=11 // pred_fallthru
        _
    $region12: #{graph_pooling_hierarchy_forward.7} parent=5 // pred_fallthru
      _
    %p276 = scmp.lt.s32.totalorder %s15, 2
    // Predicated region
    $region41: #{graph_pooling_hierarchy_forward.7} parent=5 // pred_check
      %p277 = pneg %p276
    $region42: #{graph_pooling_hierarchy_forward.7} parent=5 // pred_check_branch
      %279 = sbr.rel (%p277) target = $region44
    $region43: #{graph_pooling_hierarchy_forward.7} parent=5 // pred_region
      // Predicated region
      $region45: #{graph_pooling_hierarchy_forward.7} parent=43 // pred_check
        %p280 = pneg %p35
      $region46: #{graph_pooling_hierarchy_forward.7} parent=43 // pred_check_branch
        %282 = sbr.rel (%p280) target = $region48
      $region47: #{graph_pooling_hierarchy_forward.7} parent=43 // pred_region
        %p283 = scmp.lt.s32.totalorder %s15, 1
        %s284 = scalar_select %p283, %s15, 1
        %s285 = smul.addr %s284, 8
        %s286 = scalar_lea.vmem %s0, %s285
      $region48: #{graph_pooling_hierarchy_forward.7} parent=43 // pred_fallthru
        _
      // Predicated region
      $region49: #{graph_pooling_hierarchy_forward.7} parent=43 // pred_check
        %p287 = pneg %p61
      $region50: #{graph_pooling_hierarchy_forward.7} parent=43 // pred_check_branch
        %289 = sbr.rel (%p287) target = $region52
      $region51: #{graph_pooling_hierarchy_forward.7} parent=43 // pred_region
        %p290 = scmp.lt.s32.totalorder %s15, 1
        %s291 = scalar_select %p290, %s15, 1
        %s292 = smul.addr %s291, 4
        %s293 = scalar_lea.vmem %s1, %s292
      $region52: #{graph_pooling_hierarchy_forward.7} parent=43 // pred_fallthru
        _
    $region44: #{graph_pooling_hierarchy_forward.7} parent=5 // pred_fallthru
      _
    %p294 = scmp.le.s32.totalorder 1, %s15
    %p295 = scmp.lt.s32.totalorder %s15, 3
    %p296 = pnand %p294, %p295
    %p297 = pneg %p296
    // Predicated region
    $region53: #{graph_pooling_hierarchy_forward.7} parent=5 // pred_check
      _
    $region54: #{graph_pooling_hierarchy_forward.7} parent=5 // pred_check_branch
      %299 = sbr.rel (%p296) target = $region56
    $region55: #{graph_pooling_hierarchy_forward.7} parent=5 // pred_region
      %s300 = ssub.s32 %s15, 1
      %p301 = scmp.lt.s32.totalorder %s20, 1
      %s302 = scalar_select %p301, %s20, 1
      %s303 = smul.addr %s302, 8
      %s304 = scalar_lea.vmem %s0, %s303
      %p305 = pneg %p41
      %p306 = pneg %p38
      %p307 = scmp.lt.s32.totalorder %s20, 1
      %s308 = scalar_select %p307, %s20, 1
      %s309 = smul.addr %s308, 4
      %s310 = scalar_lea.vmem %s1, %s309
      %p311 = pneg %p67
      %p312 = pneg %p64
      %p313 = pneg %p88
      %p314 = pneg %p85
      %p315 = pneg %p109
      %p316 = pneg %p106
      %p317 = pneg %p130
      %p318 = pneg %p127
      %p319 = pneg %p151
      %p320 = pneg %p148
      %p321 = pneg %p172
      %p322 = pneg %p169
      %p323 = pneg %p193
      %p324 = pneg %p190
      %p325 = pneg %p214
      %p326 = pneg %p211
      %p327 = pneg %p240
      %p328 = pneg %p237
      %p329 = scmp.lt.s32.totalorder %s20, 1
      %s330 = scalar_select %p329, %s20, 1
      %s331 = smul.addr %s330, 8
      %s332 = scalar_lea.vmem %s9, %s331
      %p333 = scmp.lt.s32.totalorder %s20, 1
      %s334 = scalar_select %p333, %s20, 1
      %s335 = smul.addr %s334, 8
      %s336 = scalar_lea.vmem %s0, %s335
      %p337 = scmp.lt.s32.totalorder %s20, 1
      %s338 = scalar_select %p337, %s20, 1
      %s339 = smul.addr %s338, 4
      %s340 = scalar_lea.vmem %s1, %s339
      %p341 = scmp.lt.s32.totalorder %s20, 1
      %s342 = scalar_select %p341, %s20, 1
      %s343 = smul.addr %s342, 8
      %s344 = scalar_lea.vmem %s9, %s343
      %v345 = vld [vmem:[%s2] sm:$0xff]
      %v346 = vld [vmem:[%s2 + $0x8] sm:$0xff]
      %v347 = vld [vmem:[%s2 + $0x10] sm:$0xff]
      %v348 = vld [vmem:[%s2 + $0x18] sm:$0xff]
      %v349 = vld [vmem:[%s3] sm:$0x1]
      %v350 = vld [vmem:[%s336] sm:$0x3f]
      %v352 = vlaneseq
      %v353 = vshrl.u32 %v352, 7
      %v354 = vsub.s32 0, %v353
      %v355 = vrot.slane %v349, %v354
      %vm357 = vcmask 261120
      %v359 = vsel %vm357, %v350, 0
      %361 = vmatprep.subr.mxu0 0.0
      %362 = vmatpush1.msra.mxu0 0.0
      %363 = vmatprep.subr.mxu0 0.0
      %364 = vmatpush1.msra.mxu0 0.0
      %365 = vmatprep.subr.mxu0 0.0
      %366 = vmatpush1.msra.mxu0 0.0
      %367 = vmatprep.subr.mxu0 0.0
      %368 = vmatpush1.msra.mxu0 0.0
      %369 = vmatprep.subr.mxu0 0.0
      %370 = vmatpush1.msra.mxu0 0.0
      %371 = vmatprep.subr.mxu0 0.0
      %372 = vmatpush1.msra.mxu0 0.0
      %373 = vmatprep.subr.mxu0 0.0
      %374 = vmatpush1.msra.mxu0 0.0
      %375 = vmatprep.subr.mxu0 0.0
      %376 = vmatpush1.msra.mxu0 0.0
      %377 = vmatprep.subr.mxu0 0.0
      %378 = vmatpush1.msra.mxu0 0.0
      %379 = vmatprep.subr.mxu0 0.0
      %380 = vmatpush1.msra.mxu0 0.0
      %381 = vmatprep.subr.mxu0 0.0
      %382 = vmatpush1.msra.mxu0 0.0
      %383 = vmatprep.subr.mxu0 0.0
      %384 = vmatpush1.msra.mxu0 0.0
      %385 = vmatprep.subr.mxu0 0.0
      %386 = vmatpush1.msra.mxu0 %v348
      %387 = vmatprep.subr.mxu0 0.0
      %388 = vmatpush1.msra.mxu0 %v347
      %389 = vmatprep.subr.mxu0 0.0
      %390 = vmatpush1.msra.mxu0 %v346
      %391 = vmatprep.subr.mxu0 0.0
      %392 = vmatpush1.msra.mxu0 %v345
      %393 = vmatprep.subr.mxu0 0.0
      %394 = vmatpush2.msra.mxu0 0.0
      %395 = vmatprep.subr.mxu0 0.0
      %396 = vmatpush2.msra.mxu0 0.0
      %397 = vmatprep.subr.mxu0 0.0
      %398 = vmatpush2.msra.mxu0 0.0
      %399 = vmatprep.subr.mxu0 0.0
      %400 = vmatpush2.msra.mxu0 0.0
      %401 = vmatprep.subr.mxu0 0.0
      %402 = vmatpush2.msra.mxu0 0.0
      %403 = vmatprep.subr.mxu0 0.0
      %404 = vmatpush2.msra.mxu0 0.0
      %405 = vmatprep.subr.mxu0 0.0
      %406 = vmatpush2.msra.mxu0 0.0
      %407 = vmatprep.subr.mxu0 0.0
      %408 = vmatpush2.msra.mxu0 0.0
      %409 = vmatprep.subr.mxu0 0.0
      %410 = vmatpush2.msra.mxu0 0.0
      %411 = vmatprep.subr.mxu0 0.0
      %412 = vmatpush2.msra.mxu0 0.0
      %413 = vmatprep.subr.mxu0 0.0
      %414 = vmatpush2.msra.mxu0 0.0
      %415 = vmatprep.subr.mxu0 0.0
      %416 = vmatpush2.msra.mxu0 0.0
      %417 = vmatprep.subr.mxu0 0.0
      %418 = vmatpush2.msra.mxu0 0.0
      %419 = vmatprep.subr.mxu0 0.0
      %420 = vmatpush2.msra.mxu0 0.0
      %421 = vmatprep.subr.mxu0 0.0
      %422 = vmatpush2.msra.mxu0 0.0
      %423 = vmatprep.subr.mxu0 0.0
      %424 = vmatpush2.msra.mxu0 0.0
      %425 = vmatprep.mubr.f32.mxu0 0.0
      %426 = vmatmul.mubr.f32.gmra.mxu0 %v359
      %v427 = vpop.f32.mrf.mxu0
      %v428 = vadd.f32 %v355, %v427
      %v429 = vpop.f32.mrf.mxu0
      %430 = vdwg.mxu0
      %v431 = vld [vmem:[%s340] sm:$0x7]
      %v433 = vsel %vm357, %v431, 0
      %435 = vmatprep.subr.mxu0 0.0
      %436 = vmatpush1.msra.mxu0 0.0
      %437 = vmatprep.subr.mxu0 0.0
      %438 = vmatpush1.msra.mxu0 0.0
      %439 = vmatprep.subr.mxu0 0.0
      %440 = vmatpush1.msra.mxu0 0.0
      %441 = vmatprep.subr.mxu0 0.0
      %442 = vmatpush1.msra.mxu0 0.0
      %443 = vmatprep.subr.mxu0 0.0
      %444 = vmatpush1.msra.mxu0 0.0
      %445 = vmatprep.subr.mxu0 0.0
      %446 = vmatpush1.msra.mxu0 0.0
      %447 = vmatprep.subr.mxu0 0.0
      %448 = vmatpush1.msra.mxu0 0.0
      %449 = vmatprep.subr.mxu0 0.0
      %450 = vmatpush1.msra.mxu0 0.0
      %451 = vmatprep.subr.mxu0 0.0
      %452 = vmatpush1.msra.mxu0 0.0
      %453 = vmatprep.subr.mxu0 0.0
      %454 = vmatpush1.msra.mxu0 0.0
      %455 = vmatprep.subr.mxu0 0.0
      %456 = vmatpush1.msra.mxu0 0.0
      %457 = vmatprep.subr.mxu0 0.0
      %458 = vmatpush1.msra.mxu0 0.0
      %459 = vmatprep.subr.mxu0 0.0
      %460 = vmatpush1.msra.mxu0 %v348
      %461 = vmatprep.subr.mxu0 0.0
      %462 = vmatpush1.msra.mxu0 %v347
      %463 = vmatprep.subr.mxu0 0.0
      %464 = vmatpush1.msra.mxu0 %v346
      %465 = vmatprep.subr.mxu0 0.0
      %466 = vmatpush1.msra.mxu0 %v345
      %467 = vmatprep.subr.mxu0 0.0
      %468 = vmatpush2.msra.mxu0 0.0
      %469 = vmatprep.subr.mxu0 0.0
      %470 = vmatpush2.msra.mxu0 0.0
      %471 = vmatprep.subr.mxu0 0.0
      %472 = vmatpush2.msra.mxu0 0.0
      %473 = vmatprep.subr.mxu0 0.0
      %474 = vmatpush2.msra.mxu0 0.0
      %475 = vmatprep.subr.mxu0 0.0
      %476 = vmatpush2.msra.mxu0 0.0
      %477 = vmatprep.subr.mxu0 0.0
      %478 = vmatpush2.msra.mxu0 0.0
      %479 = vmatprep.subr.mxu0 0.0
      %480 = vmatpush2.msra.mxu0 0.0
      %481 = vmatprep.subr.mxu0 0.0
      %482 = vmatpush2.msra.mxu0 0.0
      %483 = vmatprep.subr.mxu0 0.0
      %484 = vmatpush2.msra.mxu0 0.0
      %485 = vmatprep.subr.mxu0 0.0
      %486 = vmatpush2.msra.mxu0 0.0
      %487 = vmatprep.subr.mxu0 0.0
      %488 = vmatpush2.msra.mxu0 0.0
      %489 = vmatprep.subr.mxu0 0.0
      %490 = vmatpush2.msra.mxu0 0.0
      %491 = vmatprep.subr.mxu0 0.0
      %492 = vmatpush2.msra.mxu0 0.0
      %493 = vmatprep.subr.mxu0 0.0
      %494 = vmatpush2.msra.mxu0 0.0
      %495 = vmatprep.subr.mxu0 0.0
      %496 = vmatpush2.msra.mxu0 0.0
      %497 = vmatprep.subr.mxu0 0.0
      %498 = vmatpush2.msra.mxu0 0.0
      %499 = vmatprep.mubr.f32.mxu0 0.0
      %500 = vmatmul.mubr.f32.gmra.mxu0 %v433
      %v501 = vpop.f32.mrf.mxu0
      %v502 = vadd.f32 %v355, %v501
      %v503 = vpop.f32.mrf.mxu0
      %504 = vdwg.mxu0
      %v505 = vld [vmem:[%s6] sm:$0xff]
      %v506 = vld [vmem:[%s6 + $0x8] sm:$0xff]
      %v507 = vld [vmem:[%s6 + $0x10] sm:$0xff]
      %v508 = vld [vmem:[%s7] sm:$0xff]
      %v509 = vld [vmem:[%s7 + $0x8] sm:$0xff]
      %v510 = vld [vmem:[%s7 + $0x10] sm:$0xff]
      %512 = vrot.lane.b32.xlu0 %v502, 96
      %v513 = vpop.permute.xlu0 %512
      %vm514 = vcmask 23552
      %v516 = vsel %vm514, %v505, 0
      %v519 = vsel %vm514, %v506, 0
      %v522 = vsel %vm514, %v507, 0
      %vm524 = vcmask 1042432
      %v525 = vsel %vm524, %v513, 0
      %527 = vmatprep.subr.mxu0 0.0
      %528 = vmatpush1.msra.mxu0 0.0
      %529 = vmatprep.subr.mxu0 0.0
      %530 = vmatpush1.msra.mxu0 0.0
      %531 = vmatprep.subr.mxu0 0.0
      %532 = vmatpush1.msra.mxu0 0.0
      %533 = vmatprep.subr.mxu0 0.0
      %534 = vmatpush1.msra.mxu0 0.0
      %535 = vmatprep.subr.mxu0 0.0
      %536 = vmatpush1.msra.mxu0 0.0
      %537 = vmatprep.subr.mxu0 0.0
      %538 = vmatpush1.msra.mxu0 0.0
      %539 = vmatprep.subr.mxu0 0.0
      %540 = vmatpush1.msra.mxu0 0.0
      %541 = vmatprep.subr.mxu0 0.0
      %542 = vmatpush1.msra.mxu0 0.0
      %543 = vmatprep.subr.mxu0 0.0
      %544 = vmatpush1.msra.mxu0 0.0
      %545 = vmatprep.subr.mxu0 0.0
      %546 = vmatpush1.msra.mxu0 0.0
      %547 = vmatprep.subr.mxu0 0.0
      %548 = vmatpush1.msra.mxu0 0.0
      %549 = vmatprep.subr.mxu0 0.0
      %550 = vmatpush1.msra.mxu0 0.0
      %551 = vmatprep.subr.mxu0 0.0
      %552 = vmatpush1.msra.mxu0 0.0
      %553 = vmatprep.subr.mxu0 0.0
      %554 = vmatpush1.msra.mxu0 0.0
      %555 = vmatprep.subr.mxu0 0.0
      %556 = vmatpush1.msra.mxu0 0.0
      %557 = vmatprep.subr.mxu0 0.0
      %558 = vmatpush1.msra.mxu0 %v525
      %559 = vmatprep.subr.mxu0 0.0
      %560 = vmatpush2.msra.mxu0 0.0
      %561 = vmatprep.subr.mxu0 0.0
      %562 = vmatpush2.msra.mxu0 0.0
      %563 = vmatprep.subr.mxu0 0.0
      %564 = vmatpush2.msra.mxu0 0.0
      %565 = vmatprep.subr.mxu0 0.0
      %566 = vmatpush2.msra.mxu0 0.0
      %567 = vmatprep.subr.mxu0 0.0
      %568 = vmatpush2.msra.mxu0 0.0
      %569 = vmatprep.subr.mxu0 0.0
      %570 = vmatpush2.msra.mxu0 0.0
      %571 = vmatprep.subr.mxu0 0.0
      %572 = vmatpush2.msra.mxu0 0.0
      %573 = vmatprep.subr.mxu0 0.0
      %574 = vmatpush2.msra.mxu0 0.0
      %575 = vmatprep.subr.mxu0 0.0
      %576 = vmatpush2.msra.mxu0 0.0
      %577 = vmatprep.subr.mxu0 0.0
      %578 = vmatpush2.msra.mxu0 0.0
      %579 = vmatprep.subr.mxu0 0.0
      %580 = vmatpush2.msra.mxu0 0.0
      %581 = vmatprep.subr.mxu0 0.0
      %582 = vmatpush2.msra.mxu0 0.0
      %583 = vmatprep.subr.mxu0 0.0
      %584 = vmatpush2.msra.mxu0 0.0
      %585 = vmatprep.subr.mxu0 0.0
      %586 = vmatpush2.msra.mxu0 0.0
      %587 = vmatprep.subr.mxu0 0.0
      %588 = vmatpush2.msra.mxu0 0.0
      %589 = vmatprep.subr.mxu0 0.0
      %590 = vmatpush2.msra.mxu0 0.0
      %591 = vmatprep.mubr.f32.mxu0 0.0
      %592 = vmatmul.mubr.f32.gmra.mxu0 %v516
      %v593 = vpop.f32.mrf.mxu0
      %v594 = vadd.f32 0.0, %v593
      %v595 = vpop.f32.mrf.mxu0
      %596 = vmatprep.mubr.f32.mxu0 0.0
      %597 = vmatmul.mubr.f32.gmra.mxu0 %v519
      %v598 = vpop.f32.mrf.mxu0
      %v599 = vadd.f32 0.0, %v598
      %v600 = vpop.f32.mrf.mxu0
      %601 = vmatprep.mubr.f32.mxu0 0.0
      %602 = vmatmul.mubr.f32.gmra.mxu0 %v522
      %v603 = vpop.f32.mrf.mxu0
      %v604 = vadd.f32 0.0, %v603
      %v605 = vpop.f32.mrf.mxu0
      %606 = vdwg.mxu0
      %v607 = vmul.f32 %v594, %v508
      %v608 = vmul.f32 %v599, %v509
      %v609 = vmul.f32 %v604, %v510
      %610 = vrot.lane.b32.xlu0 %v502, 64
      %v611 = vpop.permute.xlu0 %610
      %v612 = vsel %vm524, %v611, 0
      %614 = vmatprep.subr.mxu0 0.0
      %615 = vmatpush1.msra.mxu0 0.0
      %616 = vmatprep.subr.mxu0 0.0
      %617 = vmatpush1.msra.mxu0 0.0
      %618 = vmatprep.subr.mxu0 0.0
      %619 = vmatpush1.msra.mxu0 0.0
      %620 = vmatprep.subr.mxu0 0.0
      %621 = vmatpush1.msra.mxu0 0.0
      %622 = vmatprep.subr.mxu0 0.0
      %623 = vmatpush1.msra.mxu0 0.0
      %624 = vmatprep.subr.mxu0 0.0
      %625 = vmatpush1.msra.mxu0 0.0
      %626 = vmatprep.subr.mxu0 0.0
      %627 = vmatpush1.msra.mxu0 0.0
      %628 = vmatprep.subr.mxu0 0.0
      %629 = vmatpush1.msra.mxu0 0.0
      %630 = vmatprep.subr.mxu0 0.0
      %631 = vmatpush1.msra.mxu0 0.0
      %632 = vmatprep.subr.mxu0 0.0
      %633 = vmatpush1.msra.mxu0 0.0
      %634 = vmatprep.subr.mxu0 0.0
      %635 = vmatpush1.msra.mxu0 0.0
      %636 = vmatprep.subr.mxu0 0.0
      %637 = vmatpush1.msra.mxu0 0.0
      %638 = vmatprep.subr.mxu0 0.0
      %639 = vmatpush1.msra.mxu0 0.0
      %640 = vmatprep.subr.mxu0 0.0
      %641 = vmatpush1.msra.mxu0 0.0
      %642 = vmatprep.subr.mxu0 0.0
      %643 = vmatpush1.msra.mxu0 0.0
      %644 = vmatprep.subr.mxu0 0.0
      %645 = vmatpush1.msra.mxu0 %v612
      %646 = vmatprep.subr.mxu0 0.0
      %647 = vmatpush2.msra.mxu0 0.0
      %648 = vmatprep.subr.mxu0 0.0
      %649 = vmatpush2.msra.mxu0 0.0
      %650 = vmatprep.subr.mxu0 0.0
      %651 = vmatpush2.msra.mxu0 0.0
      %652 = vmatprep.subr.mxu0 0.0
      %653 = vmatpush2.msra.mxu0 0.0
      %654 = vmatprep.subr.mxu0 0.0
      %655 = vmatpush2.msra.mxu0 0.0
      %656 = vmatprep.subr.mxu0 0.0
      %657 = vmatpush2.msra.mxu0 0.0
      %658 = vmatprep.subr.mxu0 0.0
      %659 = vmatpush2.msra.mxu0 0.0
      %660 = vmatprep.subr.mxu0 0.0
      %661 = vmatpush2.msra.mxu0 0.0
      %662 = vmatprep.subr.mxu0 0.0
      %663 = vmatpush2.msra.mxu0 0.0
      %664 = vmatprep.subr.mxu0 0.0
      %665 = vmatpush2.msra.mxu0 0.0
      %666 = vmatprep.subr.mxu0 0.0
      %667 = vmatpush2.msra.mxu0 0.0
      %668 = vmatprep.subr.mxu0 0.0
      %669 = vmatpush2.msra.mxu0 0.0
      %670 = vmatprep.subr.mxu0 0.0
      %671 = vmatpush2.msra.mxu0 0.0
      %672 = vmatprep.subr.mxu0 0.0
      %673 = vmatpush2.msra.mxu0 0.0
      %674 = vmatprep.subr.mxu0 0.0
      %675 = vmatpush2.msra.mxu0 0.0
      %676 = vmatprep.subr.mxu0 0.0
      %677 = vmatpush2.msra.mxu0 0.0
      %678 = vmatprep.mubr.f32.mxu0 0.0
      %679 = vmatmul.mubr.f32.gmra.mxu0 %v516
      %v680 = vpop.f32.mrf.mxu0
      %v681 = vadd.f32 0.0, %v680
      %v682 = vpop.f32.mrf.mxu0
      %683 = vmatprep.mubr.f32.mxu0 0.0
      %684 = vmatmul.mubr.f32.gmra.mxu0 %v519
      %v685 = vpop.f32.mrf.mxu0
      %v686 = vadd.f32 0.0, %v685
      %v687 = vpop.f32.mrf.mxu0
      %688 = vmatprep.mubr.f32.mxu0 0.0
      %689 = vmatmul.mubr.f32.gmra.mxu0 %v522
      %v690 = vpop.f32.mrf.mxu0
      %v691 = vadd.f32 0.0, %v690
      %v692 = vpop.f32.mrf.mxu0
      %693 = vdwg.mxu0
      %v694 = vmul.f32 %v681, %v508
      %v695 = vmul.f32 %v686, %v509
      %v696 = vmul.f32 %v691, %v510
      %v698 = vsel %vm357, %v428, 0
      %v701 = vsel %vm357, %v607, 0
      %v704 = vsel %vm357, %v608, 0
      %v707 = vsel %vm357, %v609, 0
      %709 = vmatprep.subr.mxu0 0.0
      %710 = vmatpush1.xpose.msra.mxu0 0.0
      %711 = vmatprep.subr.mxu0 0.0
      %712 = vmatpush1.xpose.msra.mxu0 0.0
      %713 = vmatprep.subr.mxu0 0.0
      %714 = vmatpush1.xpose.msra.mxu0 0.0
      %715 = vmatprep.subr.mxu0 0.0
      %716 = vmatpush1.xpose.msra.mxu0 0.0
      %717 = vmatprep.subr.mxu0 0.0
      %718 = vmatpush1.xpose.msra.mxu0 0.0
      %719 = vmatprep.subr.mxu0 0.0
      %720 = vmatpush1.xpose.msra.mxu0 0.0
      %721 = vmatprep.subr.mxu0 0.0
      %722 = vmatpush1.xpose.msra.mxu0 0.0
      %723 = vmatprep.subr.mxu0 0.0
      %724 = vmatpush1.xpose.msra.mxu0 0.0
      %725 = vmatprep.subr.mxu0 0.0
      %726 = vmatpush1.xpose.msra.mxu0 0.0
      %727 = vmatprep.subr.mxu0 0.0
      %728 = vmatpush1.xpose.msra.mxu0 0.0
      %729 = vmatprep.subr.mxu0 0.0
      %730 = vmatpush1.xpose.msra.mxu0 0.0
      %731 = vmatprep.subr.mxu0 0.0
      %732 = vmatpush1.xpose.msra.mxu0 0.0
      %733 = vmatprep.subr.mxu0 0.0
      %734 = vmatpush1.xpose.msra.mxu0 0.0
      %735 = vmatprep.subr.mxu0 0.0
      %736 = vmatpush1.xpose.msra.mxu0 %v707
      %737 = vmatprep.subr.mxu0 0.0
      %738 = vmatpush1.xpose.msra.mxu0 %v704
      %739 = vmatprep.subr.mxu0 0.0
      %740 = vmatpush1.xpose.msra.mxu0 %v701
      %741 = vmatprep.subr.mxu0 0.0
      %742 = vmatpush2.xpose.msra.mxu0 0.0
      %743 = vmatprep.subr.mxu0 0.0
      %744 = vmatpush2.xpose.msra.mxu0 0.0
      %745 = vmatprep.subr.mxu0 0.0
      %746 = vmatpush2.xpose.msra.mxu0 0.0
      %747 = vmatprep.subr.mxu0 0.0
      %748 = vmatpush2.xpose.msra.mxu0 0.0
      %749 = vmatprep.subr.mxu0 0.0
      %750 = vmatpush2.xpose.msra.mxu0 0.0
      %751 = vmatprep.subr.mxu0 0.0
      %752 = vmatpush2.xpose.msra.mxu0 0.0
      %753 = vmatprep.subr.mxu0 0.0
      %754 = vmatpush2.xpose.msra.mxu0 0.0
      %755 = vmatprep.subr.mxu0 0.0
      %756 = vmatpush2.xpose.msra.mxu0 0.0
      %757 = vmatprep.subr.mxu0 0.0
      %758 = vmatpush2.xpose.msra.mxu0 0.0
      %759 = vmatprep.subr.mxu0 0.0
      %760 = vmatpush2.xpose.msra.mxu0 0.0
      %761 = vmatprep.subr.mxu0 0.0
      %762 = vmatpush2.xpose.msra.mxu0 0.0
      %763 = vmatprep.subr.mxu0 0.0
      %764 = vmatpush2.xpose.msra.mxu0 0.0
      %765 = vmatprep.subr.mxu0 0.0
      %766 = vmatpush2.xpose.msra.mxu0 0.0
      %767 = vmatprep.subr.mxu0 0.0
      %768 = vmatpush2.xpose.msra.mxu0 0.0
      %769 = vmatprep.subr.mxu0 0.0
      %770 = vmatpush2.xpose.msra.mxu0 0.0
      %771 = vmatprep.subr.mxu0 0.0
      %772 = vmatpush2.xpose.msra.mxu0 0.0
      %773 = vmatprep.mubr.f32.mxu0 0.0
      %774 = vmatmul.mubr.f32.gmra.mxu0 %v698
      %v775 = vpop.f32.mrf.mxu0
      %v776 = vadd.f32 0.0, %v775
      %v777 = vpop.f32.mrf.mxu0
      %778 = vdwg.mxu0
      %v779 = vmul.f32 %v776, 0.5
      %vm780 = vcmask 193536
      %v781 = vsel %vm780, %v779, -inf
      %782 = vmax.xlane.f32.xlu0 %v781
      %v783 = vpop.xlane.xlu0 %782
      %v784 = vsub.f32 %v779, %v783
      %v785 = vmul.f32 %v784, 1.442695
      %v786 = vpow.pop %v785
      %v787 = vld [vmem:[%s8] sm:$0xff]
      %v788 = vld [vmem:[%s8 + $0x8] sm:$0xff]
      %v789 = vld [vmem:[%s8 + $0x10] sm:$0xff]
      %vm790 = vcmask 195584
      %v792 = vsel %vm790, %v786, 0
      %794 = vmatprep.subr.mxu0 0.0
      %795 = vmatpush1.msra.mxu0 0.0
      %796 = vmatprep.subr.mxu0 0.0
      %797 = vmatpush1.msra.mxu0 0.0
      %798 = vmatprep.subr.mxu0 0.0
      %799 = vmatpush1.msra.mxu0 0.0
      %800 = vmatprep.subr.mxu0 0.0
      %801 = vmatpush1.msra.mxu0 0.0
      %802 = vmatprep.subr.mxu0 0.0
      %803 = vmatpush1.msra.mxu0 0.0
      %804 = vmatprep.subr.mxu0 0.0
      %805 = vmatpush1.msra.mxu0 0.0
      %806 = vmatprep.subr.mxu0 0.0
      %807 = vmatpush1.msra.mxu0 0.0
      %808 = vmatprep.subr.mxu0 0.0
      %809 = vmatpush1.msra.mxu0 0.0
      %810 = vmatprep.subr.mxu0 0.0
      %811 = vmatpush1.msra.mxu0 0.0
      %812 = vmatprep.subr.mxu0 0.0
      %813 = vmatpush1.msra.mxu0 0.0
      %814 = vmatprep.subr.mxu0 0.0
      %815 = vmatpush1.msra.mxu0 0.0
      %816 = vmatprep.subr.mxu0 0.0
      %817 = vmatpush1.msra.mxu0 0.0
      %818 = vmatprep.subr.mxu0 0.0
      %819 = vmatpush1.msra.mxu0 0.0
      %820 = vmatprep.subr.mxu0 0.0
      %821 = vmatpush1.msra.mxu0 %v789
      %822 = vmatprep.subr.mxu0 0.0
      %823 = vmatpush1.msra.mxu0 %v788
      %824 = vmatprep.subr.mxu0 0.0
      %825 = vmatpush1.msra.mxu0 %v787
      %826 = vmatprep.subr.mxu0 0.0
      %827 = vmatpush2.msra.mxu0 0.0
      %828 = vmatprep.subr.mxu0 0.0
      %829 = vmatpush2.msra.mxu0 0.0
      %830 = vmatprep.subr.mxu0 0.0
      %831 = vmatpush2.msra.mxu0 0.0
      %832 = vmatprep.subr.mxu0 0.0
      %833 = vmatpush2.msra.mxu0 0.0
      %834 = vmatprep.subr.mxu0 0.0
      %835 = vmatpush2.msra.mxu0 0.0
      %836 = vmatprep.subr.mxu0 0.0
      %837 = vmatpush2.msra.mxu0 0.0
      %838 = vmatprep.subr.mxu0 0.0
      %839 = vmatpush2.msra.mxu0 0.0
      %840 = vmatprep.subr.mxu0 0.0
      %841 = vmatpush2.msra.mxu0 0.0
      %842 = vmatprep.subr.mxu0 0.0
      %843 = vmatpush2.msra.mxu0 0.0
      %844 = vmatprep.subr.mxu0 0.0
      %845 = vmatpush2.msra.mxu0 0.0
      %846 = vmatprep.subr.mxu0 0.0
      %847 = vmatpush2.msra.mxu0 0.0
      %848 = vmatprep.subr.mxu0 0.0
      %849 = vmatpush2.msra.mxu0 0.0
      %850 = vmatprep.subr.mxu0 0.0
      %851 = vmatpush2.msra.mxu0 0.0
      %852 = vmatprep.subr.mxu0 0.0
      %853 = vmatpush2.msra.mxu0 0.0
      %854 = vmatprep.subr.mxu0 0.0
      %855 = vmatpush2.msra.mxu0 0.0
      %856 = vmatprep.subr.mxu0 0.0
      %857 = vmatpush2.msra.mxu0 0.0
      %858 = vmatprep.mubr.f32.mxu0 0.0
      %859 = vmatmul.mubr.f32.gmra.mxu0 %v792
      %v860 = vpop.f32.mrf.mxu0
      %v861 = vadd.f32 0.0, %v860
      %v862 = vpop.f32.mrf.mxu0
      %863 = vdwg.mxu0
      %vm864 = vcmask 64512
      %v866 = vsel %vm864, %v861, 0
      %v869 = vsel %vm864, %v787, 0
      %v872 = vsel %vm864, %v788, 0
      %v875 = vsel %vm864, %v789, 0
      %877 = vmatprep.subr.mxu0 0.0
      %878 = vmatpush1.xpose.msra.mxu0 0.0
      %879 = vmatprep.subr.mxu0 0.0
      %880 = vmatpush1.xpose.msra.mxu0 0.0
      %881 = vmatprep.subr.mxu0 0.0
      %882 = vmatpush1.xpose.msra.mxu0 0.0
      %883 = vmatprep.subr.mxu0 0.0
      %884 = vmatpush1.xpose.msra.mxu0 0.0
      %885 = vmatprep.subr.mxu0 0.0
      %886 = vmatpush1.xpose.msra.mxu0 0.0
      %887 = vmatprep.subr.mxu0 0.0
      %888 = vmatpush1.xpose.msra.mxu0 0.0
      %889 = vmatprep.subr.mxu0 0.0
      %890 = vmatpush1.xpose.msra.mxu0 0.0
      %891 = vmatprep.subr.mxu0 0.0
      %892 = vmatpush1.xpose.msra.mxu0 0.0
      %893 = vmatprep.subr.mxu0 0.0
      %894 = vmatpush1.xpose.msra.mxu0 0.0
      %895 = vmatprep.subr.mxu0 0.0
      %896 = vmatpush1.xpose.msra.mxu0 0.0
      %897 = vmatprep.subr.mxu0 0.0
      %898 = vmatpush1.xpose.msra.mxu0 0.0
      %899 = vmatprep.subr.mxu0 0.0
      %900 = vmatpush1.xpose.msra.mxu0 0.0
      %901 = vmatprep.subr.mxu0 0.0
      %902 = vmatpush1.xpose.msra.mxu0 0.0
      %903 = vmatprep.subr.mxu0 0.0
      %904 = vmatpush1.xpose.msra.mxu0 %v875
      %905 = vmatprep.subr.mxu0 0.0
      %906 = vmatpush1.xpose.msra.mxu0 %v872
      %907 = vmatprep.subr.mxu0 0.0
      %908 = vmatpush1.xpose.msra.mxu0 %v869
      %909 = vmatprep.subr.mxu0 0.0
      %910 = vmatpush2.xpose.msra.mxu0 0.0
      %911 = vmatprep.subr.mxu0 0.0
      %912 = vmatpush2.xpose.msra.mxu0 0.0
      %913 = vmatprep.subr.mxu0 0.0
      %914 = vmatpush2.xpose.msra.mxu0 0.0
      %915 = vmatprep.subr.mxu0 0.0
      %916 = vmatpush2.xpose.msra.mxu0 0.0
      %917 = vmatprep.subr.mxu0 0.0
      %918 = vmatpush2.xpose.msra.mxu0 0.0
      %919 = vmatprep.subr.mxu0 0.0
      %920 = vmatpush2.xpose.msra.mxu0 0.0
      %921 = vmatprep.subr.mxu0 0.0
      %922 = vmatpush2.xpose.msra.mxu0 0.0
      %923 = vmatprep.subr.mxu0 0.0
      %924 = vmatpush2.xpose.msra.mxu0 0.0
      %925 = vmatprep.subr.mxu0 0.0
      %926 = vmatpush2.xpose.msra.mxu0 0.0
      %927 = vmatprep.subr.mxu0 0.0
      %928 = vmatpush2.xpose.msra.mxu0 0.0
      %929 = vmatprep.subr.mxu0 0.0
      %930 = vmatpush2.xpose.msra.mxu0 0.0
      %931 = vmatprep.subr.mxu0 0.0
      %932 = vmatpush2.xpose.msra.mxu0 0.0
      %933 = vmatprep.subr.mxu0 0.0
      %934 = vmatpush2.xpose.msra.mxu0 0.0
      %935 = vmatprep.subr.mxu0 0.0
      %936 = vmatpush2.xpose.msra.mxu0 0.0
      %937 = vmatprep.subr.mxu0 0.0
      %938 = vmatpush2.xpose.msra.mxu0 0.0
      %939 = vmatprep.subr.mxu0 0.0
      %940 = vmatpush2.xpose.msra.mxu0 0.0
      %941 = vmatprep.mubr.f32.mxu0 0.0
      %942 = vmatmul.mubr.f32.gmra.mxu0 %v866
      %v943 = vpop.f32.mrf.mxu0
      %v944 = vadd.f32 1e-20, %v943
      %v945 = vpop.f32.mrf.mxu0
      %946 = vdwg.mxu0
      %v947 = vrcp.pop %v944
      %v948 = vmul.f32 %v786, %v947
      %v950 = vsel %vm790, %v948, 0
      %952 = vmatprep.subr.mxu0 0.0
      %953 = vmatpush1.msra.mxu0 0.0
      %954 = vmatprep.subr.mxu0 0.0
      %955 = vmatpush1.msra.mxu0 0.0
      %956 = vmatprep.subr.mxu0 0.0
      %957 = vmatpush1.msra.mxu0 0.0
      %958 = vmatprep.subr.mxu0 0.0
      %959 = vmatpush1.msra.mxu0 0.0
      %960 = vmatprep.subr.mxu0 0.0
      %961 = vmatpush1.msra.mxu0 0.0
      %962 = vmatprep.subr.mxu0 0.0
      %963 = vmatpush1.msra.mxu0 0.0
      %964 = vmatprep.subr.mxu0 0.0
      %965 = vmatpush1.msra.mxu0 0.0
      %966 = vmatprep.subr.mxu0 0.0
      %967 = vmatpush1.msra.mxu0 0.0
      %968 = vmatprep.subr.mxu0 0.0
      %969 = vmatpush1.msra.mxu0 0.0
      %970 = vmatprep.subr.mxu0 0.0
      %971 = vmatpush1.msra.mxu0 0.0
      %972 = vmatprep.subr.mxu0 0.0
      %973 = vmatpush1.msra.mxu0 0.0
      %974 = vmatprep.subr.mxu0 0.0
      %975 = vmatpush1.msra.mxu0 0.0
      %976 = vmatprep.subr.mxu0 0.0
      %977 = vmatpush1.msra.mxu0 0.0
      %978 = vmatprep.subr.mxu0 0.0
      %979 = vmatpush1.msra.mxu0 %v696
      %980 = vmatprep.subr.mxu0 0.0
      %981 = vmatpush1.msra.mxu0 %v695
      %982 = vmatprep.subr.mxu0 0.0
      %983 = vmatpush1.msra.mxu0 %v694
      %984 = vmatprep.subr.mxu0 0.0
      %985 = vmatpush2.msra.mxu0 0.0
      %986 = vmatprep.subr.mxu0 0.0
      %987 = vmatpush2.msra.mxu0 0.0
      %988 = vmatprep.subr.mxu0 0.0
      %989 = vmatpush2.msra.mxu0 0.0
      %990 = vmatprep.subr.mxu0 0.0
      %991 = vmatpush2.msra.mxu0 0.0
      %992 = vmatprep.subr.mxu0 0.0
      %993 = vmatpush2.msra.mxu0 0.0
      %994 = vmatprep.subr.mxu0 0.0
      %995 = vmatpush2.msra.mxu0 0.0
      %996 = vmatprep.subr.mxu0 0.0
      %997 = vmatpush2.msra.mxu0 0.0
      %998 = vmatprep.subr.mxu0 0.0
      %999 = vmatpush2.msra.mxu0 0.0
      %1000 = vmatprep.subr.mxu0 0.0
      %1001 = vmatpush2.msra.mxu0 0.0
      %1002 = vmatprep.subr.mxu0 0.0
      %1003 = vmatpush2.msra.mxu0 0.0
      %1004 = vmatprep.subr.mxu0 0.0
      %1005 = vmatpush2.msra.mxu0 0.0
      %1006 = vmatprep.subr.mxu0 0.0
      %1007 = vmatpush2.msra.mxu0 0.0
      %1008 = vmatprep.subr.mxu0 0.0
      %1009 = vmatpush2.msra.mxu0 0.0
      %1010 = vmatprep.subr.mxu0 0.0
      %1011 = vmatpush2.msra.mxu0 0.0
      %1012 = vmatprep.subr.mxu0 0.0
      %1013 = vmatpush2.msra.mxu0 0.0
      %1014 = vmatprep.subr.mxu0 0.0
      %1015 = vmatpush2.msra.mxu0 0.0
      %1016 = vmatprep.mubr.f32.mxu0 0.0
      %1017 = vmatmul.mubr.f32.gmra.mxu0 %v950
      %v1018 = vpop.f32.mrf.mxu0
      %v1019 = vadd.f32 0.0, %v1018
      %v1020 = vpop.f32.mrf.mxu0
      %1021 = vdwg.mxu0
      %v1022 = vld [vmem:[%s4] sm:$0xff]
      %v1023 = vld [vmem:[%s4 + $0x8] sm:$0xff]
      %v1024 = vld [vmem:[%s4 + $0x10] sm:$0xff]
      %v1025 = vld [vmem:[%s4 + $0x18] sm:$0xff]
      %v1026 = vld [vmem:[%s5] sm:$0x1]
      %v1028 = vlaneseq
      %v1029 = vshrl.u32 %v1028, 7
      %v1030 = vsub.s32 0, %v1029
      %v1031 = vrot.slane %v1026, %v1030
      %v1034 = vsel %vm357, %v1019, 0
      %1036 = vmatprep.subr.mxu0 0.0
      %1037 = vmatpush1.msra.mxu0 0.0
      %1038 = vmatprep.subr.mxu0 0.0
      %1039 = vmatpush1.msra.mxu0 0.0
      %1040 = vmatprep.subr.mxu0 0.0
      %1041 = vmatpush1.msra.mxu0 0.0
      %1042 = vmatprep.subr.mxu0 0.0
      %1043 = vmatpush1.msra.mxu0 0.0
      %1044 = vmatprep.subr.mxu0 0.0
      %1045 = vmatpush1.msra.mxu0 0.0
      %1046 = vmatprep.subr.mxu0 0.0
      %1047 = vmatpush1.msra.mxu0 0.0
      %1048 = vmatprep.subr.mxu0 0.0
      %1049 = vmatpush1.msra.mxu0 0.0
      %1050 = vmatprep.subr.mxu0 0.0
      %1051 = vmatpush1.msra.mxu0 0.0
      %1052 = vmatprep.subr.mxu0 0.0
      %1053 = vmatpush1.msra.mxu0 0.0
      %1054 = vmatprep.subr.mxu0 0.0
      %1055 = vmatpush1.msra.mxu0 0.0
      %1056 = vmatprep.subr.mxu0 0.0
      %1057 = vmatpush1.msra.mxu0 0.0
      %1058 = vmatprep.subr.mxu0 0.0
      %1059 = vmatpush1.msra.mxu0 0.0
      %1060 = vmatprep.subr.mxu0 0.0
      %1061 = vmatpush1.msra.mxu0 %v1025
      %1062 = vmatprep.subr.mxu0 0.0
      %1063 = vmatpush1.msra.mxu0 %v1024
      %1064 = vmatprep.subr.mxu0 0.0
      %1065 = vmatpush1.msra.mxu0 %v1023
      %1066 = vmatprep.subr.mxu0 0.0
      %1067 = vmatpush1.msra.mxu0 %v1022
      %1068 = vmatprep.subr.mxu0 0.0
      %1069 = vmatpush2.msra.mxu0 0.0
      %1070 = vmatprep.subr.mxu0 0.0
      %1071 = vmatpush2.msra.mxu0 0.0
      %1072 = vmatprep.subr.mxu0 0.0
      %1073 = vmatpush2.msra.mxu0 0.0
      %1074 = vmatprep.subr.mxu0 0.0
      %1075 = vmatpush2.msra.mxu0 0.0
      %1076 = vmatprep.subr.mxu0 0.0
      %1077 = vmatpush2.msra.mxu0 0.0
      %1078 = vmatprep.subr.mxu0 0.0
      %1079 = vmatpush2.msra.mxu0 0.0
      %1080 = vmatprep.subr.mxu0 0.0
      %1081 = vmatpush2.msra.mxu0 0.0
      %1082 = vmatprep.subr.mxu0 0.0
      %1083 = vmatpush2.msra.mxu0 0.0
      %1084 = vmatprep.subr.mxu0 0.0
      %1085 = vmatpush2.msra.mxu0 0.0
      %1086 = vmatprep.subr.mxu0 0.0
      %1087 = vmatpush2.msra.mxu0 0.0
      %1088 = vmatprep.subr.mxu0 0.0
      %1089 = vmatpush2.msra.mxu0 0.0
      %1090 = vmatprep.subr.mxu0 0.0
      %1091 = vmatpush2.msra.mxu0 0.0
      %1092 = vmatprep.subr.mxu0 0.0
      %1093 = vmatpush2.msra.mxu0 0.0
      %1094 = vmatprep.subr.mxu0 0.0
      %1095 = vmatpush2.msra.mxu0 0.0
      %1096 = vmatprep.subr.mxu0 0.0
      %1097 = vmatpush2.msra.mxu0 0.0
      %1098 = vmatprep.subr.mxu0 0.0
      %1099 = vmatpush2.msra.mxu0 0.0
      %1100 = vmatprep.mubr.f32.mxu0 0.0
      %1101 = vmatmul.mubr.f32.gmra.mxu0 %v1034
      %v1102 = vpop.f32.mrf.mxu0
      %v1103 = vadd.f32 %v1031, %v1102
      %v1104 = vpop.f32.mrf.mxu0
      %1105 = vdwg.mxu0
      %vm1106 = vcmask 259072
      %1107 = vst.msk [vmem:[%s344] sm:$0x3f] %vm1106, %v1103
      %p1108 = scmp.lt.s32.totalorder %s20, 1
      %s1109 = scalar_select %p1108, %s20, 1
      %s1110 = smul.addr %s1109, 8
      %s1111 = scalar_lea.vmem %s9, %s1110
      // Predicated region
      $region57: #{graph_pooling_hierarchy_forward.7} parent=55 // pred_check
        %p1112 = pneg %p237
      $region58: #{graph_pooling_hierarchy_forward.7} parent=55 // pred_check_branch
        %1114 = sbr.rel (%p1112) target = $region60
      $region59: #{graph_pooling_hierarchy_forward.7} parent=55 // pred_region
        _
      $region60: #{graph_pooling_hierarchy_forward.7} parent=55 // pred_fallthru
        _
    $region56: #{graph_pooling_hierarchy_forward.7} parent=5 // pred_fallthru
      _
    %p1115 = scmp.le.s32.totalorder 2, %s15
    // Predicated region
    $region61: #{graph_pooling_hierarchy_forward.7} parent=5 // pred_check
      %p1116 = pneg %p1115
    $region62: #{graph_pooling_hierarchy_forward.7} parent=5 // pred_check_branch
      %1118 = sbr.rel (%p1116) target = $region64
    $region63: #{graph_pooling_hierarchy_forward.7} parent=5 // pred_region
      %s1119 = ssub.s32 %s15, 2
      // Predicated region
      $region65: #{graph_pooling_hierarchy_forward.7} parent=63 // pred_check
        %p1120 = pneg %p243
      $region66: #{graph_pooling_hierarchy_forward.7} parent=63 // pred_check_branch
        %1122 = sbr.rel (%p1120) target = $region68
      $region67: #{graph_pooling_hierarchy_forward.7} parent=63 // pred_region
        %p1123 = scmp.lt.s32.totalorder %s21, 1
        %s1124 = scalar_select %p1123, %s21, 1
        %s1125 = smul.addr %s1124, 8
        %s1126 = scalar_lea.vmem %s9, %s1125
      $region68: #{graph_pooling_hierarchy_forward.7} parent=63 // pred_fallthru
        _
    $region64: #{graph_pooling_hierarchy_forward.7} parent=5 // pred_fallthru
      _
  $region6: #{graph_pooling_hierarchy_forward.7} parent=0 // loop_footer
    %s19 = sadd.s32 1, %s15
  $region7: #{graph_pooling_hierarchy_forward.7} parent=0 // loop_footer_branch
    %14 = sbr.rel target = $region3
  $region8: #{graph_pooling_hierarchy_forward.7} parent=0 // loop_exit
    _

</llo_original>
